<compile_context>
chip_gen: v6e
topology: v6e:2x2x1
jax: 0.10.0
libtpu: 0.0.40
codegen_flags: <defaults>
</compile_context>

<pallas_src>
import functools
import math

import jax
import jax.numpy as jnp
from jax.experimental import pallas as pl
from jax.experimental.pallas import tpu as pltpu


def _round_up(x, m):
    return ((x + m - 1) // m) * m


# ----------------------------------------------------------------------------
# Pallas weight-stationary GEMM (+bias, optional fused activation).
# ----------------------------------------------------------------------------
def _gemm_kernel(w_ref, col_ref, b_ref, o_ref, *, activation):
    r = jnp.dot(w_ref[...], col_ref[...], preferred_element_type=jnp.float32)
    r = r + b_ref[...]
    if activation == "relu":
        r = jnp.maximum(r, 0.0)
    elif activation == "sigmoid":
        r = 1.0 / (1.0 + jnp.exp(-r))
    o_ref[...] = r


def _pick_tm(M, K, coutp):
    """Largest M tile keeping double-buffered col/out + resident W under ~16MiB."""
    budget = 16 * 1024 * 1024
    tm = 128
    for cand in (8192, 4096, 2048, 1024, 512, 256, 128):
        need = 2 * (K * cand * 2) + 2 * (coutp * cand * 4) + 2 * (coutp * K * 2)
        if need <= budget:
            tm = cand
            break
    return min(tm, _round_up(max(M, 1), 128))


def gemm_ws(wmat, col, bias, activation):
    """wmat: (coutp, K) bf16; col: (K, M) bf16; bias: (coutp, 1) f32 -> (coutp, M) f32."""
    coutp, K = wmat.shape
    _, M = col.shape
    tm = _pick_tm(M, K, coutp)
    Mp = _round_up(M, tm)
    if Mp != M:                       # only ever pads small / ragged tails
        col = jnp.pad(col, ((0, 0), (0, Mp - M)))
    grid = (Mp // tm,)
    out = pl.pallas_call(
        functools.partial(_gemm_kernel, activation=activation),
        out_shape=jax.ShapeDtypeStruct((coutp, Mp), jnp.float32),
        grid_spec=pltpu.PrefetchScalarGridSpec(
            num_scalar_prefetch=0,
            grid=grid,
            in_specs=[
                pl.BlockSpec((coutp, K), lambda i: (0, 0)),   # resident weights
                pl.BlockSpec((K, tm), lambda i: (0, i)),      # im2col slab
                pl.BlockSpec((coutp, 1), lambda i: (0, 0)),   # resident bias
            ],
            out_specs=pl.BlockSpec((coutp, tm), lambda i: (0, i)),
        ),
        compiler_params=pltpu.CompilerParams(
            dimension_semantics=("parallel",),
            vmem_limit_bytes=32 * 1024 * 1024),
        cost_estimate=pl.CostEstimate(
            flops=2 * Mp * K * coutp,
            transcendentals=coutp * Mp if activation == "sigmoid" else 0,
            bytes_accessed=K * Mp * 2 + coutp * K * 2 + coutp * Mp * 4),
    )(wmat, col, bias)
    return out[:, :M] if Mp != M else out


# ----------------------------------------------------------------------------
# Conv primitives built on the Pallas GEMM (single batch item, channels-first).
# ----------------------------------------------------------------------------
@functools.partial(jax.jit, static_argnames=("pads", "activation"))
def _conv3d_single(x, w, b, pads, activation):
    """x: (Cin, D, H, W); w: (Cout, Cin, kd, kh, kw); b: (Cout,)."""
    Cout, Cin, kd, kh, kw = w.shape
    x = x.astype(jnp.bfloat16)
    if any(p != (0, 0) for p in pads):
        x = jnp.pad(x, ((0, 0),) + pads)
    Dp, Hp, Wp = x.shape[1], x.shape[2], x.shape[3]
    Do, Ho, Wo = Dp - kd + 1, Hp - kh + 1, Wp - kw + 1
    M = Do * Ho * Wo
    K = Cin * kd * kh * kw
    if kd == kh == kw == 1:
        col = x.reshape(Cin, M)
    else:
        taps = []
        for dz in range(kd):
            for dy in range(kh):
                for dx in range(kw):
                    taps.append(
                        x[:, dz:dz + Do, dy:dy + Ho, dx:dx + Wo].reshape(Cin, 1, M))
        # row order = cin-major, (dz,dy,dx)-minor -> matches w.reshape(Cout, K)
        col = jnp.concatenate(taps, axis=1).reshape(K, M)

    coutp = max(8, _round_up(Cout, 8))
    wmat = w.reshape(Cout, K)
    bias = b
    if coutp != Cout:
        wmat = jnp.pad(wmat, ((0, coutp - Cout), (0, 0)))
        bias = jnp.pad(bias, (0, coutp - Cout))
    wmat = wmat.astype(jnp.bfloat16)
    bias = bias.astype(jnp.float32).reshape(coutp, 1)

    out = gemm_ws(wmat, col, bias, activation)            # (coutp, M) f32
    return out[:Cout, :].reshape(Cout, Do, Ho, Wo)


def conv3d(x, p, pad, activation="none"):
    pads = ((pad, pad),) * 3
    outs = [_conv3d_single(x[n], p["w"], p["b"], pads, activation)
            for n in range(x.shape[0])]
    return jnp.stack(outs, axis=0)


@jax.jit
def _dilate2_single(x):
    C, D, H, W = x.shape
    xd = jnp.zeros((C, 2 * D - 1, 2 * H - 1, 2 * W - 1), x.dtype)
    return xd.at[:, ::2, ::2, ::2].set(x)


def conv_transpose3d(x, p):
    """ConvTranspose3d(k=3, stride=2, padding=1, output_padding=1). w: (Cin,Cout,3,3,3)."""
    # TODO(synk): subpixel (8-phase) decomposition would avoid the zero-dilated im2col;
    # these layers run at <=16^3 spatial so the dilation cost is small in absolute terms.
    w, b = p["w"], p["b"]
    wf = jnp.transpose(jnp.flip(w, axis=(2, 3, 4)), (1, 0, 2, 3, 4))  # (Cout,Cin,3,3,3)
    pads = ((1, 2),) * 3
    outs = [_conv3d_single(_dilate2_single(x[n]), wf, b, pads, "none")
            for n in range(x.shape[0])]
    return jnp.stack(outs, axis=0)


# ----------------------------------------------------------------------------
# Glue ops (plain JAX).
# ----------------------------------------------------------------------------
@jax.jit
def batchnorm(x, eps=1e-5):
    # PyTorch train-mode BatchNorm3d, default affine init (gamma=1, beta=0).
    mean = jnp.mean(x, axis=(0, 2, 3, 4), keepdims=True)
    var = jnp.mean((x - mean) ** 2, axis=(0, 2, 3, 4), keepdims=True)
    return (x - mean) * jax.lax.rsqrt(var + eps)


def relu(x):
    return jnp.maximum(x, 0.0)


def sigmoid(x):
    return jax.nn.sigmoid(x)


@jax.jit
def maxpool3d(x):
    N, C, D, H, W = x.shape
    x = x.reshape(N, C, D // 2, 2, H // 2, 2, W // 2, 2)
    return jnp.max(x, axis=(3, 5, 7))


@functools.partial(jax.jit, static_argnames=("r",))
def upsample_trilinear(x, r):
    # nn.Upsample(scale_factor=r, mode='trilinear', align_corners=True)
    def interp(x, axis, out_size):
        in_size = x.shape[axis]
        if out_size == in_size:
            return x
        coords = jnp.arange(out_size, dtype=jnp.float32) * \
            ((in_size - 1) / (out_size - 1))
        lo = jnp.clip(jnp.floor(coords).astype(jnp.int32), 0, in_size - 1)
        hi = jnp.minimum(lo + 1, in_size - 1)
        frac = coords - lo.astype(jnp.float32)
        xl = jnp.take(x, lo, axis=axis)
        xh = jnp.take(x, hi, axis=axis)
        shape = [1] * x.ndim
        shape[axis] = out_size
        frac = frac.reshape(shape)
        return xl * (1.0 - frac) + xh * frac

    N, C, D, H, W = x.shape
    x = interp(x, 2, D * r)
    x = interp(x, 3, H * r)
    x = interp(x, 4, W * r)
    return x


# ----------------------------------------------------------------------------
# Parameter construction (deterministic, synthetic).
# ----------------------------------------------------------------------------
class PInit:
    def __init__(self, seed):
        self.key = jax.random.PRNGKey(seed)
        self.i = 0

    def _next(self):
        self.i += 1
        return jax.random.fold_in(self.key, self.i)

    def conv(self, cin, cout, k):
        fan = cin * k * k * k
        w = jax.random.normal(self._next(), (cout, cin, k, k, k),
                              jnp.float32) / math.sqrt(fan)
        b = jax.random.normal(self._next(), (cout,), jnp.float32) / math.sqrt(fan)
        return {"w": w, "b": b}

    def convT(self, cin, cout, k):
        fan = cin * k * k * k
        w = jax.random.normal(self._next(), (cin, cout, k, k, k),
                              jnp.float32) / math.sqrt(fan)
        b = jax.random.normal(self._next(), (cout,), jnp.float32) / math.sqrt(fan)
        return {"w": w, "b": b}


def make_residual(pi, cin, cout):
    return {"conv1": pi.conv(cin, cout, 3),
            "conv_res": pi.conv(cin, cout, 1),
            "conv2": pi.conv(cout, cout, 3)}


def make_attention(pi, cin):
    return {"conv_1": pi.conv(cin, cin // 2, 3),
            "conv_2": pi.conv(cin // 2, 1, 1)}


def make_encoder_block(pi, cin, cout):
    return {"conv": pi.conv(cin, cout, 3), "res": make_residual(pi, cout, cout)}


CHANNELS = [16, 32, 64, 80, 96]
UP_RATIOS = [16, 8, 4, 2]


def make_decoder(pi, out_ch):
    dec = {"transpose": [], "attn": [], "residual": [], "upsample": []}
    for c1, c2 in zip(list(reversed(CHANNELS)), list(reversed(CHANNELS[:-1]))):
        dec["transpose"].append(pi.convT(c1, c1, 3))
        dec["attn"].append(make_attention(pi, c1 + c2))
        dec["residual"].append(make_residual(pi, c1 + c2, c2))
        dec["upsample"].append(pi.conv(c2, out_ch, 1))
    dec["final_conv"] = pi.conv(CHANNELS[0], out_ch, 1)
    return dec


def make_unet(pi, in_ch, out_ch):
    p = {"encoder": []}
    c = in_ch
    for ch in CHANNELS:
        p["encoder"].append(make_encoder_block(pi, c, ch))
        c = ch
    p.update(make_decoder(pi, out_ch))
    return p


def build_double_unet_params(seed, in_channels, out_channels):
    pi = PInit(seed)
    p = {"in_channels": in_channels}
    p["model_1"] = make_unet(pi, in_channels - 1, out_channels)
    # encoder_attention == 2  ->  AttentionBlock_2(channel*2, concat=True)
    p["encoder_attn"] = [make_attention(pi, ch * 2) for ch in CHANNELS]
    p["encoder"] = []
    c = in_channels
    for ch in CHANNELS:
        p["encoder"].append(make_encoder_block(pi, c, ch))
        c = ch
    p.update(make_decoder(pi, out_channels))
    return p


# ----------------------------------------------------------------------------
# Module forward passes.
# ----------------------------------------------------------------------------
def residual_block(p, x):
    out = conv3d(x, p["conv1"], 1)
    out = relu(batchnorm(out))
    out = conv3d(out, p["conv2"], 1)
    out = batchnorm(out)
    out = out + conv3d(x, p["conv_res"], 0)
    return relu(out)


def attention_block3d(p, x):
    g = conv3d(x, p["conv_1"], 0, activation="relu")       # fused ReLU
    att = conv3d(g, p["conv_2"], 1, activation="sigmoid")  # fused sigmoid, (N,1,D,H,W)
    return x * att + x


def attention_block_2(p, x, x_1):   # concat=True variant
    xc = jnp.concatenate([x, x_1], axis=1)
    g = conv3d(xc, p["conv_1"], 0, activation="relu")
    att = conv3d(g, p["conv_2"], 1, activation="sigmoid")
    return x * att + x


def encoder_block(p, x):
    x = relu(batchnorm(conv3d(x, p["conv"], 1)))
    x = residual_block(p["res"], x)
    return maxpool3d(x)


def transpose_block(p, x):
    return relu(batchnorm(conv_transpose3d(x, p)))


def upsample_block(conv_p, x, ratio):
    return upsample_trilinear(conv3d(x, conv_p, 0), ratio)


def unet3d_forward(p, x):
    skips = []
    for ep in p["encoder"]:
        x = encoder_block(ep, x)
        skips.append(x)
    dec_maps = []
    for i in range(4):
        x = transpose_block(p["transpose"][i], x)
        skip = skips[len(skips) - 2 - i]
        x = jnp.concatenate([x, skip], axis=1)
        x = attention_block3d(p["attn"][i], x)
        x = residual_block(p["residual"][i], x)
        dec_maps.append(upsample_block(p["upsample"][i], x, UP_RATIOS[i]))
    x = upsample_trilinear(conv3d(x, p["final_conv"], 0), 2)
    return x, dec_maps, skips


def double_unet_forward(p, x):
    in_channels = p["in_channels"]
    x1, dec_maps1, skips1 = unet3d_forward(p["model_1"],
                                           x[:, :in_channels - 1])
    seg_map = sigmoid(x1)
    skips = []
    dec_maps = []
    xc = x
    for idx in range(5):
        if idx == 0:
            xc = jnp.concatenate([xc, seg_map], axis=1)
            xc = encoder_block(p["encoder"][0], xc)
        else:
            xc = attention_block_2(p["encoder_attn"][idx - 1], xc, skips1[idx - 1])
            xc = encoder_block(p["encoder"][idx], xc)
        skips.append(xc)
    for i in range(4):
        if i == 0:
            skips.pop()
        xc = transpose_block(p["transpose"][i], xc)
        skip = skips[len(skips) - 1 - i]
        xc = jnp.concatenate([xc, skip], axis=1)
        xc = attention_block3d(p["attn"][i], xc)
        xc = residual_block(p["residual"][i], xc)
        dec_maps.append(upsample_block(p["upsample"][i], xc, UP_RATIOS[i]))
    out = upsample_trilinear(conv3d(xc, p["final_conv"], 0), 2)
    return out, dec_maps + dec_maps1


# ----------------------------------------------------------------------------
if __name__ == "__main__":
    in_channels, out_channels = 3, 1
    # spatial=64 is the smallest size consistent with the module (5 stride-2
    # max-pools + valid 3^3 attention convs + strict x2 transposed convs).
    batch, spatial = 1, 64
    params = build_double_unet_params(seed=1,
                                      in_channels=in_channels,
                                      out_channels=out_channels)
    # input x carries in_channels - out_channels = 2 channels (seg map is concatenated)
    x = jax.random.normal(jax.random.PRNGKey(0),
                          (batch, in_channels - out_channels,
                           spatial, spatial, spatial),
                          dtype=jnp.float32)
    out, decoder_maps = double_unet_forward(params, x)
    out = jax.block_until_ready(out)
    decoder_maps = jax.block_until_ready(decoder_maps)
    assert out.shape == (batch, out_channels, spatial, spatial, spatial)
    assert len(decoder_maps) == 8
    assert all(m.shape == (batch, out_channels, spatial, spatial, spatial)
               for m in decoder_maps)
    assert bool(jnp.all(jnp.isfinite(out)))
    print("KERNEL_OK")
</pallas_src>

<mosaic_0001>
module attributes {stable_mosaic.version = 11 : i64} {
  func.func @_gemm_kernel(%arg0: i32, %arg1: memref<16x54xbf16, #tpu.memory_space<vmem>>, %arg2: memref<54x8192xbf16, #tpu.memory_space<vmem>>, %arg3: memref<16x1xf32, #tpu.memory_space<vmem>>, %arg4: memref<16x8192xf32, #tpu.memory_space<vmem>>) attributes {dimension_semantics = [#tpu.dimension_semantics<parallel>], iteration_bounds = array<i64: 32>, scalar_prefetch = 0 : i64, scratch_operands = 0 : i64, tpu.core_type = #tpu.core_type<tc>, window_params = [{pipeline_mode = #tpu.pipeline_mode<synchronous>, transform_indices = @transform_0, window_bounds = array<i64: 16, 54>}, {transform_indices = @transform_1, window_bounds = array<i64: 54, 8192>}, {pipeline_mode = #tpu.pipeline_mode<synchronous>, transform_indices = @transform_2, window_bounds = array<i64: 16, 1>}, {transform_indices = @transform_3, window_bounds = array<i64: 16, 8192>}]} {
    %c0 = arith.constant 0 : index
    %c0_0 = arith.constant 0 : index
    %0 = vector.load %arg1[%c0, %c0_0] : memref<16x54xbf16, #tpu.memory_space<vmem>>, vector<16x54xbf16>
    %c0_1 = arith.constant 0 : index
    %c0_2 = arith.constant 0 : index
    %1 = vector.load %arg2[%c0_1, %c0_2] : memref<54x8192xbf16, #tpu.memory_space<vmem>>, vector<54x8192xbf16>
    %cst = arith.constant dense<0.000000e+00> : vector<16x8192xf32>
    %2 = tpu.matmul %0, %1, %cst {dimension_numbers = #tpu.dot_dimension_numbers<[1], [0], [0], [1], [0, 0, 1, 1], [], []>} : vector<16x54xbf16>, vector<54x8192xbf16>, vector<16x8192xf32> -> vector<16x8192xf32>
    %c0_3 = arith.constant 0 : index
    %c0_4 = arith.constant 0 : index
    %3 = vector.load %arg3[%c0_3, %c0_4] : memref<16x1xf32, #tpu.memory_space<vmem>>, vector<16x1xf32>
    %4 = vector.broadcast %3 : vector<16x1xf32> to vector<16x8192xf32>
    %5 = arith.addf %2, %4 : vector<16x8192xf32>
    %c0_5 = arith.constant 0 : index
    %c0_6 = arith.constant 0 : index
    %6 = vector.load %arg4[%c0_5, %c0_6] : memref<16x8192xf32, #tpu.memory_space<vmem>>, vector<16x8192xf32>
    tpu.vector_store %arg4[%c0_5, %c0_6], %5 {strides = array<i32>} : memref<16x8192xf32, #tpu.memory_space<vmem>>, vector<16x8192xf32>,
    return
  }
  func.func @transform_0(%arg0: i32) -> (i32, i32) {
    %c0_i32 = arith.constant 0 : i32
    %c0_i32_0 = arith.constant 0 : i32
    %c0_i32_1 = arith.constant 0 : i32
    return %c0_i32, %c0_i32_0 : i32, i32
  }
  func.func @transform_1(%arg0: i32) -> (i32, i32) {
    %c0_i32 = arith.constant 0 : i32
    %c0_i32_0 = arith.constant 0 : i32
    return %c0_i32, %arg0 : i32, i32
  }
  func.func @transform_2(%arg0: i32) -> (i32, i32) {
    %c0_i32 = arith.constant 0 : i32
    %c0_i32_0 = arith.constant 0 : i32
    %c0_i32_1 = arith.constant 0 : i32
    return %c0_i32, %c0_i32_0 : i32, i32
  }
  func.func @transform_3(%arg0: i32) -> (i32, i32) {
    %c0_i32 = arith.constant 0 : i32
    %c0_i32_0 = arith.constant 0 : i32
    return %c0_i32, %arg0 : i32, i32
  }
}

</mosaic_0001>

<llo_original>
// kernel: _conv3d_single.1
$region0: #{_conv3d_single.1}
  #allocation0 [shape = 'u32[]', space=smem, size = 0x4, offset = 0x4, fixed_abs, tag = 'smem constant byte address 0x4 - core index']
  #allocation1 [shape = 'u32[144,128]{1,0:T(1,128)}', space=vmem, size = 0x12000, scoped, tag = 'internal scratch']
  %s0 = inlined_call_operand.vmem [shape: bf16[16,54], index: 0, kind: input, shape index: {}]
  %s1 = inlined_call_operand.vmem [shape: bf16[54,262144], index: 1, kind: input, shape index: {}]
  %s2 = inlined_call_operand.vmem [shape: f32[16,1], index: 2, kind: input, shape index: {}]
  %s3 = inlined_call_operand.vmem [shape: f32[16,262144], index: 3, kind: output, shape index: {}]
  %s4 = sld [smem:[#allocation0]]
  $region87: #{_conv3d_single.1} parent=0
    _
  %s6 = ssub.s32 1, %s4
  %s7 = scalar_select 0, %s6, %s4
  $region1: #{_conv3d_single.1} parent=0
    #allocation2 [shape = 'u8[1835008]{0}', space=vmem, size = 0x1c0000, scoped, tag = 'input window, operand 1']
    #allocation3 [shape = 'u8[1048576]{0}', space=vmem, size = 0x100000, scoped, tag = 'output window, operand 0']
    loop: start=0, step=1, limit=34
    $region2: #{_conv3d_single.1} parent=1 // loop_pre_header
      _
    $region3: #{_conv3d_single.1} parent=1 // loop_header
      %s9 = sphi 0, %s13
      %p10 = scmp.ge.s32.totalorder %s9, 34
      %s17 = sphi 0, %s17
      %s19 = sphi 0, %s17
      %s20 = sphi 0, %s19
      %s34 = sphi 0, %s20
      %s40 = sphi 0, %s42
      %s43 = sphi 0, %s40
      %s44 = sphi 0, %s43
      %s60 = sphi 0, %s44
      %s64 = sphi 0, %s64
      %s66 = sphi 0, %s64
      %s67 = sphi 0, %s66
      %s81 = sphi 0, %s67
      %s87 = sphi 0, %s89
      %s90 = sphi 0, %s87
      %s91 = sphi 0, %s90
      %s107 = sphi 0, %s91
    $region4: #{_conv3d_single.1} parent=1 // loop_header_branch
      %12 = sbr.rel (%p10) target = $region8
    $region5: #{_conv3d_single.1} parent=1 // loop_body
      %s14 = ssub.s32 %s9, 1
      %s15 = ssub.s32 %s9, 2
      %s16 = sadd.s32 %s9, 1
      %s18 = sadd.s32 %s17, 1
      %p21 = scmp.eq.s32.totalorder %s9, 31
      %p22 = scmp.ne.s32.totalorder %s17, %s19
      %p23 = scmp.eq.s32.totalorder %s9, 0
      %p24 = por %p22, %p23
      %p25 = scmp.ne.s32.totalorder %s17, %s19
      %p26 = scmp.eq.s32.totalorder %s14, 31
      %p27 = por %p25, %p26
      %p28 = scmp.ne.s32.totalorder %s19, %s20
      %p29 = scmp.eq.s32.totalorder %s14, 0
      %p30 = por %p28, %p29
      %p31 = scmp.ne.s32.totalorder %s19, %s20
      %p32 = scmp.eq.s32.totalorder %s15, 31
      %p33 = por %p31, %p32
      %p35 = scmp.ne.s32.totalorder %s20, %s34
      %p36 = scmp.eq.s32.totalorder %s15, 0
      %p37 = por %p35, %p36
      %s38 = ssub.s32 %s9, %s16
      %p39 = scmp.eq.s32.totalorder %s38, 0
      %s41 = sadd.s32 %s40, 1
      %s42 = scalar_select %p39, %s40, %s41
      %p45 = pneg %p39
      %p46 = scmp.eq.s32.totalorder %s9, 31
      %p47 = por %p45, %p46
      %p48 = scmp.ne.s32.totalorder %s40, %s43
      %p49 = scmp.eq.s32.totalorder %s9, 0
      %p50 = por %p48, %p49
      %p51 = scmp.ne.s32.totalorder %s40, %s43
      %p52 = scmp.eq.s32.totalorder %s14, 31
      %p53 = por %p51, %p52
      %p54 = scmp.ne.s32.totalorder %s43, %s44
      %p55 = scmp.eq.s32.totalorder %s14, 0
      %p56 = por %p54, %p55
      %p57 = scmp.ne.s32.totalorder %s43, %s44
      %p58 = scmp.eq.s32.totalorder %s15, 31
      %p59 = por %p57, %p58
      %p61 = scmp.ne.s32.totalorder %s44, %s60
      %p62 = scmp.eq.s32.totalorder %s15, 0
      %p63 = por %p61, %p62
      %s65 = sadd.s32 %s64, 1
      %p68 = scmp.eq.s32.totalorder %s9, 31
      %p69 = scmp.ne.s32.totalorder %s64, %s66
      %p70 = scmp.eq.s32.totalorder %s9, 0
      %p71 = por %p69, %p70
      %p72 = scmp.ne.s32.totalorder %s64, %s66
      %p73 = scmp.eq.s32.totalorder %s14, 31
      %p74 = por %p72, %p73
      %p75 = scmp.ne.s32.totalorder %s66, %s67
      %p76 = scmp.eq.s32.totalorder %s14, 0
      %p77 = por %p75, %p76
      %p78 = scmp.ne.s32.totalorder %s66, %s67
      %p79 = scmp.eq.s32.totalorder %s15, 31
      %p80 = por %p78, %p79
      %p82 = scmp.ne.s32.totalorder %s67, %s81
      %p83 = scmp.eq.s32.totalorder %s15, 0
      %p84 = por %p82, %p83
      %s85 = ssub.s32 %s9, %s16
      %p86 = scmp.eq.s32.totalorder %s85, 0
      %s88 = sadd.s32 %s87, 1
      %s89 = scalar_select %p86, %s87, %s88
      %p92 = pneg %p86
      %p93 = scmp.eq.s32.totalorder %s9, 31
      %p94 = por %p92, %p93
      %p95 = scmp.ne.s32.totalorder %s87, %s90
      %p96 = scmp.eq.s32.totalorder %s9, 0
      %p97 = por %p95, %p96
      %p98 = scmp.ne.s32.totalorder %s87, %s90
      %p99 = scmp.eq.s32.totalorder %s14, 31
      %p100 = por %p98, %p99
      %p101 = scmp.ne.s32.totalorder %s90, %s91
      %p102 = scmp.eq.s32.totalorder %s14, 0
      %p103 = por %p101, %p102
      %p104 = scmp.ne.s32.totalorder %s90, %s91
      %p105 = scmp.eq.s32.totalorder %s15, 31
      %p106 = por %p104, %p105
      %p108 = scmp.ne.s32.totalorder %s91, %s107
      %p109 = scmp.eq.s32.totalorder %s15, 0
      %p110 = por %p108, %p109
      %p111 = scmp.le.s32.totalorder 1, %s9
      %p112 = scmp.lt.s32.totalorder %s9, 33
      %p113 = pnand %p111, %p112
      %p114 = pneg %p113
      // Predicated region
      $region9: #{_conv3d_single.1} parent=5 // pred_check
        _
      $region10: #{_conv3d_single.1} parent=5 // pred_check_branch
        %116 = sbr.rel (%p113) target = $region12
      $region11: #{_conv3d_single.1} parent=5 // pred_region
        %s117 = ssub.s32 %s9, 1
        // Predicated region
        $region13: #{_conv3d_single.1} parent=11 // pred_check
          %p118 = pneg %p30
        $region14: #{_conv3d_single.1} parent=11 // pred_check_branch
          %120 = sbr.rel (%p118) target = $region16
        $region15: #{_conv3d_single.1} parent=11 // pred_region
          _
        $region16: #{_conv3d_single.1} parent=11 // pred_fallthru
          _
        // Predicated region
        $region17: #{_conv3d_single.1} parent=11 // pred_check
          %p121 = pneg %p77
        $region18: #{_conv3d_single.1} parent=11 // pred_check_branch
          %123 = sbr.rel (%p121) target = $region20
        $region19: #{_conv3d_single.1} parent=11 // pred_region
          _
        $region20: #{_conv3d_single.1} parent=11 // pred_fallthru
          _
      $region12: #{_conv3d_single.1} parent=5 // pred_fallthru
        _
      %p124 = scmp.lt.s32.totalorder %s9, 32
      // Predicated region
      $region21: #{_conv3d_single.1} parent=5 // pred_check
        %p125 = pneg %p124
      $region22: #{_conv3d_single.1} parent=5 // pred_check_branch
        %127 = sbr.rel (%p125) target = $region24
      $region23: #{_conv3d_single.1} parent=5 // pred_region
        // Predicated region
        $region25: #{_conv3d_single.1} parent=23 // pred_check
          %p128 = pneg %p50
        $region26: #{_conv3d_single.1} parent=23 // pred_check_branch
          %130 = sbr.rel (%p128) target = $region28
        $region27: #{_conv3d_single.1} parent=23 // pred_region
          %s131 = sand.u32 %s40, 1
          %s132 = sand.u32 %s40, 1
          %s133 = smul.addr %s132, 1792
          %s134 = scalar_lea.vmem [#allocation2], %s133
          %s135 = smul.u32 64, %s9
          %s136 = smul.addr %s135, 4
          %s137 = scalar_lea.vmem %s1, %s136
          // Predicated region
          $region29: #{_conv3d_single.1} parent=27 // pred_check
            _
          $region30: #{_conv3d_single.1} parent=27 // pred_check_branch
            %139 = sbr.rel (0) target = $region32
          $region31: #{_conv3d_single.1} parent=27 // pred_region
            // Predicated region
            $region33: #{_conv3d_single.1} parent=31 // pred_check
              _
            $region34: #{_conv3d_single.1} parent=31 // pred_check_branch
              %141 = sbr.rel (0) target = $region36
            $region35: #{_conv3d_single.1} parent=31 // pred_region
              loop: start=0, step=1, limit=1
              $region37: #{_conv3d_single.1} parent=35 // loop_pre_header
                _
              $region38: #{_conv3d_single.1} parent=35 // loop_header
                %s143 = sphi 0, %s147
                %p144 = scmp.ge.s32.totalorder %s143, 1
                %s148 = sphi %s137, %s137
                %s149 = sphi %s134, %s134
              $region39: #{_conv3d_single.1} parent=35 // loop_header_branch
                %146 = sbr.rel (%p144) target = $region43
              $region40: #{_conv3d_single.1} parent=35 // loop_body
                %v150 = vld [vmem:[%s148] sm:$0xff]
                %151 = vst [vmem:[%s149] sm:$0xff] %v150
                %v152 = vld [vmem:[%s148 + $0x8] sm:$0xff]
                %153 = vst [vmem:[%s149 + $0x8] sm:$0xff] %v152
                %v154 = vld [vmem:[%s148 + $0x10] sm:$0xff]
                %155 = vst [vmem:[%s149 + $0x10] sm:$0xff] %v154
                %v156 = vld [vmem:[%s148 + $0x18] sm:$0xff]
                %157 = vst [vmem:[%s149 + $0x18] sm:$0xff] %v156
                %v158 = vld [vmem:[%s148 + $0x20] sm:$0xff]
                %159 = vst [vmem:[%s149 + $0x20] sm:$0xff] %v158
                %v160 = vld [vmem:[%s148 + $0x28] sm:$0xff]
                %161 = vst [vmem:[%s149 + $0x28] sm:$0xff] %v160
                %v162 = vld [vmem:[%s148 + $0x30] sm:$0xff]
                %163 = vst [vmem:[%s149 + $0x30] sm:$0xff] %v162
                %v164 = vld [vmem:[%s148 + $0x38] sm:$0xff]
                %165 = vst [vmem:[%s149 + $0x38] sm:$0xff] %v164
                %v166 = vld [vmem:[%s148 + $0x40] sm:$0xff]
                %167 = vst [vmem:[%s149 + $0x40] sm:$0xff] %v166
                %v168 = vld [vmem:[%s148 + $0x48] sm:$0xff]
                %169 = vst [vmem:[%s149 + $0x48] sm:$0xff] %v168
                %v170 = vld [vmem:[%s148 + $0x50] sm:$0xff]
                %171 = vst [vmem:[%s149 + $0x50] sm:$0xff] %v170
                %v172 = vld [vmem:[%s148 + $0x58] sm:$0xff]
                %173 = vst [vmem:[%s149 + $0x58] sm:$0xff] %v172
                %v174 = vld [vmem:[%s148 + $0x60] sm:$0xff]
                %175 = vst [vmem:[%s149 + $0x60] sm:$0xff] %v174
                %v176 = vld [vmem:[%s148 + $0x68] sm:$0xff]
                %177 = vst [vmem:[%s149 + $0x68] sm:$0xff] %v176
                %v178 = vld [vmem:[%s148 + $0x70] sm:$0xff]
                %179 = vst [vmem:[%s149 + $0x70] sm:$0xff] %v178
                %v180 = vld [vmem:[%s148 + $0x78] sm:$0xff]
                %181 = vst [vmem:[%s149 + $0x78] sm:$0xff] %v180
                %v182 = vld [vmem:[%s148 + $0x80] sm:$0xff]
                %183 = vst [vmem:[%s149 + $0x80] sm:$0xff] %v182
                %v184 = vld [vmem:[%s148 + $0x88] sm:$0xff]
                %185 = vst [vmem:[%s149 + $0x88] sm:$0xff] %v184
                %v186 = vld [vmem:[%s148 + $0x90] sm:$0xff]
                %187 = vst [vmem:[%s149 + $0x90] sm:$0xff] %v186
                %v188 = vld [vmem:[%s148 + $0x98] sm:$0xff]
                %189 = vst [vmem:[%s149 + $0x98] sm:$0xff] %v188
                %v190 = vld [vmem:[%s148 + $0xa0] sm:$0xff]
                %191 = vst [vmem:[%s149 + $0xa0] sm:$0xff] %v190
                %v192 = vld [vmem:[%s148 + $0xa8] sm:$0xff]
                %193 = vst [vmem:[%s149 + $0xa8] sm:$0xff] %v192
                %v194 = vld [vmem:[%s148 + $0xb0] sm:$0xff]
                %195 = vst [vmem:[%s149 + $0xb0] sm:$0xff] %v194
                %v196 = vld [vmem:[%s148 + $0xb8] sm:$0xff]
                %197 = vst [vmem:[%s149 + $0xb8] sm:$0xff] %v196
                %v198 = vld [vmem:[%s148 + $0xc0] sm:$0xff]
                %199 = vst [vmem:[%s149 + $0xc0] sm:$0xff] %v198
                %v200 = vld [vmem:[%s148 + $0xc8] sm:$0xff]
                %201 = vst [vmem:[%s149 + $0xc8] sm:$0xff] %v200
                %v202 = vld [vmem:[%s148 + $0xd0] sm:$0xff]
                %203 = vst [vmem:[%s149 + $0xd0] sm:$0xff] %v202
                %v204 = vld [vmem:[%s148 + $0xd8] sm:$0xff]
                %205 = vst [vmem:[%s149 + $0xd8] sm:$0xff] %v204
                %v206 = vld [vmem:[%s148 + $0xe0] sm:$0xff]
                %207 = vst [vmem:[%s149 + $0xe0] sm:$0xff] %v206
                %v208 = vld [vmem:[%s148 + $0xe8] sm:$0xff]
                %209 = vst [vmem:[%s149 + $0xe8] sm:$0xff] %v208
                %v210 = vld [vmem:[%s148 + $0xf0] sm:$0xff]
                %211 = vst [vmem:[%s149 + $0xf0] sm:$0xff] %v210
                %v212 = vld [vmem:[%s148 + $0xf8] sm:$0xff]
                %213 = vst [vmem:[%s149 + $0xf8] sm:$0xff] %v212
                %v214 = vld [vmem:[%s148 + $0x2000] sm:$0xff]
                %215 = vst [vmem:[%s149 + $0x100] sm:$0xff] %v214
                %v216 = vld [vmem:[%s148 + $0x2008] sm:$0xff]
                %217 = vst [vmem:[%s149 + $0x108] sm:$0xff] %v216
                %v218 = vld [vmem:[%s148 + $0x2010] sm:$0xff]
                %219 = vst [vmem:[%s149 + $0x110] sm:$0xff] %v218
                %v220 = vld [vmem:[%s148 + $0x2018] sm:$0xff]
                %221 = vst [vmem:[%s149 + $0x118] sm:$0xff] %v220
                %v222 = vld [vmem:[%s148 + $0x2020] sm:$0xff]
                %223 = vst [vmem:[%s149 + $0x120] sm:$0xff] %v222
                %v224 = vld [vmem:[%s148 + $0x2028] sm:$0xff]
                %225 = vst [vmem:[%s149 + $0x128] sm:$0xff] %v224
                %v226 = vld [vmem:[%s148 + $0x2030] sm:$0xff]
                %227 = vst [vmem:[%s149 + $0x130] sm:$0xff] %v226
                %v228 = vld [vmem:[%s148 + $0x2038] sm:$0xff]
                %229 = vst [vmem:[%s149 + $0x138] sm:$0xff] %v228
                %v230 = vld [vmem:[%s148 + $0x2040] sm:$0xff]
                %231 = vst [vmem:[%s149 + $0x140] sm:$0xff] %v230
                %v232 = vld [vmem:[%s148 + $0x2048] sm:$0xff]
                %233 = vst [vmem:[%s149 + $0x148] sm:$0xff] %v232
                %v234 = vld [vmem:[%s148 + $0x2050] sm:$0xff]
                %235 = vst [vmem:[%s149 + $0x150] sm:$0xff] %v234
                %v236 = vld [vmem:[%s148 + $0x2058] sm:$0xff]
                %237 = vst [vmem:[%s149 + $0x158] sm:$0xff] %v236
                %v238 = vld [vmem:[%s148 + $0x2060] sm:$0xff]
                %239 = vst [vmem:[%s149 + $0x160] sm:$0xff] %v238
                %v240 = vld [vmem:[%s148 + $0x2068] sm:$0xff]
                %241 = vst [vmem:[%s149 + $0x168] sm:$0xff] %v240
                %v242 = vld [vmem:[%s148 + $0x2070] sm:$0xff]
                %243 = vst [vmem:[%s149 + $0x170] sm:$0xff] %v242
                %v244 = vld [vmem:[%s148 + $0x2078] sm:$0xff]
                %245 = vst [vmem:[%s149 + $0x178] sm:$0xff] %v244
                %v246 = vld [vmem:[%s148 + $0x2080] sm:$0xff]
                %247 = vst [vmem:[%s149 + $0x180] sm:$0xff] %v246
                %v248 = vld [vmem:[%s148 + $0x2088] sm:$0xff]
                %249 = vst [vmem:[%s149 + $0x188] sm:$0xff] %v248
                %v250 = vld [vmem:[%s148 + $0x2090] sm:$0xff]
                %251 = vst [vmem:[%s149 + $0x190] sm:$0xff] %v250
                %v252 = vld [vmem:[%s148 + $0x2098] sm:$0xff]
                %253 = vst [vmem:[%s149 + $0x198] sm:$0xff] %v252
                %v254 = vld [vmem:[%s148 + $0x20a0] sm:$0xff]
                %255 = vst [vmem:[%s149 + $0x1a0] sm:$0xff] %v254
                %v256 = vld [vmem:[%s148 + $0x20a8] sm:$0xff]
                %257 = vst [vmem:[%s149 + $0x1a8] sm:$0xff] %v256
                %v258 = vld [vmem:[%s148 + $0x20b0] sm:$0xff]
                %259 = vst [vmem:[%s149 + $0x1b0] sm:$0xff] %v258
                %v260 = vld [vmem:[%s148 + $0x20b8] sm:$0xff]
                %261 = vst [vmem:[%s149 + $0x1b8] sm:$0xff] %v260
                %v262 = vld [vmem:[%s148 + $0x20c0] sm:$0xff]
                %263 = vst [vmem:[%s149 + $0x1c0] sm:$0xff] %v262
                %v264 = vld [vmem:[%s148 + $0x20c8] sm:$0xff]
                %265 = vst [vmem:[%s149 + $0x1c8] sm:$0xff] %v264
                %v266 = vld [vmem:[%s148 + $0x20d0] sm:$0xff]
                %267 = vst [vmem:[%s149 + $0x1d0] sm:$0xff] %v266
                %v268 = vld [vmem:[%s148 + $0x20d8] sm:$0xff]
                %269 = vst [vmem:[%s149 + $0x1d8] sm:$0xff] %v268
                %v270 = vld [vmem:[%s148 + $0x20e0] sm:$0xff]
                %271 = vst [vmem:[%s149 + $0x1e0] sm:$0xff] %v270
                %v272 = vld [vmem:[%s148 + $0x20e8] sm:$0xff]
                %273 = vst [vmem:[%s149 + $0x1e8] sm:$0xff] %v272
                %v274 = vld [vmem:[%s148 + $0x20f0] sm:$0xff]
                %275 = vst [vmem:[%s149 + $0x1f0] sm:$0xff] %v274
                %v276 = vld [vmem:[%s148 + $0x20f8] sm:$0xff]
                %277 = vst [vmem:[%s149 + $0x1f8] sm:$0xff] %v276
                %v278 = vld [vmem:[%s148 + $0x4000] sm:$0xff]
                %279 = vst [vmem:[%s149 + $0x200] sm:$0xff] %v278
                %v280 = vld [vmem:[%s148 + $0x4008] sm:$0xff]
                %281 = vst [vmem:[%s149 + $0x208] sm:$0xff] %v280
                %v282 = vld [vmem:[%s148 + $0x4010] sm:$0xff]
                %283 = vst [vmem:[%s149 + $0x210] sm:$0xff] %v282
                %v284 = vld [vmem:[%s148 + $0x4018] sm:$0xff]
                %285 = vst [vmem:[%s149 + $0x218] sm:$0xff] %v284
                %v286 = vld [vmem:[%s148 + $0x4020] sm:$0xff]
                %287 = vst [vmem:[%s149 + $0x220] sm:$0xff] %v286
                %v288 = vld [vmem:[%s148 + $0x4028] sm:$0xff]
                %289 = vst [vmem:[%s149 + $0x228] sm:$0xff] %v288
                %v290 = vld [vmem:[%s148 + $0x4030] sm:$0xff]
                %291 = vst [vmem:[%s149 + $0x230] sm:$0xff] %v290
                %v292 = vld [vmem:[%s148 + $0x4038] sm:$0xff]
                %293 = vst [vmem:[%s149 + $0x238] sm:$0xff] %v292
                %v294 = vld [vmem:[%s148 + $0x4040] sm:$0xff]
                %295 = vst [vmem:[%s149 + $0x240] sm:$0xff] %v294
                %v296 = vld [vmem:[%s148 + $0x4048] sm:$0xff]
                %297 = vst [vmem:[%s149 + $0x248] sm:$0xff] %v296
                %v298 = vld [vmem:[%s148 + $0x4050] sm:$0xff]
                %299 = vst [vmem:[%s149 + $0x250] sm:$0xff] %v298
                %v300 = vld [vmem:[%s148 + $0x4058] sm:$0xff]
                %301 = vst [vmem:[%s149 + $0x258] sm:$0xff] %v300
                %v302 = vld [vmem:[%s148 + $0x4060] sm:$0xff]
                %303 = vst [vmem:[%s149 + $0x260] sm:$0xff] %v302
                %v304 = vld [vmem:[%s148 + $0x4068] sm:$0xff]
                %305 = vst [vmem:[%s149 + $0x268] sm:$0xff] %v304
                %v306 = vld [vmem:[%s148 + $0x4070] sm:$0xff]
                %307 = vst [vmem:[%s149 + $0x270] sm:$0xff] %v306
                %v308 = vld [vmem:[%s148 + $0x4078] sm:$0xff]
                %309 = vst [vmem:[%s149 + $0x278] sm:$0xff] %v308
                %v310 = vld [vmem:[%s148 + $0x4080] sm:$0xff]
                %311 = vst [vmem:[%s149 + $0x280] sm:$0xff] %v310
                %v312 = vld [vmem:[%s148 + $0x4088] sm:$0xff]
                %313 = vst [vmem:[%s149 + $0x288] sm:$0xff] %v312
                %v314 = vld [vmem:[%s148 + $0x4090] sm:$0xff]
                %315 = vst [vmem:[%s149 + $0x290] sm:$0xff] %v314
                %v316 = vld [vmem:[%s148 + $0x4098] sm:$0xff]
                %317 = vst [vmem:[%s149 + $0x298] sm:$0xff] %v316
                %v318 = vld [vmem:[%s148 + $0x40a0] sm:$0xff]
                %319 = vst [vmem:[%s149 + $0x2a0] sm:$0xff] %v318
                %v320 = vld [vmem:[%s148 + $0x40a8] sm:$0xff]
                %321 = vst [vmem:[%s149 + $0x2a8] sm:$0xff] %v320
                %v322 = vld [vmem:[%s148 + $0x40b0] sm:$0xff]
                %323 = vst [vmem:[%s149 + $0x2b0] sm:$0xff] %v322
                %v324 = vld [vmem:[%s148 + $0x40b8] sm:$0xff]
                %325 = vst [vmem:[%s149 + $0x2b8] sm:$0xff] %v324
                %v326 = vld [vmem:[%s148 + $0x40c0] sm:$0xff]
                %327 = vst [vmem:[%s149 + $0x2c0] sm:$0xff] %v326
                %v328 = vld [vmem:[%s148 + $0x40c8] sm:$0xff]
                %329 = vst [vmem:[%s149 + $0x2c8] sm:$0xff] %v328
                %v330 = vld [vmem:[%s148 + $0x40d0] sm:$0xff]
                %331 = vst [vmem:[%s149 + $0x2d0] sm:$0xff] %v330
                %v332 = vld [vmem:[%s148 + $0x40d8] sm:$0xff]
                %333 = vst [vmem:[%s149 + $0x2d8] sm:$0xff] %v332
                %v334 = vld [vmem:[%s148 + $0x40e0] sm:$0xff]
                %335 = vst [vmem:[%s149 + $0x2e0] sm:$0xff] %v334
                %v336 = vld [vmem:[%s148 + $0x40e8] sm:$0xff]
                %337 = vst [vmem:[%s149 + $0x2e8] sm:$0xff] %v336
                %v338 = vld [vmem:[%s148 + $0x40f0] sm:$0xff]
                %339 = vst [vmem:[%s149 + $0x2f0] sm:$0xff] %v338
                %v340 = vld [vmem:[%s148 + $0x40f8] sm:$0xff]
                %341 = vst [vmem:[%s149 + $0x2f8] sm:$0xff] %v340
                %v342 = vld [vmem:[%s148 + $0x6000] sm:$0xff]
                %343 = vst [vmem:[%s149 + $0x300] sm:$0xff] %v342
                %v344 = vld [vmem:[%s148 + $0x6008] sm:$0xff]
                %345 = vst [vmem:[%s149 + $0x308] sm:$0xff] %v344
                %v346 = vld [vmem:[%s148 + $0x6010] sm:$0xff]
                %347 = vst [vmem:[%s149 + $0x310] sm:$0xff] %v346
                %v348 = vld [vmem:[%s148 + $0x6018] sm:$0xff]
                %349 = vst [vmem:[%s149 + $0x318] sm:$0xff] %v348
                %v350 = vld [vmem:[%s148 + $0x6020] sm:$0xff]
                %351 = vst [vmem:[%s149 + $0x320] sm:$0xff] %v350
                %v352 = vld [vmem:[%s148 + $0x6028] sm:$0xff]
                %353 = vst [vmem:[%s149 + $0x328] sm:$0xff] %v352
                %v354 = vld [vmem:[%s148 + $0x6030] sm:$0xff]
                %355 = vst [vmem:[%s149 + $0x330] sm:$0xff] %v354
                %v356 = vld [vmem:[%s148 + $0x6038] sm:$0xff]
                %357 = vst [vmem:[%s149 + $0x338] sm:$0xff] %v356
                %v358 = vld [vmem:[%s148 + $0x6040] sm:$0xff]
                %359 = vst [vmem:[%s149 + $0x340] sm:$0xff] %v358
                %v360 = vld [vmem:[%s148 + $0x6048] sm:$0xff]
                %361 = vst [vmem:[%s149 + $0x348] sm:$0xff] %v360
                %v362 = vld [vmem:[%s148 + $0x6050] sm:$0xff]
                %363 = vst [vmem:[%s149 + $0x350] sm:$0xff] %v362
                %v364 = vld [vmem:[%s148 + $0x6058] sm:$0xff]
                %365 = vst [vmem:[%s149 + $0x358] sm:$0xff] %v364
                %v366 = vld [vmem:[%s148 + $0x6060] sm:$0xff]
                %367 = vst [vmem:[%s149 + $0x360] sm:$0xff] %v366
                %v368 = vld [vmem:[%s148 + $0x6068] sm:$0xff]
                %369 = vst [vmem:[%s149 + $0x368] sm:$0xff] %v368
                %v370 = vld [vmem:[%s148 + $0x6070] sm:$0xff]
                %371 = vst [vmem:[%s149 + $0x370] sm:$0xff] %v370
                %v372 = vld [vmem:[%s148 + $0x6078] sm:$0xff]
                %373 = vst [vmem:[%s149 + $0x378] sm:$0xff] %v372
                %v374 = vld [vmem:[%s148 + $0x6080] sm:$0xff]
                %375 = vst [vmem:[%s149 + $0x380] sm:$0xff] %v374
                %v376 = vld [vmem:[%s148 + $0x6088] sm:$0xff]
                %377 = vst [vmem:[%s149 + $0x388] sm:$0xff] %v376
                %v378 = vld [vmem:[%s148 + $0x6090] sm:$0xff]
                %379 = vst [vmem:[%s149 + $0x390] sm:$0xff] %v378
                %v380 = vld [vmem:[%s148 + $0x6098] sm:$0xff]
                %381 = vst [vmem:[%s149 + $0x398] sm:$0xff] %v380
                %v382 = vld [vmem:[%s148 + $0x60a0] sm:$0xff]
                %383 = vst [vmem:[%s149 + $0x3a0] sm:$0xff] %v382
                %v384 = vld [vmem:[%s148 + $0x60a8] sm:$0xff]
                %385 = vst [vmem:[%s149 + $0x3a8] sm:$0xff] %v384
                %v386 = vld [vmem:[%s148 + $0x60b0] sm:$0xff]
                %387 = vst [vmem:[%s149 + $0x3b0] sm:$0xff] %v386
                %v388 = vld [vmem:[%s148 + $0x60b8] sm:$0xff]
                %389 = vst [vmem:[%s149 + $0x3b8] sm:$0xff] %v388
                %v390 = vld [vmem:[%s148 + $0x60c0] sm:$0xff]
                %391 = vst [vmem:[%s149 + $0x3c0] sm:$0xff] %v390
                %v392 = vld [vmem:[%s148 + $0x60c8] sm:$0xff]
                %393 = vst [vmem:[%s149 + $0x3c8] sm:$0xff] %v392
                %v394 = vld [vmem:[%s148 + $0x60d0] sm:$0xff]
                %395 = vst [vmem:[%s149 + $0x3d0] sm:$0xff] %v394
                %v396 = vld [vmem:[%s148 + $0x60d8] sm:$0xff]
                %397 = vst [vmem:[%s149 + $0x3d8] sm:$0xff] %v396
                %v398 = vld [vmem:[%s148 + $0x60e0] sm:$0xff]
                %399 = vst [vmem:[%s149 + $0x3e0] sm:$0xff] %v398
                %v400 = vld [vmem:[%s148 + $0x60e8] sm:$0xff]
                %401 = vst [vmem:[%s149 + $0x3e8] sm:$0xff] %v400
                %v402 = vld [vmem:[%s148 + $0x60f0] sm:$0xff]
                %403 = vst [vmem:[%s149 + $0x3f0] sm:$0xff] %v402
                %v404 = vld [vmem:[%s148 + $0x60f8] sm:$0xff]
                %405 = vst [vmem:[%s149 + $0x3f8] sm:$0xff] %v404
                %v406 = vld [vmem:[%s148 + $0x8000] sm:$0xff]
                %407 = vst [vmem:[%s149 + $0x400] sm:$0xff] %v406
                %v408 = vld [vmem:[%s148 + $0x8008] sm:$0xff]
                %409 = vst [vmem:[%s149 + $0x408] sm:$0xff] %v408
                %v410 = vld [vmem:[%s148 + $0x8010] sm:$0xff]
                %411 = vst [vmem:[%s149 + $0x410] sm:$0xff] %v410
                %v412 = vld [vmem:[%s148 + $0x8018] sm:$0xff]
                %413 = vst [vmem:[%s149 + $0x418] sm:$0xff] %v412
                %v414 = vld [vmem:[%s148 + $0x8020] sm:$0xff]
                %415 = vst [vmem:[%s149 + $0x420] sm:$0xff] %v414
                %v416 = vld [vmem:[%s148 + $0x8028] sm:$0xff]
                %417 = vst [vmem:[%s149 + $0x428] sm:$0xff] %v416
                %v418 = vld [vmem:[%s148 + $0x8030] sm:$0xff]
                %419 = vst [vmem:[%s149 + $0x430] sm:$0xff] %v418
                %v420 = vld [vmem:[%s148 + $0x8038] sm:$0xff]
                %421 = vst [vmem:[%s149 + $0x438] sm:$0xff] %v420
                %v422 = vld [vmem:[%s148 + $0x8040] sm:$0xff]
                %423 = vst [vmem:[%s149 + $0x440] sm:$0xff] %v422
                %v424 = vld [vmem:[%s148 + $0x8048] sm:$0xff]
                %425 = vst [vmem:[%s149 + $0x448] sm:$0xff] %v424
                %v426 = vld [vmem:[%s148 + $0x8050] sm:$0xff]
                %427 = vst [vmem:[%s149 + $0x450] sm:$0xff] %v426
                %v428 = vld [vmem:[%s148 + $0x8058] sm:$0xff]
                %429 = vst [vmem:[%s149 + $0x458] sm:$0xff] %v428
                %v430 = vld [vmem:[%s148 + $0x8060] sm:$0xff]
                %431 = vst [vmem:[%s149 + $0x460] sm:$0xff] %v430
                %v432 = vld [vmem:[%s148 + $0x8068] sm:$0xff]
                %433 = vst [vmem:[%s149 + $0x468] sm:$0xff] %v432
                %v434 = vld [vmem:[%s148 + $0x8070] sm:$0xff]
                %435 = vst [vmem:[%s149 + $0x470] sm:$0xff] %v434
                %v436 = vld [vmem:[%s148 + $0x8078] sm:$0xff]
                %437 = vst [vmem:[%s149 + $0x478] sm:$0xff] %v436
                %v438 = vld [vmem:[%s148 + $0x8080] sm:$0xff]
                %439 = vst [vmem:[%s149 + $0x480] sm:$0xff] %v438
                %v440 = vld [vmem:[%s148 + $0x8088] sm:$0xff]
                %441 = vst [vmem:[%s149 + $0x488] sm:$0xff] %v440
                %v442 = vld [vmem:[%s148 + $0x8090] sm:$0xff]
                %443 = vst [vmem:[%s149 + $0x490] sm:$0xff] %v442
                %v444 = vld [vmem:[%s148 + $0x8098] sm:$0xff]
                %445 = vst [vmem:[%s149 + $0x498] sm:$0xff] %v444
                %v446 = vld [vmem:[%s148 + $0x80a0] sm:$0xff]
                %447 = vst [vmem:[%s149 + $0x4a0] sm:$0xff] %v446
                %v448 = vld [vmem:[%s148 + $0x80a8] sm:$0xff]
                %449 = vst [vmem:[%s149 + $0x4a8] sm:$0xff] %v448
                %v450 = vld [vmem:[%s148 + $0x80b0] sm:$0xff]
                %451 = vst [vmem:[%s149 + $0x4b0] sm:$0xff] %v450
                %v452 = vld [vmem:[%s148 + $0x80b8] sm:$0xff]
                %453 = vst [vmem:[%s149 + $0x4b8] sm:$0xff] %v452
                %v454 = vld [vmem:[%s148 + $0x80c0] sm:$0xff]
                %455 = vst [vmem:[%s149 + $0x4c0] sm:$0xff] %v454
                %v456 = vld [vmem:[%s148 + $0x80c8] sm:$0xff]
                %457 = vst [vmem:[%s149 + $0x4c8] sm:$0xff] %v456
                %v458 = vld [vmem:[%s148 + $0x80d0] sm:$0xff]
                %459 = vst [vmem:[%s149 + $0x4d0] sm:$0xff] %v458
                %v460 = vld [vmem:[%s148 + $0x80d8] sm:$0xff]
                %461 = vst [vmem:[%s149 + $0x4d8] sm:$0xff] %v460
                %v462 = vld [vmem:[%s148 + $0x80e0] sm:$0xff]
                %463 = vst [vmem:[%s149 + $0x4e0] sm:$0xff] %v462
                %v464 = vld [vmem:[%s148 + $0x80e8] sm:$0xff]
                %465 = vst [vmem:[%s149 + $0x4e8] sm:$0xff] %v464
                %v466 = vld [vmem:[%s148 + $0x80f0] sm:$0xff]
                %467 = vst [vmem:[%s149 + $0x4f0] sm:$0xff] %v466
                %v468 = vld [vmem:[%s148 + $0x80f8] sm:$0xff]
                %469 = vst [vmem:[%s149 + $0x4f8] sm:$0xff] %v468
                %v470 = vld [vmem:[%s148 + $0xa000] sm:$0xff]
                %471 = vst [vmem:[%s149 + $0x500] sm:$0xff] %v470
                %v472 = vld [vmem:[%s148 + $0xa008] sm:$0xff]
                %473 = vst [vmem:[%s149 + $0x508] sm:$0xff] %v472
                %v474 = vld [vmem:[%s148 + $0xa010] sm:$0xff]
                %475 = vst [vmem:[%s149 + $0x510] sm:$0xff] %v474
                %v476 = vld [vmem:[%s148 + $0xa018] sm:$0xff]
                %477 = vst [vmem:[%s149 + $0x518] sm:$0xff] %v476
                %v478 = vld [vmem:[%s148 + $0xa020] sm:$0xff]
                %479 = vst [vmem:[%s149 + $0x520] sm:$0xff] %v478
                %v480 = vld [vmem:[%s148 + $0xa028] sm:$0xff]
                %481 = vst [vmem:[%s149 + $0x528] sm:$0xff] %v480
                %v482 = vld [vmem:[%s148 + $0xa030] sm:$0xff]
                %483 = vst [vmem:[%s149 + $0x530] sm:$0xff] %v482
                %v484 = vld [vmem:[%s148 + $0xa038] sm:$0xff]
                %485 = vst [vmem:[%s149 + $0x538] sm:$0xff] %v484
                %v486 = vld [vmem:[%s148 + $0xa040] sm:$0xff]
                %487 = vst [vmem:[%s149 + $0x540] sm:$0xff] %v486
                %v488 = vld [vmem:[%s148 + $0xa048] sm:$0xff]
                %489 = vst [vmem:[%s149 + $0x548] sm:$0xff] %v488
                %v490 = vld [vmem:[%s148 + $0xa050] sm:$0xff]
                %491 = vst [vmem:[%s149 + $0x550] sm:$0xff] %v490
                %v492 = vld [vmem:[%s148 + $0xa058] sm:$0xff]
                %493 = vst [vmem:[%s149 + $0x558] sm:$0xff] %v492
                %v494 = vld [vmem:[%s148 + $0xa060] sm:$0xff]
                %495 = vst [vmem:[%s149 + $0x560] sm:$0xff] %v494
                %v496 = vld [vmem:[%s148 + $0xa068] sm:$0xff]
                %497 = vst [vmem:[%s149 + $0x568] sm:$0xff] %v496
                %v498 = vld [vmem:[%s148 + $0xa070] sm:$0xff]
                %499 = vst [vmem:[%s149 + $0x570] sm:$0xff] %v498
                %v500 = vld [vmem:[%s148 + $0xa078] sm:$0xff]
                %501 = vst [vmem:[%s149 + $0x578] sm:$0xff] %v500
                %v502 = vld [vmem:[%s148 + $0xa080] sm:$0xff]
                %503 = vst [vmem:[%s149 + $0x580] sm:$0xff] %v502
                %v504 = vld [vmem:[%s148 + $0xa088] sm:$0xff]
                %505 = vst [vmem:[%s149 + $0x588] sm:$0xff] %v504
                %v506 = vld [vmem:[%s148 + $0xa090] sm:$0xff]
                %507 = vst [vmem:[%s149 + $0x590] sm:$0xff] %v506
                %v508 = vld [vmem:[%s148 + $0xa098] sm:$0xff]
                %509 = vst [vmem:[%s149 + $0x598] sm:$0xff] %v508
                %v510 = vld [vmem:[%s148 + $0xa0a0] sm:$0xff]
                %511 = vst [vmem:[%s149 + $0x5a0] sm:$0xff] %v510
                %v512 = vld [vmem:[%s148 + $0xa0a8] sm:$0xff]
                %513 = vst [vmem:[%s149 + $0x5a8] sm:$0xff] %v512
                %v514 = vld [vmem:[%s148 + $0xa0b0] sm:$0xff]
                %515 = vst [vmem:[%s149 + $0x5b0] sm:$0xff] %v514
                %v516 = vld [vmem:[%s148 + $0xa0b8] sm:$0xff]
                %517 = vst [vmem:[%s149 + $0x5b8] sm:$0xff] %v516
                %v518 = vld [vmem:[%s148 + $0xa0c0] sm:$0xff]
                %519 = vst [vmem:[%s149 + $0x5c0] sm:$0xff] %v518
                %v520 = vld [vmem:[%s148 + $0xa0c8] sm:$0xff]
                %521 = vst [vmem:[%s149 + $0x5c8] sm:$0xff] %v520
                %v522 = vld [vmem:[%s148 + $0xa0d0] sm:$0xff]
                %523 = vst [vmem:[%s149 + $0x5d0] sm:$0xff] %v522
                %v524 = vld [vmem:[%s148 + $0xa0d8] sm:$0xff]
                %525 = vst [vmem:[%s149 + $0x5d8] sm:$0xff] %v524
                %v526 = vld [vmem:[%s148 + $0xa0e0] sm:$0xff]
                %527 = vst [vmem:[%s149 + $0x5e0] sm:$0xff] %v526
                %v528 = vld [vmem:[%s148 + $0xa0e8] sm:$0xff]
                %529 = vst [vmem:[%s149 + $0x5e8] sm:$0xff] %v528
                %v530 = vld [vmem:[%s148 + $0xa0f0] sm:$0xff]
                %531 = vst [vmem:[%s149 + $0x5f0] sm:$0xff] %v530
                %v532 = vld [vmem:[%s148 + $0xa0f8] sm:$0xff]
                %533 = vst [vmem:[%s149 + $0x5f8] sm:$0xff] %v532
                %v534 = vld [vmem:[%s148 + $0xc000] sm:$0xff]
                %535 = vst [vmem:[%s149 + $0x600] sm:$0xff] %v534
                %v536 = vld [vmem:[%s148 + $0xc008] sm:$0xff]
                %537 = vst [vmem:[%s149 + $0x608] sm:$0xff] %v536
                %v538 = vld [vmem:[%s148 + $0xc010] sm:$0xff]
                %539 = vst [vmem:[%s149 + $0x610] sm:$0xff] %v538
                %v540 = vld [vmem:[%s148 + $0xc018] sm:$0xff]
                %541 = vst [vmem:[%s149 + $0x618] sm:$0xff] %v540
                %v542 = vld [vmem:[%s148 + $0xc020] sm:$0xff]
                %543 = vst [vmem:[%s149 + $0x620] sm:$0xff] %v542
                %v544 = vld [vmem:[%s148 + $0xc028] sm:$0xff]
                %545 = vst [vmem:[%s149 + $0x628] sm:$0xff] %v544
                %v546 = vld [vmem:[%s148 + $0xc030] sm:$0xff]
                %547 = vst [vmem:[%s149 + $0x630] sm:$0xff] %v546
                %v548 = vld [vmem:[%s148 + $0xc038] sm:$0xff]
                %549 = vst [vmem:[%s149 + $0x638] sm:$0xff] %v548
                %v550 = vld [vmem:[%s148 + $0xc040] sm:$0xff]
                %551 = vst [vmem:[%s149 + $0x640] sm:$0xff] %v550
                %v552 = vld [vmem:[%s148 + $0xc048] sm:$0xff]
                %553 = vst [vmem:[%s149 + $0x648] sm:$0xff] %v552
                %v554 = vld [vmem:[%s148 + $0xc050] sm:$0xff]
                %555 = vst [vmem:[%s149 + $0x650] sm:$0xff] %v554
                %v556 = vld [vmem:[%s148 + $0xc058] sm:$0xff]
                %557 = vst [vmem:[%s149 + $0x658] sm:$0xff] %v556
                %v558 = vld [vmem:[%s148 + $0xc060] sm:$0xff]
                %559 = vst [vmem:[%s149 + $0x660] sm:$0xff] %v558
                %v560 = vld [vmem:[%s148 + $0xc068] sm:$0xff]
                %561 = vst [vmem:[%s149 + $0x668] sm:$0xff] %v560
                %v562 = vld [vmem:[%s148 + $0xc070] sm:$0xff]
                %563 = vst [vmem:[%s149 + $0x670] sm:$0xff] %v562
                %v564 = vld [vmem:[%s148 + $0xc078] sm:$0xff]
                %565 = vst [vmem:[%s149 + $0x678] sm:$0xff] %v564
                %v566 = vld [vmem:[%s148 + $0xc080] sm:$0xff]
                %567 = vst [vmem:[%s149 + $0x680] sm:$0xff] %v566
                %v568 = vld [vmem:[%s148 + $0xc088] sm:$0xff]
                %569 = vst [vmem:[%s149 + $0x688] sm:$0xff] %v568
                %v570 = vld [vmem:[%s148 + $0xc090] sm:$0xff]
                %571 = vst [vmem:[%s149 + $0x690] sm:$0xff] %v570
                %v572 = vld [vmem:[%s148 + $0xc098] sm:$0xff]
                %573 = vst [vmem:[%s149 + $0x698] sm:$0xff] %v572
                %v574 = vld [vmem:[%s148 + $0xc0a0] sm:$0xff]
                %575 = vst [vmem:[%s149 + $0x6a0] sm:$0xff] %v574
                %v576 = vld [vmem:[%s148 + $0xc0a8] sm:$0xff]
                %577 = vst [vmem:[%s149 + $0x6a8] sm:$0xff] %v576
                %v578 = vld [vmem:[%s148 + $0xc0b0] sm:$0xff]
                %579 = vst [vmem:[%s149 + $0x6b0] sm:$0xff] %v578
                %v580 = vld [vmem:[%s148 + $0xc0b8] sm:$0xff]
                %581 = vst [vmem:[%s149 + $0x6b8] sm:$0xff] %v580
                %v582 = vld [vmem:[%s148 + $0xc0c0] sm:$0xff]
                %583 = vst [vmem:[%s149 + $0x6c0] sm:$0xff] %v582
                %v584 = vld [vmem:[%s148 + $0xc0c8] sm:$0xff]
                %585 = vst [vmem:[%s149 + $0x6c8] sm:$0xff] %v584
                %v586 = vld [vmem:[%s148 + $0xc0d0] sm:$0xff]
                %587 = vst [vmem:[%s149 + $0x6d0] sm:$0xff] %v586
                %v588 = vld [vmem:[%s148 + $0xc0d8] sm:$0xff]
                %589 = vst [vmem:[%s149 + $0x6d8] sm:$0xff] %v588
                %v590 = vld [vmem:[%s148 + $0xc0e0] sm:$0xff]
                %591 = vst [vmem:[%s149 + $0x6e0] sm:$0xff] %v590
                %v592 = vld [vmem:[%s148 + $0xc0e8] sm:$0xff]
                %593 = vst [vmem:[%s149 + $0x6e8] sm:$0xff] %v592
                %v594 = vld [vmem:[%s148 + $0xc0f0] sm:$0xff]
                %595 = vst [vmem:[%s149 + $0x6f0] sm:$0xff] %v594
                %v596 = vld [vmem:[%s148 + $0xc0f8] sm:$0xff]
                %597 = vst [vmem:[%s149 + $0x6f8] sm:$0xff] %v596
              $region41: #{_conv3d_single.1} parent=35 // loop_footer
                %s147 = sadd.s32 1, %s143
              $region42: #{_conv3d_single.1} parent=35 // loop_footer_branch
                %142 = sbr.rel target = $region38
              $region43: #{_conv3d_single.1} parent=35 // loop_exit
                _
            $region36: #{_conv3d_single.1} parent=31 // pred_fallthru
              _
            // Predicated region
            $region44: #{_conv3d_single.1} parent=31 // pred_check
              _
            $region45: #{_conv3d_single.1} parent=31 // pred_check_branch
              %599 = sbr.rel target = $region47
            $region46: #{_conv3d_single.1} parent=31 // pred_region
              _
            $region47: #{_conv3d_single.1} parent=31 // pred_fallthru
              _
          $region32: #{_conv3d_single.1} parent=27 // pred_fallthru
            _
          %600 = vnop
        $region28: #{_conv3d_single.1} parent=23 // pred_fallthru
          _
      $region24: #{_conv3d_single.1} parent=5 // pred_fallthru
        _
      %p601 = scmp.le.s32.totalorder 1, %s9
      %p602 = scmp.lt.s32.totalorder %s9, 33
      %p603 = pnand %p601, %p602
      %p604 = pneg %p603
      // Predicated region
      $region48: #{_conv3d_single.1} parent=5 // pred_check
        _
      $region49: #{_conv3d_single.1} parent=5 // pred_check_branch
        %606 = sbr.rel (%p603) target = $region51
      $region50: #{_conv3d_single.1} parent=5 // pred_region
        %s607 = ssub.s32 %s9, 1
        %s608 = sand.u32 %s43, 1
        %s609 = sand.u32 %s43, 1
        %s610 = smul.addr %s609, 1792
        %s611 = scalar_lea.vmem [#allocation2], %s610
        // Predicated region
        $region52: #{_conv3d_single.1} parent=50 // pred_check
          %p612 = pneg %p56
        $region53: #{_conv3d_single.1} parent=50 // pred_check_branch
          %614 = sbr.rel (%p612) target = $region55
        $region54: #{_conv3d_single.1} parent=50 // pred_region
          _
        $region55: #{_conv3d_single.1} parent=50 // pred_fallthru
          _
        %p615 = pneg %p30
        %p616 = pneg %p27
        %s617 = sand.u32 %s43, 1
        %s618 = sand.u32 %s43, 1
        %s619 = smul.addr %s618, 1792
        %s620 = scalar_lea.vmem [#allocation2], %s619
        %p621 = pneg %p56
        %p622 = pneg %p53
        %p623 = pneg %p77
        %p624 = pneg %p74
        %p625 = pneg %p103
        %p626 = pneg %p100
        %s627 = sand.u32 %s90, 1
        %s628 = sand.u32 %s90, 1
        %s629 = smul.addr %s628, 1024
        %s630 = scalar_lea.vmem [#allocation3], %s629
        %s631 = smul.u32 64, %s14
        %s632 = smul.u32 64, %s14
        %v634 = vld [vmem:[%s0] sm:$0xf]
        %v635 = vld [vmem:[%s0 + $0x4] sm:$0xf]
        %v636 = vld [vmem:[%s611] sm:$0xff]
        %v637 = vld [vmem:[%s611 + $0x8] sm:$0xff]
        %v638 = vld [vmem:[%s611 + $0x10] sm:$0xff]
        %v639 = vld [vmem:[%s611 + $0x18] sm:$0xff]
        %v640 = vld [vmem:[%s611 + $0x20] sm:$0xff]
        %v641 = vld [vmem:[%s611 + $0x28] sm:$0xff]
        %v642 = vld [vmem:[%s611 + $0x30] sm:$0xff]
        %v643 = vld [vmem:[%s611 + $0x38] sm:$0xff]
        %v644 = vld [vmem:[%s611 + $0x40] sm:$0xff]
        %v645 = vld [vmem:[%s611 + $0x48] sm:$0xff]
        %v646 = vld [vmem:[%s611 + $0x50] sm:$0xff]
        %v647 = vld [vmem:[%s611 + $0x58] sm:$0xff]
        %v648 = vld [vmem:[%s611 + $0x60] sm:$0xff]
        %v649 = vld [vmem:[%s611 + $0x68] sm:$0xff]
        %v650 = vld [vmem:[%s611 + $0x70] sm:$0xff]
        %v651 = vld [vmem:[%s611 + $0x78] sm:$0xff]
        %v652 = vld [vmem:[%s611 + $0x80] sm:$0xff]
        %v653 = vld [vmem:[%s611 + $0x88] sm:$0xff]
        %v654 = vld [vmem:[%s611 + $0x90] sm:$0xff]
        %v655 = vld [vmem:[%s611 + $0x98] sm:$0xff]
        %v656 = vld [vmem:[%s611 + $0xa0] sm:$0xff]
        %v657 = vld [vmem:[%s611 + $0xa8] sm:$0xff]
        %v658 = vld [vmem:[%s611 + $0xb0] sm:$0xff]
        %v659 = vld [vmem:[%s611 + $0xb8] sm:$0xff]
        %v660 = vld [vmem:[%s611 + $0xc0] sm:$0xff]
        %v661 = vld [vmem:[%s611 + $0xc8] sm:$0xff]
        %v662 = vld [vmem:[%s611 + $0xd0] sm:$0xff]
        %v663 = vld [vmem:[%s611 + $0xd8] sm:$0xff]
        %v664 = vld [vmem:[%s611 + $0xe0] sm:$0xff]
        %v665 = vld [vmem:[%s611 + $0xe8] sm:$0xff]
        %v666 = vld [vmem:[%s611 + $0xf0] sm:$0xff]
        %v667 = vld [vmem:[%s611 + $0xf8] sm:$0xff]
        %v668 = vld [vmem:[%s611 + $0x100] sm:$0xff]
        %v669 = vld [vmem:[%s611 + $0x108] sm:$0xff]
        %v670 = vld [vmem:[%s611 + $0x110] sm:$0xff]
        %v671 = vld [vmem:[%s611 + $0x118] sm:$0xff]
        %v672 = vld [vmem:[%s611 + $0x120] sm:$0xff]
        %v673 = vld [vmem:[%s611 + $0x128] sm:$0xff]
        %v674 = vld [vmem:[%s611 + $0x130] sm:$0xff]
        %v675 = vld [vmem:[%s611 + $0x138] sm:$0xff]
        %v676 = vld [vmem:[%s611 + $0x140] sm:$0xff]
        %v677 = vld [vmem:[%s611 + $0x148] sm:$0xff]
        %v678 = vld [vmem:[%s611 + $0x150] sm:$0xff]
        %v679 = vld [vmem:[%s611 + $0x158] sm:$0xff]
        %v680 = vld [vmem:[%s611 + $0x160] sm:$0xff]
        %v681 = vld [vmem:[%s611 + $0x168] sm:$0xff]
        %v682 = vld [vmem:[%s611 + $0x170] sm:$0xff]
        %v683 = vld [vmem:[%s611 + $0x178] sm:$0xff]
        %v684 = vld [vmem:[%s611 + $0x180] sm:$0xff]
        %v685 = vld [vmem:[%s611 + $0x188] sm:$0xff]
        %v686 = vld [vmem:[%s611 + $0x190] sm:$0xff]
        %v687 = vld [vmem:[%s611 + $0x198] sm:$0xff]
        %v688 = vld [vmem:[%s611 + $0x1a0] sm:$0xff]
        %v689 = vld [vmem:[%s611 + $0x1a8] sm:$0xff]
        %v690 = vld [vmem:[%s611 + $0x1b0] sm:$0xff]
        %v691 = vld [vmem:[%s611 + $0x1b8] sm:$0xff]
        %v692 = vld [vmem:[%s611 + $0x1c0] sm:$0xff]
        %v693 = vld [vmem:[%s611 + $0x1c8] sm:$0xff]
        %v694 = vld [vmem:[%s611 + $0x1d0] sm:$0xff]
        %v695 = vld [vmem:[%s611 + $0x1d8] sm:$0xff]
        %v696 = vld [vmem:[%s611 + $0x1e0] sm:$0xff]
        %v697 = vld [vmem:[%s611 + $0x1e8] sm:$0xff]
        %v698 = vld [vmem:[%s611 + $0x1f0] sm:$0xff]
        %v699 = vld [vmem:[%s611 + $0x1f8] sm:$0xff]
        %v700 = vld [vmem:[%s611 + $0x200] sm:$0xff]
        %v701 = vld [vmem:[%s611 + $0x208] sm:$0xff]
        %v702 = vld [vmem:[%s611 + $0x210] sm:$0xff]
        %v703 = vld [vmem:[%s611 + $0x218] sm:$0xff]
        %v704 = vld [vmem:[%s611 + $0x220] sm:$0xff]
        %v705 = vld [vmem:[%s611 + $0x228] sm:$0xff]
        %v706 = vld [vmem:[%s611 + $0x230] sm:$0xff]
        %v707 = vld [vmem:[%s611 + $0x238] sm:$0xff]
        %v708 = vld [vmem:[%s611 + $0x240] sm:$0xff]
        %v709 = vld [vmem:[%s611 + $0x248] sm:$0xff]
        %v710 = vld [vmem:[%s611 + $0x250] sm:$0xff]
        %v711 = vld [vmem:[%s611 + $0x258] sm:$0xff]
        %v712 = vld [vmem:[%s611 + $0x260] sm:$0xff]
        %v713 = vld [vmem:[%s611 + $0x268] sm:$0xff]
        %v714 = vld [vmem:[%s611 + $0x270] sm:$0xff]
        %v715 = vld [vmem:[%s611 + $0x278] sm:$0xff]
        %v716 = vld [vmem:[%s611 + $0x280] sm:$0xff]
        %v717 = vld [vmem:[%s611 + $0x288] sm:$0xff]
        %v718 = vld [vmem:[%s611 + $0x290] sm:$0xff]
        %v719 = vld [vmem:[%s611 + $0x298] sm:$0xff]
        %v720 = vld [vmem:[%s611 + $0x2a0] sm:$0xff]
        %v721 = vld [vmem:[%s611 + $0x2a8] sm:$0xff]
        %v722 = vld [vmem:[%s611 + $0x2b0] sm:$0xff]
        %v723 = vld [vmem:[%s611 + $0x2b8] sm:$0xff]
        %v724 = vld [vmem:[%s611 + $0x2c0] sm:$0xff]
        %v725 = vld [vmem:[%s611 + $0x2c8] sm:$0xff]
        %v726 = vld [vmem:[%s611 + $0x2d0] sm:$0xff]
        %v727 = vld [vmem:[%s611 + $0x2d8] sm:$0xff]
        %v728 = vld [vmem:[%s611 + $0x2e0] sm:$0xff]
        %v729 = vld [vmem:[%s611 + $0x2e8] sm:$0xff]
        %v730 = vld [vmem:[%s611 + $0x2f0] sm:$0xff]
        %v731 = vld [vmem:[%s611 + $0x2f8] sm:$0xff]
        %v732 = vld [vmem:[%s611 + $0x300] sm:$0xff]
        %v733 = vld [vmem:[%s611 + $0x308] sm:$0xff]
        %v734 = vld [vmem:[%s611 + $0x310] sm:$0xff]
        %v735 = vld [vmem:[%s611 + $0x318] sm:$0xff]
        %v736 = vld [vmem:[%s611 + $0x320] sm:$0xff]
        %v737 = vld [vmem:[%s611 + $0x328] sm:$0xff]
        %v738 = vld [vmem:[%s611 + $0x330] sm:$0xff]
        %v739 = vld [vmem:[%s611 + $0x338] sm:$0xff]
        %v740 = vld [vmem:[%s611 + $0x340] sm:$0xff]
        %v741 = vld [vmem:[%s611 + $0x348] sm:$0xff]
        %v742 = vld [vmem:[%s611 + $0x350] sm:$0xff]
        %v743 = vld [vmem:[%s611 + $0x358] sm:$0xff]
        %v744 = vld [vmem:[%s611 + $0x360] sm:$0xff]
        %v745 = vld [vmem:[%s611 + $0x368] sm:$0xff]
        %v746 = vld [vmem:[%s611 + $0x370] sm:$0xff]
        %v747 = vld [vmem:[%s611 + $0x378] sm:$0xff]
        %v748 = vld [vmem:[%s611 + $0x380] sm:$0xff]
        %v749 = vld [vmem:[%s611 + $0x388] sm:$0xff]
        %v750 = vld [vmem:[%s611 + $0x390] sm:$0xff]
        %v751 = vld [vmem:[%s611 + $0x398] sm:$0xff]
        %v752 = vld [vmem:[%s611 + $0x3a0] sm:$0xff]
        %v753 = vld [vmem:[%s611 + $0x3a8] sm:$0xff]
        %v754 = vld [vmem:[%s611 + $0x3b0] sm:$0xff]
        %v755 = vld [vmem:[%s611 + $0x3b8] sm:$0xff]
        %v756 = vld [vmem:[%s611 + $0x3c0] sm:$0xff]
        %v757 = vld [vmem:[%s611 + $0x3c8] sm:$0xff]
        %v758 = vld [vmem:[%s611 + $0x3d0] sm:$0xff]
        %v759 = vld [vmem:[%s611 + $0x3d8] sm:$0xff]
        %v760 = vld [vmem:[%s611 + $0x3e0] sm:$0xff]
        %v761 = vld [vmem:[%s611 + $0x3e8] sm:$0xff]
        %v762 = vld [vmem:[%s611 + $0x3f0] sm:$0xff]
        %v763 = vld [vmem:[%s611 + $0x3f8] sm:$0xff]
        %v764 = vld [vmem:[%s611 + $0x400] sm:$0xff]
        %v765 = vld [vmem:[%s611 + $0x408] sm:$0xff]
        %v766 = vld [vmem:[%s611 + $0x410] sm:$0xff]
        %v767 = vld [vmem:[%s611 + $0x418] sm:$0xff]
        %v768 = vld [vmem:[%s611 + $0x420] sm:$0xff]
        %v769 = vld [vmem:[%s611 + $0x428] sm:$0xff]
        %v770 = vld [vmem:[%s611 + $0x430] sm:$0xff]
        %v771 = vld [vmem:[%s611 + $0x438] sm:$0xff]
        %v772 = vld [vmem:[%s611 + $0x440] sm:$0xff]
        %v773 = vld [vmem:[%s611 + $0x448] sm:$0xff]
        %v774 = vld [vmem:[%s611 + $0x450] sm:$0xff]
        %v775 = vld [vmem:[%s611 + $0x458] sm:$0xff]
        %v776 = vld [vmem:[%s611 + $0x460] sm:$0xff]
        %v777 = vld [vmem:[%s611 + $0x468] sm:$0xff]
        %v778 = vld [vmem:[%s611 + $0x470] sm:$0xff]
        %v779 = vld [vmem:[%s611 + $0x478] sm:$0xff]
        %v780 = vld [vmem:[%s611 + $0x480] sm:$0xff]
        %v781 = vld [vmem:[%s611 + $0x488] sm:$0xff]
        %v782 = vld [vmem:[%s611 + $0x490] sm:$0xff]
        %v783 = vld [vmem:[%s611 + $0x498] sm:$0xff]
        %v784 = vld [vmem:[%s611 + $0x4a0] sm:$0xff]
        %v785 = vld [vmem:[%s611 + $0x4a8] sm:$0xff]
        %v786 = vld [vmem:[%s611 + $0x4b0] sm:$0xff]
        %v787 = vld [vmem:[%s611 + $0x4b8] sm:$0xff]
        %v788 = vld [vmem:[%s611 + $0x4c0] sm:$0xff]
        %v789 = vld [vmem:[%s611 + $0x4c8] sm:$0xff]
        %v790 = vld [vmem:[%s611 + $0x4d0] sm:$0xff]
        %v791 = vld [vmem:[%s611 + $0x4d8] sm:$0xff]
        %v792 = vld [vmem:[%s611 + $0x4e0] sm:$0xff]
        %v793 = vld [vmem:[%s611 + $0x4e8] sm:$0xff]
        %v794 = vld [vmem:[%s611 + $0x4f0] sm:$0xff]
        %v795 = vld [vmem:[%s611 + $0x4f8] sm:$0xff]
        %v796 = vld [vmem:[%s611 + $0x500] sm:$0xff]
        %v797 = vld [vmem:[%s611 + $0x508] sm:$0xff]
        %v798 = vld [vmem:[%s611 + $0x510] sm:$0xff]
        %v799 = vld [vmem:[%s611 + $0x518] sm:$0xff]
        %v800 = vld [vmem:[%s611 + $0x520] sm:$0xff]
        %v801 = vld [vmem:[%s611 + $0x528] sm:$0xff]
        %v802 = vld [vmem:[%s611 + $0x530] sm:$0xff]
        %v803 = vld [vmem:[%s611 + $0x538] sm:$0xff]
        %v804 = vld [vmem:[%s611 + $0x540] sm:$0xff]
        %v805 = vld [vmem:[%s611 + $0x548] sm:$0xff]
        %v806 = vld [vmem:[%s611 + $0x550] sm:$0xff]
        %v807 = vld [vmem:[%s611 + $0x558] sm:$0xff]
        %v808 = vld [vmem:[%s611 + $0x560] sm:$0xff]
        %v809 = vld [vmem:[%s611 + $0x568] sm:$0xff]
        %v810 = vld [vmem:[%s611 + $0x570] sm:$0xff]
        %v811 = vld [vmem:[%s611 + $0x578] sm:$0xff]
        %v812 = vld [vmem:[%s611 + $0x580] sm:$0xff]
        %v813 = vld [vmem:[%s611 + $0x588] sm:$0xff]
        %v814 = vld [vmem:[%s611 + $0x590] sm:$0xff]
        %v815 = vld [vmem:[%s611 + $0x598] sm:$0xff]
        %v816 = vld [vmem:[%s611 + $0x5a0] sm:$0xff]
        %v817 = vld [vmem:[%s611 + $0x5a8] sm:$0xff]
        %v818 = vld [vmem:[%s611 + $0x5b0] sm:$0xff]
        %v819 = vld [vmem:[%s611 + $0x5b8] sm:$0xff]
        %v820 = vld [vmem:[%s611 + $0x5c0] sm:$0xff]
        %v821 = vld [vmem:[%s611 + $0x5c8] sm:$0xff]
        %v822 = vld [vmem:[%s611 + $0x5d0] sm:$0xff]
        %v823 = vld [vmem:[%s611 + $0x5d8] sm:$0xff]
        %v824 = vld [vmem:[%s611 + $0x5e0] sm:$0xff]
        %v825 = vld [vmem:[%s611 + $0x5e8] sm:$0xff]
        %v826 = vld [vmem:[%s611 + $0x5f0] sm:$0xff]
        %v827 = vld [vmem:[%s611 + $0x5f8] sm:$0xff]
        %v828 = vld [vmem:[%s611 + $0x600] sm:$0x77]
        %v829 = vld [vmem:[%s611 + $0x608] sm:$0x77]
        %v830 = vld [vmem:[%s611 + $0x610] sm:$0x77]
        %v831 = vld [vmem:[%s611 + $0x618] sm:$0x77]
        %v832 = vld [vmem:[%s611 + $0x620] sm:$0x77]
        %v833 = vld [vmem:[%s611 + $0x628] sm:$0x77]
        %v834 = vld [vmem:[%s611 + $0x630] sm:$0x77]
        %v835 = vld [vmem:[%s611 + $0x638] sm:$0x77]
        %v836 = vld [vmem:[%s611 + $0x640] sm:$0x77]
        %v837 = vld [vmem:[%s611 + $0x648] sm:$0x77]
        %v838 = vld [vmem:[%s611 + $0x650] sm:$0x77]
        %v839 = vld [vmem:[%s611 + $0x658] sm:$0x77]
        %v840 = vld [vmem:[%s611 + $0x660] sm:$0x77]
        %v841 = vld [vmem:[%s611 + $0x668] sm:$0x77]
        %v842 = vld [vmem:[%s611 + $0x670] sm:$0x77]
        %v843 = vld [vmem:[%s611 + $0x678] sm:$0x77]
        %v844 = vld [vmem:[%s611 + $0x680] sm:$0x77]
        %v845 = vld [vmem:[%s611 + $0x688] sm:$0x77]
        %v846 = vld [vmem:[%s611 + $0x690] sm:$0x77]
        %v847 = vld [vmem:[%s611 + $0x698] sm:$0x77]
        %v848 = vld [vmem:[%s611 + $0x6a0] sm:$0x77]
        %v849 = vld [vmem:[%s611 + $0x6a8] sm:$0x77]
        %v850 = vld [vmem:[%s611 + $0x6b0] sm:$0x77]
        %v851 = vld [vmem:[%s611 + $0x6b8] sm:$0x77]
        %v852 = vld [vmem:[%s611 + $0x6c0] sm:$0x77]
        %v853 = vld [vmem:[%s611 + $0x6c8] sm:$0x77]
        %v854 = vld [vmem:[%s611 + $0x6d0] sm:$0x77]
        %v855 = vld [vmem:[%s611 + $0x6d8] sm:$0x77]
        %v856 = vld [vmem:[%s611 + $0x6e0] sm:$0x77]
        %v857 = vld [vmem:[%s611 + $0x6e8] sm:$0x77]
        %v858 = vld [vmem:[%s611 + $0x6f0] sm:$0x77]
        %v859 = vld [vmem:[%s611 + $0x6f8] sm:$0x77]
        %v860 = vld [vmem:[%s2] sm:$0xff]
        %v861 = vld [vmem:[%s2 + $0x8] sm:$0xff]
        %863 = vset.pattern.permute.xlu0 0
        %864 = vperm.xlu0 %863, %v860
        %v865 = vpop.permute.xlu0 %864
        %868 = vset.pattern.permute.xlu0 0
        %869 = vperm.xlu0 %868, %v861
        %v870 = vpop.permute.xlu0 %869
        %v874 = vunpack.c.l.b16 %v634
        %v875 = vunpack.c.l.b16 %v635
        %v876 = vpack.c.b16 %v875, %v874
        %v1101 = vunpack.c.l.b16 %v636
        %v1102 = vunpack.c.h.b16 %v636
        %v1103 = vunpack.c.l.b16 %v637
        %v1104 = vunpack.c.h.b16 %v637
        %v1105 = vunpack.c.l.b16 %v638
        %v1106 = vunpack.c.h.b16 %v638
        %v1107 = vunpack.c.l.b16 %v639
        %v1108 = vunpack.c.h.b16 %v639
        %v1109 = vunpack.c.l.b16 %v640
        %v1110 = vunpack.c.h.b16 %v640
        %v1111 = vunpack.c.l.b16 %v641
        %v1112 = vunpack.c.h.b16 %v641
        %v1113 = vunpack.c.l.b16 %v642
        %v1114 = vunpack.c.h.b16 %v642
        %v1115 = vunpack.c.l.b16 %v643
        %v1116 = vunpack.c.h.b16 %v643
        %v1117 = vunpack.c.l.b16 %v644
        %v1118 = vunpack.c.h.b16 %v644
        %v1119 = vunpack.c.l.b16 %v645
        %v1120 = vunpack.c.h.b16 %v645
        %v1121 = vunpack.c.l.b16 %v646
        %v1122 = vunpack.c.h.b16 %v646
        %v1123 = vunpack.c.l.b16 %v647
        %v1124 = vunpack.c.h.b16 %v647
        %v1125 = vunpack.c.l.b16 %v648
        %v1126 = vunpack.c.h.b16 %v648
        %v1127 = vunpack.c.l.b16 %v649
        %v1128 = vunpack.c.h.b16 %v649
        %v1129 = vunpack.c.l.b16 %v650
        %v1130 = vunpack.c.h.b16 %v650
        %v1131 = vunpack.c.l.b16 %v651
        %v1132 = vunpack.c.h.b16 %v651
        %v1133 = vunpack.c.l.b16 %v652
        %v1134 = vunpack.c.h.b16 %v652
        %v1135 = vunpack.c.l.b16 %v653
        %v1136 = vunpack.c.h.b16 %v653
        %v1137 = vunpack.c.l.b16 %v654
        %v1138 = vunpack.c.h.b16 %v654
        %v1139 = vunpack.c.l.b16 %v655
        %v1140 = vunpack.c.h.b16 %v655
        %v1141 = vunpack.c.l.b16 %v656
        %v1142 = vunpack.c.h.b16 %v656
        %v1143 = vunpack.c.l.b16 %v657
        %v1144 = vunpack.c.h.b16 %v657
        %v1145 = vunpack.c.l.b16 %v658
        %v1146 = vunpack.c.h.b16 %v658
        %v1147 = vunpack.c.l.b16 %v659
        %v1148 = vunpack.c.h.b16 %v659
        %v1149 = vunpack.c.l.b16 %v660
        %v1150 = vunpack.c.h.b16 %v660
        %v1151 = vunpack.c.l.b16 %v661
        %v1152 = vunpack.c.h.b16 %v661
        %v1153 = vunpack.c.l.b16 %v662
        %v1154 = vunpack.c.h.b16 %v662
        %v1155 = vunpack.c.l.b16 %v663
        %v1156 = vunpack.c.h.b16 %v663
        %v1157 = vunpack.c.l.b16 %v664
        %v1158 = vunpack.c.h.b16 %v664
        %v1159 = vunpack.c.l.b16 %v665
        %v1160 = vunpack.c.h.b16 %v665
        %v1161 = vunpack.c.l.b16 %v666
        %v1162 = vunpack.c.h.b16 %v666
        %v1163 = vunpack.c.l.b16 %v667
        %v1164 = vunpack.c.h.b16 %v667
        %v1165 = vunpack.c.l.b16 %v668
        %v1166 = vunpack.c.h.b16 %v668
        %v1167 = vunpack.c.l.b16 %v669
        %v1168 = vunpack.c.h.b16 %v669
        %v1169 = vunpack.c.l.b16 %v670
        %v1170 = vunpack.c.h.b16 %v670
        %v1171 = vunpack.c.l.b16 %v671
        %v1172 = vunpack.c.h.b16 %v671
        %v1173 = vunpack.c.l.b16 %v672
        %v1174 = vunpack.c.h.b16 %v672
        %v1175 = vunpack.c.l.b16 %v673
        %v1176 = vunpack.c.h.b16 %v673
        %v1177 = vunpack.c.l.b16 %v674
        %v1178 = vunpack.c.h.b16 %v674
        %v1179 = vunpack.c.l.b16 %v675
        %v1180 = vunpack.c.h.b16 %v675
        %v1181 = vunpack.c.l.b16 %v676
        %v1182 = vunpack.c.h.b16 %v676
        %v1183 = vunpack.c.l.b16 %v677
        %v1184 = vunpack.c.h.b16 %v677
        %v1185 = vunpack.c.l.b16 %v678
        %v1186 = vunpack.c.h.b16 %v678
        %v1187 = vunpack.c.l.b16 %v679
        %v1188 = vunpack.c.h.b16 %v679
        %v1189 = vunpack.c.l.b16 %v680
        %v1190 = vunpack.c.h.b16 %v680
        %v1191 = vunpack.c.l.b16 %v681
        %v1192 = vunpack.c.h.b16 %v681
        %v1193 = vunpack.c.l.b16 %v682
        %v1194 = vunpack.c.h.b16 %v682
        %v1195 = vunpack.c.l.b16 %v683
        %v1196 = vunpack.c.h.b16 %v683
        %v1197 = vunpack.c.l.b16 %v684
        %v1198 = vunpack.c.h.b16 %v684
        %v1199 = vunpack.c.l.b16 %v685
        %v1200 = vunpack.c.h.b16 %v685
        %v1201 = vunpack.c.l.b16 %v686
        %v1202 = vunpack.c.h.b16 %v686
        %v1203 = vunpack.c.l.b16 %v687
        %v1204 = vunpack.c.h.b16 %v687
        %v1205 = vunpack.c.l.b16 %v688
        %v1206 = vunpack.c.h.b16 %v688
        %v1207 = vunpack.c.l.b16 %v689
        %v1208 = vunpack.c.h.b16 %v689
        %v1209 = vunpack.c.l.b16 %v690
        %v1210 = vunpack.c.h.b16 %v690
        %v1211 = vunpack.c.l.b16 %v691
        %v1212 = vunpack.c.h.b16 %v691
        %v1213 = vunpack.c.l.b16 %v692
        %v1214 = vunpack.c.h.b16 %v692
        %v1215 = vunpack.c.l.b16 %v693
        %v1216 = vunpack.c.h.b16 %v693
        %v1217 = vunpack.c.l.b16 %v694
        %v1218 = vunpack.c.h.b16 %v694
        %v1219 = vunpack.c.l.b16 %v695
        %v1220 = vunpack.c.h.b16 %v695
        %v1221 = vunpack.c.l.b16 %v696
        %v1222 = vunpack.c.h.b16 %v696
        %v1223 = vunpack.c.l.b16 %v697
        %v1224 = vunpack.c.h.b16 %v697
        %v1225 = vunpack.c.l.b16 %v698
        %v1226 = vunpack.c.h.b16 %v698
        %v1227 = vunpack.c.l.b16 %v699
        %v1228 = vunpack.c.h.b16 %v699
        %v1229 = vunpack.c.l.b16 %v700
        %v1230 = vunpack.c.h.b16 %v700
        %v1231 = vunpack.c.l.b16 %v701
        %v1232 = vunpack.c.h.b16 %v701
        %v1233 = vunpack.c.l.b16 %v702
        %v1234 = vunpack.c.h.b16 %v702
        %v1235 = vunpack.c.l.b16 %v703
        %v1236 = vunpack.c.h.b16 %v703
        %v1237 = vunpack.c.l.b16 %v704
        %v1238 = vunpack.c.h.b16 %v704
        %v1239 = vunpack.c.l.b16 %v705
        %v1240 = vunpack.c.h.b16 %v705
        %v1241 = vunpack.c.l.b16 %v706
        %v1242 = vunpack.c.h.b16 %v706
        %v1243 = vunpack.c.l.b16 %v707
        %v1244 = vunpack.c.h.b16 %v707
        %v1245 = vunpack.c.l.b16 %v708
        %v1246 = vunpack.c.h.b16 %v708
        %v1247 = vunpack.c.l.b16 %v709
        %v1248 = vunpack.c.h.b16 %v709
        %v1249 = vunpack.c.l.b16 %v710
        %v1250 = vunpack.c.h.b16 %v710
        %v1251 = vunpack.c.l.b16 %v711
        %v1252 = vunpack.c.h.b16 %v711
        %v1253 = vunpack.c.l.b16 %v712
        %v1254 = vunpack.c.h.b16 %v712
        %v1255 = vunpack.c.l.b16 %v713
        %v1256 = vunpack.c.h.b16 %v713
        %v1257 = vunpack.c.l.b16 %v714
        %v1258 = vunpack.c.h.b16 %v714
        %v1259 = vunpack.c.l.b16 %v715
        %v1260 = vunpack.c.h.b16 %v715
        %v1261 = vunpack.c.l.b16 %v716
        %v1262 = vunpack.c.h.b16 %v716
        %v1263 = vunpack.c.l.b16 %v717
        %v1264 = vunpack.c.h.b16 %v717
        %v1265 = vunpack.c.l.b16 %v718
        %v1266 = vunpack.c.h.b16 %v718
        %v1267 = vunpack.c.l.b16 %v719
        %v1268 = vunpack.c.h.b16 %v719
        %v1269 = vunpack.c.l.b16 %v720
        %v1270 = vunpack.c.h.b16 %v720
        %v1271 = vunpack.c.l.b16 %v721
        %v1272 = vunpack.c.h.b16 %v721
        %v1273 = vunpack.c.l.b16 %v722
        %v1274 = vunpack.c.h.b16 %v722
        %v1275 = vunpack.c.l.b16 %v723
        %v1276 = vunpack.c.h.b16 %v723
        %v1277 = vunpack.c.l.b16 %v724
        %v1278 = vunpack.c.h.b16 %v724
        %v1279 = vunpack.c.l.b16 %v725
        %v1280 = vunpack.c.h.b16 %v725
        %v1281 = vunpack.c.l.b16 %v726
        %v1282 = vunpack.c.h.b16 %v726
        %v1283 = vunpack.c.l.b16 %v727
        %v1284 = vunpack.c.h.b16 %v727
        %v1285 = vunpack.c.l.b16 %v728
        %v1286 = vunpack.c.h.b16 %v728
        %v1287 = vunpack.c.l.b16 %v729
        %v1288 = vunpack.c.h.b16 %v729
        %v1289 = vunpack.c.l.b16 %v730
        %v1290 = vunpack.c.h.b16 %v730
        %v1291 = vunpack.c.l.b16 %v731
        %v1292 = vunpack.c.h.b16 %v731
        %v1293 = vunpack.c.l.b16 %v732
        %v1294 = vunpack.c.h.b16 %v732
        %v1295 = vunpack.c.l.b16 %v733
        %v1296 = vunpack.c.h.b16 %v733
        %v1297 = vunpack.c.l.b16 %v734
        %v1298 = vunpack.c.h.b16 %v734
        %v1299 = vunpack.c.l.b16 %v735
        %v1300 = vunpack.c.h.b16 %v735
        %v1301 = vunpack.c.l.b16 %v736
        %v1302 = vunpack.c.h.b16 %v736
        %v1303 = vunpack.c.l.b16 %v737
        %v1304 = vunpack.c.h.b16 %v737
        %v1305 = vunpack.c.l.b16 %v738
        %v1306 = vunpack.c.h.b16 %v738
        %v1307 = vunpack.c.l.b16 %v739
        %v1308 = vunpack.c.h.b16 %v739
        %v1309 = vunpack.c.l.b16 %v740
        %v1310 = vunpack.c.h.b16 %v740
        %v1311 = vunpack.c.l.b16 %v741
        %v1312 = vunpack.c.h.b16 %v741
        %v1313 = vunpack.c.l.b16 %v742
        %v1314 = vunpack.c.h.b16 %v742
        %v1315 = vunpack.c.l.b16 %v743
        %v1316 = vunpack.c.h.b16 %v743
        %v1317 = vunpack.c.l.b16 %v744
        %v1318 = vunpack.c.h.b16 %v744
        %v1319 = vunpack.c.l.b16 %v745
        %v1320 = vunpack.c.h.b16 %v745
        %v1321 = vunpack.c.l.b16 %v746
        %v1322 = vunpack.c.h.b16 %v746
        %v1323 = vunpack.c.l.b16 %v747
        %v1324 = vunpack.c.h.b16 %v747
        %v1325 = vunpack.c.l.b16 %v748
        %v1326 = vunpack.c.h.b16 %v748
        %v1327 = vunpack.c.l.b16 %v749
        %v1328 = vunpack.c.h.b16 %v749
        %v1329 = vunpack.c.l.b16 %v750
        %v1330 = vunpack.c.h.b16 %v750
        %v1331 = vunpack.c.l.b16 %v751
        %v1332 = vunpack.c.h.b16 %v751
        %v1333 = vunpack.c.l.b16 %v752
        %v1334 = vunpack.c.h.b16 %v752
        %v1335 = vunpack.c.l.b16 %v753
        %v1336 = vunpack.c.h.b16 %v753
        %v1337 = vunpack.c.l.b16 %v754
        %v1338 = vunpack.c.h.b16 %v754
        %v1339 = vunpack.c.l.b16 %v755
        %v1340 = vunpack.c.h.b16 %v755
        %v1341 = vunpack.c.l.b16 %v756
        %v1342 = vunpack.c.h.b16 %v756
        %v1343 = vunpack.c.l.b16 %v757
        %v1344 = vunpack.c.h.b16 %v757
        %v1345 = vunpack.c.l.b16 %v758
        %v1346 = vunpack.c.h.b16 %v758
        %v1347 = vunpack.c.l.b16 %v759
        %v1348 = vunpack.c.h.b16 %v759
        %v1349 = vunpack.c.l.b16 %v760
        %v1350 = vunpack.c.h.b16 %v760
        %v1351 = vunpack.c.l.b16 %v761
        %v1352 = vunpack.c.h.b16 %v761
        %v1353 = vunpack.c.l.b16 %v762
        %v1354 = vunpack.c.h.b16 %v762
        %v1355 = vunpack.c.l.b16 %v763
        %v1356 = vunpack.c.h.b16 %v763
        %v1357 = vunpack.c.l.b16 %v764
        %v1358 = vunpack.c.h.b16 %v764
        %v1359 = vunpack.c.l.b16 %v765
        %v1360 = vunpack.c.h.b16 %v765
        %v1361 = vunpack.c.l.b16 %v766
        %v1362 = vunpack.c.h.b16 %v766
        %v1363 = vunpack.c.l.b16 %v767
        %v1364 = vunpack.c.h.b16 %v767
        %v1365 = vunpack.c.l.b16 %v768
        %v1366 = vunpack.c.h.b16 %v768
        %v1367 = vunpack.c.l.b16 %v769
        %v1368 = vunpack.c.h.b16 %v769
        %v1369 = vunpack.c.l.b16 %v770
        %v1370 = vunpack.c.h.b16 %v770
        %v1371 = vunpack.c.l.b16 %v771
        %v1372 = vunpack.c.h.b16 %v771
        %v1373 = vunpack.c.l.b16 %v772
        %v1374 = vunpack.c.h.b16 %v772
        %v1375 = vunpack.c.l.b16 %v773
        %v1376 = vunpack.c.h.b16 %v773
        %v1377 = vunpack.c.l.b16 %v774
        %v1378 = vunpack.c.h.b16 %v774
        %v1379 = vunpack.c.l.b16 %v775
        %v1380 = vunpack.c.h.b16 %v775
        %v1381 = vunpack.c.l.b16 %v776
        %v1382 = vunpack.c.h.b16 %v776
        %v1383 = vunpack.c.l.b16 %v777
        %v1384 = vunpack.c.h.b16 %v777
        %v1385 = vunpack.c.l.b16 %v778
        %v1386 = vunpack.c.h.b16 %v778
        %v1387 = vunpack.c.l.b16 %v779
        %v1388 = vunpack.c.h.b16 %v779
        %v1389 = vunpack.c.l.b16 %v780
        %v1390 = vunpack.c.h.b16 %v780
        %v1391 = vunpack.c.l.b16 %v781
        %v1392 = vunpack.c.h.b16 %v781
        %v1393 = vunpack.c.l.b16 %v782
        %v1394 = vunpack.c.h.b16 %v782
        %v1395 = vunpack.c.l.b16 %v783
        %v1396 = vunpack.c.h.b16 %v783
        %v1397 = vunpack.c.l.b16 %v784
        %v1398 = vunpack.c.h.b16 %v784
        %v1399 = vunpack.c.l.b16 %v785
        %v1400 = vunpack.c.h.b16 %v785
        %v1401 = vunpack.c.l.b16 %v786
        %v1402 = vunpack.c.h.b16 %v786
        %v1403 = vunpack.c.l.b16 %v787
        %v1404 = vunpack.c.h.b16 %v787
        %v1405 = vunpack.c.l.b16 %v788
        %v1406 = vunpack.c.h.b16 %v788
        %v1407 = vunpack.c.l.b16 %v789
        %v1408 = vunpack.c.h.b16 %v789
        %v1409 = vunpack.c.l.b16 %v790
        %v1410 = vunpack.c.h.b16 %v790
        %v1411 = vunpack.c.l.b16 %v791
        %v1412 = vunpack.c.h.b16 %v791
        %v1413 = vunpack.c.l.b16 %v792
        %v1414 = vunpack.c.h.b16 %v792
        %v1415 = vunpack.c.l.b16 %v793
        %v1416 = vunpack.c.h.b16 %v793
        %v1417 = vunpack.c.l.b16 %v794
        %v1418 = vunpack.c.h.b16 %v794
        %v1419 = vunpack.c.l.b16 %v795
        %v1420 = vunpack.c.h.b16 %v795
        %v1421 = vunpack.c.l.b16 %v796
        %v1422 = vunpack.c.h.b16 %v796
        %v1423 = vunpack.c.l.b16 %v797
        %v1424 = vunpack.c.h.b16 %v797
        %v1425 = vunpack.c.l.b16 %v798
        %v1426 = vunpack.c.h.b16 %v798
        %v1427 = vunpack.c.l.b16 %v799
        %v1428 = vunpack.c.h.b16 %v799
        %v1429 = vunpack.c.l.b16 %v800
        %v1430 = vunpack.c.h.b16 %v800
        %v1431 = vunpack.c.l.b16 %v801
        %v1432 = vunpack.c.h.b16 %v801
        %v1433 = vunpack.c.l.b16 %v802
        %v1434 = vunpack.c.h.b16 %v802
        %v1435 = vunpack.c.l.b16 %v803
        %v1436 = vunpack.c.h.b16 %v803
        %v1437 = vunpack.c.l.b16 %v804
        %v1438 = vunpack.c.h.b16 %v804
        %v1439 = vunpack.c.l.b16 %v805
        %v1440 = vunpack.c.h.b16 %v805
        %v1441 = vunpack.c.l.b16 %v806
        %v1442 = vunpack.c.h.b16 %v806
        %v1443 = vunpack.c.l.b16 %v807
        %v1444 = vunpack.c.h.b16 %v807
        %v1445 = vunpack.c.l.b16 %v808
        %v1446 = vunpack.c.h.b16 %v808
        %v1447 = vunpack.c.l.b16 %v809
        %v1448 = vunpack.c.h.b16 %v809
        %v1449 = vunpack.c.l.b16 %v810
        %v1450 = vunpack.c.h.b16 %v810
        %v1451 = vunpack.c.l.b16 %v811
        %v1452 = vunpack.c.h.b16 %v811
        %v1453 = vunpack.c.l.b16 %v812
        %v1454 = vunpack.c.h.b16 %v812
        %v1455 = vunpack.c.l.b16 %v813
        %v1456 = vunpack.c.h.b16 %v813
        %v1457 = vunpack.c.l.b16 %v814
        %v1458 = vunpack.c.h.b16 %v814
        %v1459 = vunpack.c.l.b16 %v815
        %v1460 = vunpack.c.h.b16 %v815
        %v1461 = vunpack.c.l.b16 %v816
        %v1462 = vunpack.c.h.b16 %v816
        %v1463 = vunpack.c.l.b16 %v817
        %v1464 = vunpack.c.h.b16 %v817
        %v1465 = vunpack.c.l.b16 %v818
        %v1466 = vunpack.c.h.b16 %v818
        %v1467 = vunpack.c.l.b16 %v819
        %v1468 = vunpack.c.h.b16 %v819
        %v1469 = vunpack.c.l.b16 %v820
        %v1470 = vunpack.c.h.b16 %v820
        %v1471 = vunpack.c.l.b16 %v821
        %v1472 = vunpack.c.h.b16 %v821
        %v1473 = vunpack.c.l.b16 %v822
        %v1474 = vunpack.c.h.b16 %v822
        %v1475 = vunpack.c.l.b16 %v823
        %v1476 = vunpack.c.h.b16 %v823
        %v1477 = vunpack.c.l.b16 %v824
        %v1478 = vunpack.c.h.b16 %v824
        %v1479 = vunpack.c.l.b16 %v825
        %v1480 = vunpack.c.h.b16 %v825
        %v1481 = vunpack.c.l.b16 %v826
        %v1482 = vunpack.c.h.b16 %v826
        %v1483 = vunpack.c.l.b16 %v827
        %v1484 = vunpack.c.h.b16 %v827
        %v1485 = vunpack.c.l.b16 %v828
        %v1486 = vunpack.c.h.b16 %v828
        %v1487 = vunpack.c.l.b16 %v829
        %v1488 = vunpack.c.h.b16 %v829
        %v1489 = vunpack.c.l.b16 %v830
        %v1490 = vunpack.c.h.b16 %v830
        %v1491 = vunpack.c.l.b16 %v831
        %v1492 = vunpack.c.h.b16 %v831
        %v1493 = vunpack.c.l.b16 %v832
        %v1494 = vunpack.c.h.b16 %v832
        %v1495 = vunpack.c.l.b16 %v833
        %v1496 = vunpack.c.h.b16 %v833
        %v1497 = vunpack.c.l.b16 %v834
        %v1498 = vunpack.c.h.b16 %v834
        %v1499 = vunpack.c.l.b16 %v835
        %v1500 = vunpack.c.h.b16 %v835
        %v1501 = vunpack.c.l.b16 %v836
        %v1502 = vunpack.c.h.b16 %v836
        %v1503 = vunpack.c.l.b16 %v837
        %v1504 = vunpack.c.h.b16 %v837
        %v1505 = vunpack.c.l.b16 %v838
        %v1506 = vunpack.c.h.b16 %v838
        %v1507 = vunpack.c.l.b16 %v839
        %v1508 = vunpack.c.h.b16 %v839
        %v1509 = vunpack.c.l.b16 %v840
        %v1510 = vunpack.c.h.b16 %v840
        %v1511 = vunpack.c.l.b16 %v841
        %v1512 = vunpack.c.h.b16 %v841
        %v1513 = vunpack.c.l.b16 %v842
        %v1514 = vunpack.c.h.b16 %v842
        %v1515 = vunpack.c.l.b16 %v843
        %v1516 = vunpack.c.h.b16 %v843
        %v1517 = vunpack.c.l.b16 %v844
        %v1518 = vunpack.c.h.b16 %v844
        %v1519 = vunpack.c.l.b16 %v845
        %v1520 = vunpack.c.h.b16 %v845
        %v1521 = vunpack.c.l.b16 %v846
        %v1522 = vunpack.c.h.b16 %v846
        %v1523 = vunpack.c.l.b16 %v847
        %v1524 = vunpack.c.h.b16 %v847
        %v1525 = vunpack.c.l.b16 %v848
        %v1526 = vunpack.c.h.b16 %v848
        %v1527 = vunpack.c.l.b16 %v849
        %v1528 = vunpack.c.h.b16 %v849
        %v1529 = vunpack.c.l.b16 %v850
        %v1530 = vunpack.c.h.b16 %v850
        %v1531 = vunpack.c.l.b16 %v851
        %v1532 = vunpack.c.h.b16 %v851
        %v1533 = vunpack.c.l.b16 %v852
        %v1534 = vunpack.c.h.b16 %v852
        %v1535 = vunpack.c.l.b16 %v853
        %v1536 = vunpack.c.h.b16 %v853
        %v1537 = vunpack.c.l.b16 %v854
        %v1538 = vunpack.c.h.b16 %v854
        %v1539 = vunpack.c.l.b16 %v855
        %v1540 = vunpack.c.h.b16 %v855
        %v1541 = vunpack.c.l.b16 %v856
        %v1542 = vunpack.c.h.b16 %v856
        %v1543 = vunpack.c.l.b16 %v857
        %v1544 = vunpack.c.h.b16 %v857
        %v1545 = vunpack.c.l.b16 %v858
        %v1546 = vunpack.c.h.b16 %v858
        %v1547 = vunpack.c.l.b16 %v859
        %v1548 = vunpack.c.h.b16 %v859
        %v1549 = vpack.c.b16 %v1165, %v1101
        %v1550 = vpack.c.b16 %v1166, %v1102
        %v1551 = vpack.c.b16 %v1167, %v1103
        %v1552 = vpack.c.b16 %v1168, %v1104
        %v1553 = vpack.c.b16 %v1169, %v1105
        %v1554 = vpack.c.b16 %v1170, %v1106
        %v1555 = vpack.c.b16 %v1171, %v1107
        %v1556 = vpack.c.b16 %v1172, %v1108
        %v1557 = vpack.c.b16 %v1173, %v1109
        %v1558 = vpack.c.b16 %v1174, %v1110
        %v1559 = vpack.c.b16 %v1175, %v1111
        %v1560 = vpack.c.b16 %v1176, %v1112
        %v1561 = vpack.c.b16 %v1177, %v1113
        %v1562 = vpack.c.b16 %v1178, %v1114
        %v1563 = vpack.c.b16 %v1179, %v1115
        %v1564 = vpack.c.b16 %v1180, %v1116
        %v1565 = vpack.c.b16 %v1181, %v1117
        %v1566 = vpack.c.b16 %v1182, %v1118
        %v1567 = vpack.c.b16 %v1183, %v1119
        %v1568 = vpack.c.b16 %v1184, %v1120
        %v1569 = vpack.c.b16 %v1185, %v1121
        %v1570 = vpack.c.b16 %v1186, %v1122
        %v1571 = vpack.c.b16 %v1187, %v1123
        %v1572 = vpack.c.b16 %v1188, %v1124
        %v1573 = vpack.c.b16 %v1189, %v1125
        %v1574 = vpack.c.b16 %v1190, %v1126
        %v1575 = vpack.c.b16 %v1191, %v1127
        %v1576 = vpack.c.b16 %v1192, %v1128
        %v1577 = vpack.c.b16 %v1193, %v1129
        %v1578 = vpack.c.b16 %v1194, %v1130
        %v1579 = vpack.c.b16 %v1195, %v1131
        %v1580 = vpack.c.b16 %v1196, %v1132
        %v1581 = vpack.c.b16 %v1197, %v1133
        %v1582 = vpack.c.b16 %v1198, %v1134
        %v1583 = vpack.c.b16 %v1199, %v1135
        %v1584 = vpack.c.b16 %v1200, %v1136
        %v1585 = vpack.c.b16 %v1201, %v1137
        %v1586 = vpack.c.b16 %v1202, %v1138
        %v1587 = vpack.c.b16 %v1203, %v1139
        %v1588 = vpack.c.b16 %v1204, %v1140
        %v1589 = vpack.c.b16 %v1205, %v1141
        %v1590 = vpack.c.b16 %v1206, %v1142
        %v1591 = vpack.c.b16 %v1207, %v1143
        %v1592 = vpack.c.b16 %v1208, %v1144
        %v1593 = vpack.c.b16 %v1209, %v1145
        %v1594 = vpack.c.b16 %v1210, %v1146
        %v1595 = vpack.c.b16 %v1211, %v1147
        %v1596 = vpack.c.b16 %v1212, %v1148
        %v1597 = vpack.c.b16 %v1213, %v1149
        %v1598 = vpack.c.b16 %v1214, %v1150
        %v1599 = vpack.c.b16 %v1215, %v1151
        %v1600 = vpack.c.b16 %v1216, %v1152
        %v1601 = vpack.c.b16 %v1217, %v1153
        %v1602 = vpack.c.b16 %v1218, %v1154
        %v1603 = vpack.c.b16 %v1219, %v1155
        %v1604 = vpack.c.b16 %v1220, %v1156
        %v1605 = vpack.c.b16 %v1221, %v1157
        %v1606 = vpack.c.b16 %v1222, %v1158
        %v1607 = vpack.c.b16 %v1223, %v1159
        %v1608 = vpack.c.b16 %v1224, %v1160
        %v1609 = vpack.c.b16 %v1225, %v1161
        %v1610 = vpack.c.b16 %v1226, %v1162
        %v1611 = vpack.c.b16 %v1227, %v1163
        %v1612 = vpack.c.b16 %v1228, %v1164
        %v1613 = vpack.c.b16 %v1293, %v1229
        %v1614 = vpack.c.b16 %v1294, %v1230
        %v1615 = vpack.c.b16 %v1295, %v1231
        %v1616 = vpack.c.b16 %v1296, %v1232
        %v1617 = vpack.c.b16 %v1297, %v1233
        %v1618 = vpack.c.b16 %v1298, %v1234
        %v1619 = vpack.c.b16 %v1299, %v1235
        %v1620 = vpack.c.b16 %v1300, %v1236
        %v1621 = vpack.c.b16 %v1301, %v1237
        %v1622 = vpack.c.b16 %v1302, %v1238
        %v1623 = vpack.c.b16 %v1303, %v1239
        %v1624 = vpack.c.b16 %v1304, %v1240
        %v1625 = vpack.c.b16 %v1305, %v1241
        %v1626 = vpack.c.b16 %v1306, %v1242
        %v1627 = vpack.c.b16 %v1307, %v1243
        %v1628 = vpack.c.b16 %v1308, %v1244
        %v1629 = vpack.c.b16 %v1309, %v1245
        %v1630 = vpack.c.b16 %v1310, %v1246
        %v1631 = vpack.c.b16 %v1311, %v1247
        %v1632 = vpack.c.b16 %v1312, %v1248
        %v1633 = vpack.c.b16 %v1313, %v1249
        %v1634 = vpack.c.b16 %v1314, %v1250
        %v1635 = vpack.c.b16 %v1315, %v1251
        %v1636 = vpack.c.b16 %v1316, %v1252
        %v1637 = vpack.c.b16 %v1317, %v1253
        %v1638 = vpack.c.b16 %v1318, %v1254
        %v1639 = vpack.c.b16 %v1319, %v1255
        %v1640 = vpack.c.b16 %v1320, %v1256
        %v1641 = vpack.c.b16 %v1321, %v1257
        %v1642 = vpack.c.b16 %v1322, %v1258
        %v1643 = vpack.c.b16 %v1323, %v1259
        %v1644 = vpack.c.b16 %v1324, %v1260
        %v1645 = vpack.c.b16 %v1325, %v1261
        %v1646 = vpack.c.b16 %v1326, %v1262
        %v1647 = vpack.c.b16 %v1327, %v1263
        %v1648 = vpack.c.b16 %v1328, %v1264
        %v1649 = vpack.c.b16 %v1329, %v1265
        %v1650 = vpack.c.b16 %v1330, %v1266
        %v1651 = vpack.c.b16 %v1331, %v1267
        %v1652 = vpack.c.b16 %v1332, %v1268
        %v1653 = vpack.c.b16 %v1333, %v1269
        %v1654 = vpack.c.b16 %v1334, %v1270
        %v1655 = vpack.c.b16 %v1335, %v1271
        %v1656 = vpack.c.b16 %v1336, %v1272
        %v1657 = vpack.c.b16 %v1337, %v1273
        %v1658 = vpack.c.b16 %v1338, %v1274
        %v1659 = vpack.c.b16 %v1339, %v1275
        %v1660 = vpack.c.b16 %v1340, %v1276
        %v1661 = vpack.c.b16 %v1341, %v1277
        %v1662 = vpack.c.b16 %v1342, %v1278
        %v1663 = vpack.c.b16 %v1343, %v1279
        %v1664 = vpack.c.b16 %v1344, %v1280
        %v1665 = vpack.c.b16 %v1345, %v1281
        %v1666 = vpack.c.b16 %v1346, %v1282
        %v1667 = vpack.c.b16 %v1347, %v1283
        %v1668 = vpack.c.b16 %v1348, %v1284
        %v1669 = vpack.c.b16 %v1349, %v1285
        %v1670 = vpack.c.b16 %v1350, %v1286
        %v1671 = vpack.c.b16 %v1351, %v1287
        %v1672 = vpack.c.b16 %v1352, %v1288
        %v1673 = vpack.c.b16 %v1353, %v1289
        %v1674 = vpack.c.b16 %v1354, %v1290
        %v1675 = vpack.c.b16 %v1355, %v1291
        %v1676 = vpack.c.b16 %v1356, %v1292
        %v1677 = vpack.c.b16 %v1421, %v1357
        %v1678 = vpack.c.b16 %v1422, %v1358
        %v1679 = vpack.c.b16 %v1423, %v1359
        %v1680 = vpack.c.b16 %v1424, %v1360
        %v1681 = vpack.c.b16 %v1425, %v1361
        %v1682 = vpack.c.b16 %v1426, %v1362
        %v1683 = vpack.c.b16 %v1427, %v1363
        %v1684 = vpack.c.b16 %v1428, %v1364
        %v1685 = vpack.c.b16 %v1429, %v1365
        %v1686 = vpack.c.b16 %v1430, %v1366
        %v1687 = vpack.c.b16 %v1431, %v1367
        %v1688 = vpack.c.b16 %v1432, %v1368
        %v1689 = vpack.c.b16 %v1433, %v1369
        %v1690 = vpack.c.b16 %v1434, %v1370
        %v1691 = vpack.c.b16 %v1435, %v1371
        %v1692 = vpack.c.b16 %v1436, %v1372
        %v1693 = vpack.c.b16 %v1437, %v1373
        %v1694 = vpack.c.b16 %v1438, %v1374
        %v1695 = vpack.c.b16 %v1439, %v1375
        %v1696 = vpack.c.b16 %v1440, %v1376
        %v1697 = vpack.c.b16 %v1441, %v1377
        %v1698 = vpack.c.b16 %v1442, %v1378
        %v1699 = vpack.c.b16 %v1443, %v1379
        %v1700 = vpack.c.b16 %v1444, %v1380
        %v1701 = vpack.c.b16 %v1445, %v1381
        %v1702 = vpack.c.b16 %v1446, %v1382
        %v1703 = vpack.c.b16 %v1447, %v1383
        %v1704 = vpack.c.b16 %v1448, %v1384
        %v1705 = vpack.c.b16 %v1449, %v1385
        %v1706 = vpack.c.b16 %v1450, %v1386
        %v1707 = vpack.c.b16 %v1451, %v1387
        %v1708 = vpack.c.b16 %v1452, %v1388
        %v1709 = vpack.c.b16 %v1453, %v1389
        %v1710 = vpack.c.b16 %v1454, %v1390
        %v1711 = vpack.c.b16 %v1455, %v1391
        %v1712 = vpack.c.b16 %v1456, %v1392
        %v1713 = vpack.c.b16 %v1457, %v1393
        %v1714 = vpack.c.b16 %v1458, %v1394
        %v1715 = vpack.c.b16 %v1459, %v1395
        %v1716 = vpack.c.b16 %v1460, %v1396
        %v1717 = vpack.c.b16 %v1461, %v1397
        %v1718 = vpack.c.b16 %v1462, %v1398
        %v1719 = vpack.c.b16 %v1463, %v1399
        %v1720 = vpack.c.b16 %v1464, %v1400
        %v1721 = vpack.c.b16 %v1465, %v1401
        %v1722 = vpack.c.b16 %v1466, %v1402
        %v1723 = vpack.c.b16 %v1467, %v1403
        %v1724 = vpack.c.b16 %v1468, %v1404
        %v1725 = vpack.c.b16 %v1469, %v1405
        %v1726 = vpack.c.b16 %v1470, %v1406
        %v1727 = vpack.c.b16 %v1471, %v1407
        %v1728 = vpack.c.b16 %v1472, %v1408
        %v1729 = vpack.c.b16 %v1473, %v1409
        %v1730 = vpack.c.b16 %v1474, %v1410
        %v1731 = vpack.c.b16 %v1475, %v1411
        %v1732 = vpack.c.b16 %v1476, %v1412
        %v1733 = vpack.c.b16 %v1477, %v1413
        %v1734 = vpack.c.b16 %v1478, %v1414
        %v1735 = vpack.c.b16 %v1479, %v1415
        %v1736 = vpack.c.b16 %v1480, %v1416
        %v1737 = vpack.c.b16 %v1481, %v1417
        %v1738 = vpack.c.b16 %v1482, %v1418
        %v1739 = vpack.c.b16 %v1483, %v1419
        %v1740 = vpack.c.b16 %v1484, %v1420
        %v1741 = vpack.c.b16 %v1485, %v1485
        %v1742 = vpack.c.b16 %v1486, %v1486
        %v1743 = vpack.c.b16 %v1487, %v1487
        %v1744 = vpack.c.b16 %v1488, %v1488
        %v1745 = vpack.c.b16 %v1489, %v1489
        %v1746 = vpack.c.b16 %v1490, %v1490
        %v1747 = vpack.c.b16 %v1491, %v1491
        %v1748 = vpack.c.b16 %v1492, %v1492
        %v1749 = vpack.c.b16 %v1493, %v1493
        %v1750 = vpack.c.b16 %v1494, %v1494
        %v1751 = vpack.c.b16 %v1495, %v1495
        %v1752 = vpack.c.b16 %v1496, %v1496
        %v1753 = vpack.c.b16 %v1497, %v1497
        %v1754 = vpack.c.b16 %v1498, %v1498
        %v1755 = vpack.c.b16 %v1499, %v1499
        %v1756 = vpack.c.b16 %v1500, %v1500
        %v1757 = vpack.c.b16 %v1501, %v1501
        %v1758 = vpack.c.b16 %v1502, %v1502
        %v1759 = vpack.c.b16 %v1503, %v1503
        %v1760 = vpack.c.b16 %v1504, %v1504
        %v1761 = vpack.c.b16 %v1505, %v1505
        %v1762 = vpack.c.b16 %v1506, %v1506
        %v1763 = vpack.c.b16 %v1507, %v1507
        %v1764 = vpack.c.b16 %v1508, %v1508
        %v1765 = vpack.c.b16 %v1509, %v1509
        %v1766 = vpack.c.b16 %v1510, %v1510
        %v1767 = vpack.c.b16 %v1511, %v1511
        %v1768 = vpack.c.b16 %v1512, %v1512
        %v1769 = vpack.c.b16 %v1513, %v1513
        %v1770 = vpack.c.b16 %v1514, %v1514
        %v1771 = vpack.c.b16 %v1515, %v1515
        %v1772 = vpack.c.b16 %v1516, %v1516
        %v1773 = vpack.c.b16 %v1517, %v1517
        %v1774 = vpack.c.b16 %v1518, %v1518
        %v1775 = vpack.c.b16 %v1519, %v1519
        %v1776 = vpack.c.b16 %v1520, %v1520
        %v1777 = vpack.c.b16 %v1521, %v1521
        %v1778 = vpack.c.b16 %v1522, %v1522
        %v1779 = vpack.c.b16 %v1523, %v1523
        %v1780 = vpack.c.b16 %v1524, %v1524
        %v1781 = vpack.c.b16 %v1525, %v1525
        %v1782 = vpack.c.b16 %v1526, %v1526
        %v1783 = vpack.c.b16 %v1527, %v1527
        %v1784 = vpack.c.b16 %v1528, %v1528
        %v1785 = vpack.c.b16 %v1529, %v1529
        %v1786 = vpack.c.b16 %v1530, %v1530
        %v1787 = vpack.c.b16 %v1531, %v1531
        %v1788 = vpack.c.b16 %v1532, %v1532
        %v1789 = vpack.c.b16 %v1533, %v1533
        %v1790 = vpack.c.b16 %v1534, %v1534
        %v1791 = vpack.c.b16 %v1535, %v1535
        %v1792 = vpack.c.b16 %v1536, %v1536
        %v1793 = vpack.c.b16 %v1537, %v1537
        %v1794 = vpack.c.b16 %v1538, %v1538
        %v1795 = vpack.c.b16 %v1539, %v1539
        %v1796 = vpack.c.b16 %v1540, %v1540
        %v1797 = vpack.c.b16 %v1541, %v1541
        %v1798 = vpack.c.b16 %v1542, %v1542
        %v1799 = vpack.c.b16 %v1543, %v1543
        %v1800 = vpack.c.b16 %v1544, %v1544
        %v1801 = vpack.c.b16 %v1545, %v1545
        %v1802 = vpack.c.b16 %v1546, %v1546
        %v1803 = vpack.c.b16 %v1547, %v1547
        %v1804 = vpack.c.b16 %v1548, %v1548
        %vm1997 = vcmask 441344
        %v1999 = vsel %vm1997, %v876, 0
        %vm2001 = vcmask 1042432
        %v2003 = vsel %vm2001, %v1741, 0
        %v2006 = vsel %vm2001, %v1742, 0
        %v2009 = vsel %vm2001, %v1743, 0
        %v2012 = vsel %vm2001, %v1744, 0
        %v2015 = vsel %vm2001, %v1745, 0
        %v2018 = vsel %vm2001, %v1746, 0
        %v2021 = vsel %vm2001, %v1747, 0
        %v2024 = vsel %vm2001, %v1748, 0
        %v2027 = vsel %vm2001, %v1749, 0
        %v2030 = vsel %vm2001, %v1750, 0
        %v2033 = vsel %vm2001, %v1751, 0
        %v2036 = vsel %vm2001, %v1752, 0
        %v2039 = vsel %vm2001, %v1753, 0
        %v2042 = vsel %vm2001, %v1754, 0
        %v2045 = vsel %vm2001, %v1755, 0
        %v2048 = vsel %vm2001, %v1756, 0
        %v2051 = vsel %vm2001, %v1757, 0
        %v2054 = vsel %vm2001, %v1758, 0
        %v2057 = vsel %vm2001, %v1759, 0
        %v2060 = vsel %vm2001, %v1760, 0
        %v2063 = vsel %vm2001, %v1761, 0
        %v2066 = vsel %vm2001, %v1762, 0
        %v2069 = vsel %vm2001, %v1763, 0
        %v2072 = vsel %vm2001, %v1764, 0
        %v2075 = vsel %vm2001, %v1765, 0
        %v2078 = vsel %vm2001, %v1766, 0
        %v2081 = vsel %vm2001, %v1767, 0
        %v2084 = vsel %vm2001, %v1768, 0
        %v2087 = vsel %vm2001, %v1769, 0
        %v2090 = vsel %vm2001, %v1770, 0
        %v2093 = vsel %vm2001, %v1771, 0
        %v2096 = vsel %vm2001, %v1772, 0
        %v2099 = vsel %vm2001, %v1773, 0
        %v2102 = vsel %vm2001, %v1774, 0
        %v2105 = vsel %vm2001, %v1775, 0
        %v2108 = vsel %vm2001, %v1776, 0
        %v2111 = vsel %vm2001, %v1777, 0
        %v2114 = vsel %vm2001, %v1778, 0
        %v2117 = vsel %vm2001, %v1779, 0
        %v2120 = vsel %vm2001, %v1780, 0
        %v2123 = vsel %vm2001, %v1781, 0
        %v2126 = vsel %vm2001, %v1782, 0
        %v2129 = vsel %vm2001, %v1783, 0
        %v2132 = vsel %vm2001, %v1784, 0
        %v2135 = vsel %vm2001, %v1785, 0
        %v2138 = vsel %vm2001, %v1786, 0
        %v2141 = vsel %vm2001, %v1787, 0
        %v2144 = vsel %vm2001, %v1788, 0
        %v2147 = vsel %vm2001, %v1789, 0
        %v2150 = vsel %vm2001, %v1790, 0
        %v2153 = vsel %vm2001, %v1791, 0
        %v2156 = vsel %vm2001, %v1792, 0
        %v2159 = vsel %vm2001, %v1793, 0
        %v2162 = vsel %vm2001, %v1794, 0
        %v2165 = vsel %vm2001, %v1795, 0
        %v2168 = vsel %vm2001, %v1796, 0
        %v2171 = vsel %vm2001, %v1797, 0
        %v2174 = vsel %vm2001, %v1798, 0
        %v2177 = vsel %vm2001, %v1799, 0
        %v2180 = vsel %vm2001, %v1800, 0
        %v2183 = vsel %vm2001, %v1801, 0
        %v2186 = vsel %vm2001, %v1802, 0
        %v2189 = vsel %vm2001, %v1803, 0
        %v2192 = vsel %vm2001, %v1804, 0
        %2194 = vmatprep.subr.bf16.mxu0 0
        %2195 = vmatpush1.bf16.msra.mxu0 0
        %2196 = vmatprep.subr.bf16.mxu0 0
        %2197 = vmatpush1.bf16.msra.mxu0 0
        %2198 = vmatprep.subr.bf16.mxu0 0
        %2199 = vmatpush1.bf16.msra.mxu0 0
        %2200 = vmatprep.subr.bf16.mxu0 0
        %2201 = vmatpush1.bf16.msra.mxu0 0
        %2202 = vmatprep.subr.bf16.mxu0 %v2006
        %2203 = vmatpush1.bf16.msra.mxu0 %v2003
        %2204 = vmatprep.subr.bf16.mxu0 %v1678
        %2205 = vmatpush1.bf16.msra.mxu0 %v1677
        %2206 = vmatprep.subr.bf16.mxu0 %v1614
        %2207 = vmatpush1.bf16.msra.mxu0 %v1613
        %2208 = vmatprep.subr.bf16.mxu0 %v1550
        %2209 = vmatpush1.bf16.msra.mxu0 %v1549
        %2210 = vmatprep.subr.bf16.mxu0 0
        %2211 = vmatpush2.bf16.msra.mxu0 0
        %2212 = vmatprep.subr.bf16.mxu0 0
        %2213 = vmatpush2.bf16.msra.mxu0 0
        %2214 = vmatprep.subr.bf16.mxu0 0
        %2215 = vmatpush2.bf16.msra.mxu0 0
        %2216 = vmatprep.subr.bf16.mxu0 0
        %2217 = vmatpush2.bf16.msra.mxu0 0
        %2218 = vmatprep.subr.bf16.mxu0 0
        %2219 = vmatpush2.bf16.msra.mxu0 0
        %2220 = vmatprep.subr.bf16.mxu0 0
        %2221 = vmatpush2.bf16.msra.mxu0 0
        %2222 = vmatprep.subr.bf16.mxu0 0
        %2223 = vmatpush2.bf16.msra.mxu0 0
        %2224 = vmatprep.subr.bf16.mxu0 0
        %2225 = vmatpush2.bf16.msra.mxu0 0
        %2226 = vmatprep.mubr.bf16.mxu0 0
        %2227 = vmatmul.mubr.bf16.gmra.mxu0 %v1999
        %v2228 = vpop.f32.mrf.mxu0
        %v2229 = vadd.f32 %v865, %v2228
        %v2230 = vpop.f32.mrf.mxu0
        %v2231 = vadd.f32 %v865, %v2230
        %v2232 = vpop.f32.mrf.mxu0
        %v2233 = vadd.f32 %v870, %v2232
        %v2234 = vpop.f32.mrf.mxu0
        %v2235 = vadd.f32 %v870, %v2234
        %2236 = vdwg.mxu0
        %2237 = vmatprep.subr.bf16.mxu0 0
        %2238 = vmatpush1.bf16.msra.mxu0 0
        %2239 = vmatprep.subr.bf16.mxu0 0
        %2240 = vmatpush1.bf16.msra.mxu0 0
        %2241 = vmatprep.subr.bf16.mxu0 0
        %2242 = vmatpush1.bf16.msra.mxu0 0
        %2243 = vmatprep.subr.bf16.mxu0 0
        %2244 = vmatpush1.bf16.msra.mxu0 0
        %2245 = vmatprep.subr.bf16.mxu0 %v2012
        %2246 = vmatpush1.bf16.msra.mxu0 %v2009
        %2247 = vmatprep.subr.bf16.mxu0 %v1680
        %2248 = vmatpush1.bf16.msra.mxu0 %v1679
        %2249 = vmatprep.subr.bf16.mxu0 %v1616
        %2250 = vmatpush1.bf16.msra.mxu0 %v1615
        %2251 = vmatprep.subr.bf16.mxu0 %v1552
        %2252 = vmatpush1.bf16.msra.mxu0 %v1551
        %2253 = vmatprep.subr.bf16.mxu0 0
        %2254 = vmatpush2.bf16.msra.mxu0 0
        %2255 = vmatprep.subr.bf16.mxu0 0
        %2256 = vmatpush2.bf16.msra.mxu0 0
        %2257 = vmatprep.subr.bf16.mxu0 0
        %2258 = vmatpush2.bf16.msra.mxu0 0
        %2259 = vmatprep.subr.bf16.mxu0 0
        %2260 = vmatpush2.bf16.msra.mxu0 0
        %2261 = vmatprep.subr.bf16.mxu0 0
        %2262 = vmatpush2.bf16.msra.mxu0 0
        %2263 = vmatprep.subr.bf16.mxu0 0
        %2264 = vmatpush2.bf16.msra.mxu0 0
        %2265 = vmatprep.subr.bf16.mxu0 0
        %2266 = vmatpush2.bf16.msra.mxu0 0
        %2267 = vmatprep.subr.bf16.mxu0 0
        %2268 = vmatpush2.bf16.msra.mxu0 0
        %2269 = vmatprep.mubr.bf16.mxu0 0
        %2270 = vmatmul.mubr.bf16.gmra.mxu0 %v1999
        %v2271 = vpop.f32.mrf.mxu0
        %v2272 = vadd.f32 %v865, %v2271
        %v2273 = vpop.f32.mrf.mxu0
        %v2274 = vadd.f32 %v865, %v2273
        %v2275 = vpop.f32.mrf.mxu0
        %v2276 = vadd.f32 %v870, %v2275
        %v2277 = vpop.f32.mrf.mxu0
        %v2278 = vadd.f32 %v870, %v2277
        %2279 = vdwg.mxu0
        %2280 = vmatprep.subr.bf16.mxu0 0
        %2281 = vmatpush1.bf16.msra.mxu0 0
        %2282 = vmatprep.subr.bf16.mxu0 0
        %2283 = vmatpush1.bf16.msra.mxu0 0
        %2284 = vmatprep.subr.bf16.mxu0 0
        %2285 = vmatpush1.bf16.msra.mxu0 0
        %2286 = vmatprep.subr.bf16.mxu0 0
        %2287 = vmatpush1.bf16.msra.mxu0 0
        %2288 = vmatprep.subr.bf16.mxu0 %v2018
        %2289 = vmatpush1.bf16.msra.mxu0 %v2015
        %2290 = vmatprep.subr.bf16.mxu0 %v1682
        %2291 = vmatpush1.bf16.msra.mxu0 %v1681
        %2292 = vmatprep.subr.bf16.mxu0 %v1618
        %2293 = vmatpush1.bf16.msra.mxu0 %v1617
        %2294 = vmatprep.subr.bf16.mxu0 %v1554
        %2295 = vmatpush1.bf16.msra.mxu0 %v1553
        %2296 = vmatprep.subr.bf16.mxu0 0
        %2297 = vmatpush2.bf16.msra.mxu0 0
        %2298 = vmatprep.subr.bf16.mxu0 0
        %2299 = vmatpush2.bf16.msra.mxu0 0
        %2300 = vmatprep.subr.bf16.mxu0 0
        %2301 = vmatpush2.bf16.msra.mxu0 0
        %2302 = vmatprep.subr.bf16.mxu0 0
        %2303 = vmatpush2.bf16.msra.mxu0 0
        %2304 = vmatprep.subr.bf16.mxu0 0
        %2305 = vmatpush2.bf16.msra.mxu0 0
        %2306 = vmatprep.subr.bf16.mxu0 0
        %2307 = vmatpush2.bf16.msra.mxu0 0
        %2308 = vmatprep.subr.bf16.mxu0 0
        %2309 = vmatpush2.bf16.msra.mxu0 0
        %2310 = vmatprep.subr.bf16.mxu0 0
        %2311 = vmatpush2.bf16.msra.mxu0 0
        %2312 = vmatprep.mubr.bf16.mxu0 0
        %2313 = vmatmul.mubr.bf16.gmra.mxu0 %v1999
        %v2314 = vpop.f32.mrf.mxu0
        %v2315 = vadd.f32 %v865, %v2314
        %v2316 = vpop.f32.mrf.mxu0
        %v2317 = vadd.f32 %v865, %v2316
        %v2318 = vpop.f32.mrf.mxu0
        %v2319 = vadd.f32 %v870, %v2318
        %v2320 = vpop.f32.mrf.mxu0
        %v2321 = vadd.f32 %v870, %v2320
        %2322 = vdwg.mxu0
        %2323 = vmatprep.subr.bf16.mxu0 0
        %2324 = vmatpush1.bf16.msra.mxu0 0
        %2325 = vmatprep.subr.bf16.mxu0 0
        %2326 = vmatpush1.bf16.msra.mxu0 0
        %2327 = vmatprep.subr.bf16.mxu0 0
        %2328 = vmatpush1.bf16.msra.mxu0 0
        %2329 = vmatprep.subr.bf16.mxu0 0
        %2330 = vmatpush1.bf16.msra.mxu0 0
        %2331 = vmatprep.subr.bf16.mxu0 %v2024
        %2332 = vmatpush1.bf16.msra.mxu0 %v2021
        %2333 = vmatprep.subr.bf16.mxu0 %v1684
        %2334 = vmatpush1.bf16.msra.mxu0 %v1683
        %2335 = vmatprep.subr.bf16.mxu0 %v1620
        %2336 = vmatpush1.bf16.msra.mxu0 %v1619
        %2337 = vmatprep.subr.bf16.mxu0 %v1556
        %2338 = vmatpush1.bf16.msra.mxu0 %v1555
        %2339 = vmatprep.subr.bf16.mxu0 0
        %2340 = vmatpush2.bf16.msra.mxu0 0
        %2341 = vmatprep.subr.bf16.mxu0 0
        %2342 = vmatpush2.bf16.msra.mxu0 0
        %2343 = vmatprep.subr.bf16.mxu0 0
        %2344 = vmatpush2.bf16.msra.mxu0 0
        %2345 = vmatprep.subr.bf16.mxu0 0
        %2346 = vmatpush2.bf16.msra.mxu0 0
        %2347 = vmatprep.subr.bf16.mxu0 0
        %2348 = vmatpush2.bf16.msra.mxu0 0
        %2349 = vmatprep.subr.bf16.mxu0 0
        %2350 = vmatpush2.bf16.msra.mxu0 0
        %2351 = vmatprep.subr.bf16.mxu0 0
        %2352 = vmatpush2.bf16.msra.mxu0 0
        %2353 = vmatprep.subr.bf16.mxu0 0
        %2354 = vmatpush2.bf16.msra.mxu0 0
        %2355 = vmatprep.mubr.bf16.mxu0 0
        %2356 = vmatmul.mubr.bf16.gmra.mxu0 %v1999
        %v2357 = vpop.f32.mrf.mxu0
        %v2358 = vadd.f32 %v865, %v2357
        %v2359 = vpop.f32.mrf.mxu0
        %v2360 = vadd.f32 %v865, %v2359
        %v2361 = vpop.f32.mrf.mxu0
        %v2362 = vadd.f32 %v870, %v2361
        %v2363 = vpop.f32.mrf.mxu0
        %v2364 = vadd.f32 %v870, %v2363
        %2365 = vdwg.mxu0
        %2366 = vmatprep.subr.bf16.mxu0 0
        %2367 = vmatpush1.bf16.msra.mxu0 0
        %2368 = vmatprep.subr.bf16.mxu0 0
        %2369 = vmatpush1.bf16.msra.mxu0 0
        %2370 = vmatprep.subr.bf16.mxu0 0
        %2371 = vmatpush1.bf16.msra.mxu0 0
        %2372 = vmatprep.subr.bf16.mxu0 0
        %2373 = vmatpush1.bf16.msra.mxu0 0
        %2374 = vmatprep.subr.bf16.mxu0 %v2030
        %2375 = vmatpush1.bf16.msra.mxu0 %v2027
        %2376 = vmatprep.subr.bf16.mxu0 %v1686
        %2377 = vmatpush1.bf16.msra.mxu0 %v1685
        %2378 = vmatprep.subr.bf16.mxu0 %v1622
        %2379 = vmatpush1.bf16.msra.mxu0 %v1621
        %2380 = vmatprep.subr.bf16.mxu0 %v1558
        %2381 = vmatpush1.bf16.msra.mxu0 %v1557
        %2382 = vmatprep.subr.bf16.mxu0 0
        %2383 = vmatpush2.bf16.msra.mxu0 0
        %2384 = vmatprep.subr.bf16.mxu0 0
        %2385 = vmatpush2.bf16.msra.mxu0 0
        %2386 = vmatprep.subr.bf16.mxu0 0
        %2387 = vmatpush2.bf16.msra.mxu0 0
        %2388 = vmatprep.subr.bf16.mxu0 0
        %2389 = vmatpush2.bf16.msra.mxu0 0
        %2390 = vmatprep.subr.bf16.mxu0 0
        %2391 = vmatpush2.bf16.msra.mxu0 0
        %2392 = vmatprep.subr.bf16.mxu0 0
        %2393 = vmatpush2.bf16.msra.mxu0 0
        %2394 = vmatprep.subr.bf16.mxu0 0
        %2395 = vmatpush2.bf16.msra.mxu0 0
        %2396 = vmatprep.subr.bf16.mxu0 0
        %2397 = vmatpush2.bf16.msra.mxu0 0
        %2398 = vmatprep.mubr.bf16.mxu0 0
        %2399 = vmatmul.mubr.bf16.gmra.mxu0 %v1999
        %v2400 = vpop.f32.mrf.mxu0
        %v2401 = vadd.f32 %v865, %v2400
        %v2402 = vpop.f32.mrf.mxu0
        %v2403 = vadd.f32 %v865, %v2402
        %v2404 = vpop.f32.mrf.mxu0
        %v2405 = vadd.f32 %v870, %v2404
        %v2406 = vpop.f32.mrf.mxu0
        %v2407 = vadd.f32 %v870, %v2406
        %2408 = vdwg.mxu0
        %2409 = vmatprep.subr.bf16.mxu0 0
        %2410 = vmatpush1.bf16.msra.mxu0 0
        %2411 = vmatprep.subr.bf16.mxu0 0
        %2412 = vmatpush1.bf16.msra.mxu0 0
        %2413 = vmatprep.subr.bf16.mxu0 0
        %2414 = vmatpush1.bf16.msra.mxu0 0
        %2415 = vmatprep.subr.bf16.mxu0 0
        %2416 = vmatpush1.bf16.msra.mxu0 0
        %2417 = vmatprep.subr.bf16.mxu0 %v2036
        %2418 = vmatpush1.bf16.msra.mxu0 %v2033
        %2419 = vmatprep.subr.bf16.mxu0 %v1688
        %2420 = vmatpush1.bf16.msra.mxu0 %v1687
        %2421 = vmatprep.subr.bf16.mxu0 %v1624
        %2422 = vmatpush1.bf16.msra.mxu0 %v1623
        %2423 = vmatprep.subr.bf16.mxu0 %v1560
        %2424 = vmatpush1.bf16.msra.mxu0 %v1559
        %2425 = vmatprep.subr.bf16.mxu0 0
        %2426 = vmatpush2.bf16.msra.mxu0 0
        %2427 = vmatprep.subr.bf16.mxu0 0
        %2428 = vmatpush2.bf16.msra.mxu0 0
        %2429 = vmatprep.subr.bf16.mxu0 0
        %2430 = vmatpush2.bf16.msra.mxu0 0
        %2431 = vmatprep.subr.bf16.mxu0 0
        %2432 = vmatpush2.bf16.msra.mxu0 0
        %2433 = vmatprep.subr.bf16.mxu0 0
        %2434 = vmatpush2.bf16.msra.mxu0 0
        %2435 = vmatprep.subr.bf16.mxu0 0
        %2436 = vmatpush2.bf16.msra.mxu0 0
        %2437 = vmatprep.subr.bf16.mxu0 0
        %2438 = vmatpush2.bf16.msra.mxu0 0
        %2439 = vmatprep.subr.bf16.mxu0 0
        %2440 = vmatpush2.bf16.msra.mxu0 0
        %2441 = vmatprep.mubr.bf16.mxu0 0
        %2442 = vmatmul.mubr.bf16.gmra.mxu0 %v1999
        %v2443 = vpop.f32.mrf.mxu0
        %v2444 = vadd.f32 %v865, %v2443
        %v2445 = vpop.f32.mrf.mxu0
        %v2446 = vadd.f32 %v865, %v2445
        %v2447 = vpop.f32.mrf.mxu0
        %v2448 = vadd.f32 %v870, %v2447
        %v2449 = vpop.f32.mrf.mxu0
        %v2450 = vadd.f32 %v870, %v2449
        %2451 = vdwg.mxu0
        %2452 = vmatprep.subr.bf16.mxu0 0
        %2453 = vmatpush1.bf16.msra.mxu0 0
        %2454 = vmatprep.subr.bf16.mxu0 0
        %2455 = vmatpush1.bf16.msra.mxu0 0
        %2456 = vmatprep.subr.bf16.mxu0 0
        %2457 = vmatpush1.bf16.msra.mxu0 0
        %2458 = vmatprep.subr.bf16.mxu0 0
        %2459 = vmatpush1.bf16.msra.mxu0 0
        %2460 = vmatprep.subr.bf16.mxu0 %v2042
        %2461 = vmatpush1.bf16.msra.mxu0 %v2039
        %2462 = vmatprep.subr.bf16.mxu0 %v1690
        %2463 = vmatpush1.bf16.msra.mxu0 %v1689
        %2464 = vmatprep.subr.bf16.mxu0 %v1626
        %2465 = vmatpush1.bf16.msra.mxu0 %v1625
        %2466 = vmatprep.subr.bf16.mxu0 %v1562
        %2467 = vmatpush1.bf16.msra.mxu0 %v1561
        %2468 = vmatprep.subr.bf16.mxu0 0
        %2469 = vmatpush2.bf16.msra.mxu0 0
        %2470 = vmatprep.subr.bf16.mxu0 0
        %2471 = vmatpush2.bf16.msra.mxu0 0
        %2472 = vmatprep.subr.bf16.mxu0 0
        %2473 = vmatpush2.bf16.msra.mxu0 0
        %2474 = vmatprep.subr.bf16.mxu0 0
        %2475 = vmatpush2.bf16.msra.mxu0 0
        %2476 = vmatprep.subr.bf16.mxu0 0
        %2477 = vmatpush2.bf16.msra.mxu0 0
        %2478 = vmatprep.subr.bf16.mxu0 0
        %2479 = vmatpush2.bf16.msra.mxu0 0
        %2480 = vmatprep.subr.bf16.mxu0 0
        %2481 = vmatpush2.bf16.msra.mxu0 0
        %2482 = vmatprep.subr.bf16.mxu0 0
        %2483 = vmatpush2.bf16.msra.mxu0 0
        %2484 = vmatprep.mubr.bf16.mxu0 0
        %2485 = vmatmul.mubr.bf16.gmra.mxu0 %v1999
        %v2486 = vpop.f32.mrf.mxu0
        %v2487 = vadd.f32 %v865, %v2486
        %v2488 = vpop.f32.mrf.mxu0
        %v2489 = vadd.f32 %v865, %v2488
        %v2490 = vpop.f32.mrf.mxu0
        %v2491 = vadd.f32 %v870, %v2490
        %v2492 = vpop.f32.mrf.mxu0
        %v2493 = vadd.f32 %v870, %v2492
        %2494 = vdwg.mxu0
        %2495 = vmatprep.subr.bf16.mxu0 0
        %2496 = vmatpush1.bf16.msra.mxu0 0
        %2497 = vmatprep.subr.bf16.mxu0 0
        %2498 = vmatpush1.bf16.msra.mxu0 0
        %2499 = vmatprep.subr.bf16.mxu0 0
        %2500 = vmatpush1.bf16.msra.mxu0 0
        %2501 = vmatprep.subr.bf16.mxu0 0
        %2502 = vmatpush1.bf16.msra.mxu0 0
        %2503 = vmatprep.subr.bf16.mxu0 %v2048
        %2504 = vmatpush1.bf16.msra.mxu0 %v2045
        %2505 = vmatprep.subr.bf16.mxu0 %v1692
        %2506 = vmatpush1.bf16.msra.mxu0 %v1691
        %2507 = vmatprep.subr.bf16.mxu0 %v1628
        %2508 = vmatpush1.bf16.msra.mxu0 %v1627
        %2509 = vmatprep.subr.bf16.mxu0 %v1564
        %2510 = vmatpush1.bf16.msra.mxu0 %v1563
        %2511 = vmatprep.subr.bf16.mxu0 0
        %2512 = vmatpush2.bf16.msra.mxu0 0
        %2513 = vmatprep.subr.bf16.mxu0 0
        %2514 = vmatpush2.bf16.msra.mxu0 0
        %2515 = vmatprep.subr.bf16.mxu0 0
        %2516 = vmatpush2.bf16.msra.mxu0 0
        %2517 = vmatprep.subr.bf16.mxu0 0
        %2518 = vmatpush2.bf16.msra.mxu0 0
        %2519 = vmatprep.subr.bf16.mxu0 0
        %2520 = vmatpush2.bf16.msra.mxu0 0
        %2521 = vmatprep.subr.bf16.mxu0 0
        %2522 = vmatpush2.bf16.msra.mxu0 0
        %2523 = vmatprep.subr.bf16.mxu0 0
        %2524 = vmatpush2.bf16.msra.mxu0 0
        %2525 = vmatprep.subr.bf16.mxu0 0
        %2526 = vmatpush2.bf16.msra.mxu0 0
        %2527 = vmatprep.mubr.bf16.mxu0 0
        %2528 = vmatmul.mubr.bf16.gmra.mxu0 %v1999
        %v2529 = vpop.f32.mrf.mxu0
        %v2530 = vadd.f32 %v865, %v2529
        %v2531 = vpop.f32.mrf.mxu0
        %v2532 = vadd.f32 %v865, %v2531
        %v2533 = vpop.f32.mrf.mxu0
        %v2534 = vadd.f32 %v870, %v2533
        %v2535 = vpop.f32.mrf.mxu0
        %v2536 = vadd.f32 %v870, %v2535
        %2537 = vdwg.mxu0
        %2538 = vmatprep.subr.bf16.mxu0 0
        %2539 = vmatpush1.bf16.msra.mxu0 0
        %2540 = vmatprep.subr.bf16.mxu0 0
        %2541 = vmatpush1.bf16.msra.mxu0 0
        %2542 = vmatprep.subr.bf16.mxu0 0
        %2543 = vmatpush1.bf16.msra.mxu0 0
        %2544 = vmatprep.subr.bf16.mxu0 0
        %2545 = vmatpush1.bf16.msra.mxu0 0
        %2546 = vmatprep.subr.bf16.mxu0 %v2054
        %2547 = vmatpush1.bf16.msra.mxu0 %v2051
        %2548 = vmatprep.subr.bf16.mxu0 %v1694
        %2549 = vmatpush1.bf16.msra.mxu0 %v1693
        %2550 = vmatprep.subr.bf16.mxu0 %v1630
        %2551 = vmatpush1.bf16.msra.mxu0 %v1629
        %2552 = vmatprep.subr.bf16.mxu0 %v1566
        %2553 = vmatpush1.bf16.msra.mxu0 %v1565
        %2554 = vmatprep.subr.bf16.mxu0 0
        %2555 = vmatpush2.bf16.msra.mxu0 0
        %2556 = vmatprep.subr.bf16.mxu0 0
        %2557 = vmatpush2.bf16.msra.mxu0 0
        %2558 = vmatprep.subr.bf16.mxu0 0
        %2559 = vmatpush2.bf16.msra.mxu0 0
        %2560 = vmatprep.subr.bf16.mxu0 0
        %2561 = vmatpush2.bf16.msra.mxu0 0
        %2562 = vmatprep.subr.bf16.mxu0 0
        %2563 = vmatpush2.bf16.msra.mxu0 0
        %2564 = vmatprep.subr.bf16.mxu0 0
        %2565 = vmatpush2.bf16.msra.mxu0 0
        %2566 = vmatprep.subr.bf16.mxu0 0
        %2567 = vmatpush2.bf16.msra.mxu0 0
        %2568 = vmatprep.subr.bf16.mxu0 0
        %2569 = vmatpush2.bf16.msra.mxu0 0
        %2570 = vmatprep.mubr.bf16.mxu0 0
        %2571 = vmatmul.mubr.bf16.gmra.mxu0 %v1999
        %v2572 = vpop.f32.mrf.mxu0
        %v2573 = vadd.f32 %v865, %v2572
        %v2574 = vpop.f32.mrf.mxu0
        %v2575 = vadd.f32 %v865, %v2574
        %v2576 = vpop.f32.mrf.mxu0
        %v2577 = vadd.f32 %v870, %v2576
        %v2578 = vpop.f32.mrf.mxu0
        %v2579 = vadd.f32 %v870, %v2578
        %2580 = vdwg.mxu0
        %2581 = vmatprep.subr.bf16.mxu0 0
        %2582 = vmatpush1.bf16.msra.mxu0 0
        %2583 = vmatprep.subr.bf16.mxu0 0
        %2584 = vmatpush1.bf16.msra.mxu0 0
        %2585 = vmatprep.subr.bf16.mxu0 0
        %2586 = vmatpush1.bf16.msra.mxu0 0
        %2587 = vmatprep.subr.bf16.mxu0 0
        %2588 = vmatpush1.bf16.msra.mxu0 0
        %2589 = vmatprep.subr.bf16.mxu0 %v2060
        %2590 = vmatpush1.bf16.msra.mxu0 %v2057
        %2591 = vmatprep.subr.bf16.mxu0 %v1696
        %2592 = vmatpush1.bf16.msra.mxu0 %v1695
        %2593 = vmatprep.subr.bf16.mxu0 %v1632
        %2594 = vmatpush1.bf16.msra.mxu0 %v1631
        %2595 = vmatprep.subr.bf16.mxu0 %v1568
        %2596 = vmatpush1.bf16.msra.mxu0 %v1567
        %2597 = vmatprep.subr.bf16.mxu0 0
        %2598 = vmatpush2.bf16.msra.mxu0 0
        %2599 = vmatprep.subr.bf16.mxu0 0
        %2600 = vmatpush2.bf16.msra.mxu0 0
        %2601 = vmatprep.subr.bf16.mxu0 0
        %2602 = vmatpush2.bf16.msra.mxu0 0
        %2603 = vmatprep.subr.bf16.mxu0 0
        %2604 = vmatpush2.bf16.msra.mxu0 0
        %2605 = vmatprep.subr.bf16.mxu0 0
        %2606 = vmatpush2.bf16.msra.mxu0 0
        %2607 = vmatprep.subr.bf16.mxu0 0
        %2608 = vmatpush2.bf16.msra.mxu0 0
        %2609 = vmatprep.subr.bf16.mxu0 0
        %2610 = vmatpush2.bf16.msra.mxu0 0
        %2611 = vmatprep.subr.bf16.mxu0 0
        %2612 = vmatpush2.bf16.msra.mxu0 0
        %2613 = vmatprep.mubr.bf16.mxu0 0
        %2614 = vmatmul.mubr.bf16.gmra.mxu0 %v1999
        %v2615 = vpop.f32.mrf.mxu0
        %v2616 = vadd.f32 %v865, %v2615
        %v2617 = vpop.f32.mrf.mxu0
        %v2618 = vadd.f32 %v865, %v2617
        %v2619 = vpop.f32.mrf.mxu0
        %v2620 = vadd.f32 %v870, %v2619
        %v2621 = vpop.f32.mrf.mxu0
        %v2622 = vadd.f32 %v870, %v2621
        %2623 = vdwg.mxu0
        %2624 = vmatprep.subr.bf16.mxu0 0
        %2625 = vmatpush1.bf16.msra.mxu0 0
        %2626 = vmatprep.subr.bf16.mxu0 0
        %2627 = vmatpush1.bf16.msra.mxu0 0
        %2628 = vmatprep.subr.bf16.mxu0 0
        %2629 = vmatpush1.bf16.msra.mxu0 0
        %2630 = vmatprep.subr.bf16.mxu0 0
        %2631 = vmatpush1.bf16.msra.mxu0 0
        %2632 = vmatprep.subr.bf16.mxu0 %v2066
        %2633 = vmatpush1.bf16.msra.mxu0 %v2063
        %2634 = vmatprep.subr.bf16.mxu0 %v1698
        %2635 = vmatpush1.bf16.msra.mxu0 %v1697
        %2636 = vmatprep.subr.bf16.mxu0 %v1634
        %2637 = vmatpush1.bf16.msra.mxu0 %v1633
        %2638 = vmatprep.subr.bf16.mxu0 %v1570
        %2639 = vmatpush1.bf16.msra.mxu0 %v1569
        %2640 = vmatprep.subr.bf16.mxu0 0
        %2641 = vmatpush2.bf16.msra.mxu0 0
        %2642 = vmatprep.subr.bf16.mxu0 0
        %2643 = vmatpush2.bf16.msra.mxu0 0
        %2644 = vmatprep.subr.bf16.mxu0 0
        %2645 = vmatpush2.bf16.msra.mxu0 0
        %2646 = vmatprep.subr.bf16.mxu0 0
        %2647 = vmatpush2.bf16.msra.mxu0 0
        %2648 = vmatprep.subr.bf16.mxu0 0
        %2649 = vmatpush2.bf16.msra.mxu0 0
        %2650 = vmatprep.subr.bf16.mxu0 0
        %2651 = vmatpush2.bf16.msra.mxu0 0
        %2652 = vmatprep.subr.bf16.mxu0 0
        %2653 = vmatpush2.bf16.msra.mxu0 0
        %2654 = vmatprep.subr.bf16.mxu0 0
        %2655 = vmatpush2.bf16.msra.mxu0 0
        %2656 = vmatprep.mubr.bf16.mxu0 0
        %2657 = vmatmul.mubr.bf16.gmra.mxu0 %v1999
        %v2658 = vpop.f32.mrf.mxu0
        %v2659 = vadd.f32 %v865, %v2658
        %v2660 = vpop.f32.mrf.mxu0
        %v2661 = vadd.f32 %v865, %v2660
        %v2662 = vpop.f32.mrf.mxu0
        %v2663 = vadd.f32 %v870, %v2662
        %v2664 = vpop.f32.mrf.mxu0
        %v2665 = vadd.f32 %v870, %v2664
        %2666 = vdwg.mxu0
        %2667 = vmatprep.subr.bf16.mxu0 0
        %2668 = vmatpush1.bf16.msra.mxu0 0
        %2669 = vmatprep.subr.bf16.mxu0 0
        %2670 = vmatpush1.bf16.msra.mxu0 0
        %2671 = vmatprep.subr.bf16.mxu0 0
        %2672 = vmatpush1.bf16.msra.mxu0 0
        %2673 = vmatprep.subr.bf16.mxu0 0
        %2674 = vmatpush1.bf16.msra.mxu0 0
        %2675 = vmatprep.subr.bf16.mxu0 %v2072
        %2676 = vmatpush1.bf16.msra.mxu0 %v2069
        %2677 = vmatprep.subr.bf16.mxu0 %v1700
        %2678 = vmatpush1.bf16.msra.mxu0 %v1699
        %2679 = vmatprep.subr.bf16.mxu0 %v1636
        %2680 = vmatpush1.bf16.msra.mxu0 %v1635
        %2681 = vmatprep.subr.bf16.mxu0 %v1572
        %2682 = vmatpush1.bf16.msra.mxu0 %v1571
        %2683 = vmatprep.subr.bf16.mxu0 0
        %2684 = vmatpush2.bf16.msra.mxu0 0
        %2685 = vmatprep.subr.bf16.mxu0 0
        %2686 = vmatpush2.bf16.msra.mxu0 0
        %2687 = vmatprep.subr.bf16.mxu0 0
        %2688 = vmatpush2.bf16.msra.mxu0 0
        %2689 = vmatprep.subr.bf16.mxu0 0
        %2690 = vmatpush2.bf16.msra.mxu0 0
        %2691 = vmatprep.subr.bf16.mxu0 0
        %2692 = vmatpush2.bf16.msra.mxu0 0
        %2693 = vmatprep.subr.bf16.mxu0 0
        %2694 = vmatpush2.bf16.msra.mxu0 0
        %2695 = vmatprep.subr.bf16.mxu0 0
        %2696 = vmatpush2.bf16.msra.mxu0 0
        %2697 = vmatprep.subr.bf16.mxu0 0
        %2698 = vmatpush2.bf16.msra.mxu0 0
        %2699 = vmatprep.mubr.bf16.mxu0 0
        %2700 = vmatmul.mubr.bf16.gmra.mxu0 %v1999
        %v2701 = vpop.f32.mrf.mxu0
        %v2702 = vadd.f32 %v865, %v2701
        %v2703 = vpop.f32.mrf.mxu0
        %v2704 = vadd.f32 %v865, %v2703
        %v2705 = vpop.f32.mrf.mxu0
        %v2706 = vadd.f32 %v870, %v2705
        %v2707 = vpop.f32.mrf.mxu0
        %v2708 = vadd.f32 %v870, %v2707
        %2709 = vdwg.mxu0
        %2710 = vmatprep.subr.bf16.mxu0 0
        %2711 = vmatpush1.bf16.msra.mxu0 0
        %2712 = vmatprep.subr.bf16.mxu0 0
        %2713 = vmatpush1.bf16.msra.mxu0 0
        %2714 = vmatprep.subr.bf16.mxu0 0
        %2715 = vmatpush1.bf16.msra.mxu0 0
        %2716 = vmatprep.subr.bf16.mxu0 0
        %2717 = vmatpush1.bf16.msra.mxu0 0
        %2718 = vmatprep.subr.bf16.mxu0 %v2078
        %2719 = vmatpush1.bf16.msra.mxu0 %v2075
        %2720 = vmatprep.subr.bf16.mxu0 %v1702
        %2721 = vmatpush1.bf16.msra.mxu0 %v1701
        %2722 = vmatprep.subr.bf16.mxu0 %v1638
        %2723 = vmatpush1.bf16.msra.mxu0 %v1637
        %2724 = vmatprep.subr.bf16.mxu0 %v1574
        %2725 = vmatpush1.bf16.msra.mxu0 %v1573
        %2726 = vmatprep.subr.bf16.mxu0 0
        %2727 = vmatpush2.bf16.msra.mxu0 0
        %2728 = vmatprep.subr.bf16.mxu0 0
        %2729 = vmatpush2.bf16.msra.mxu0 0
        %2730 = vmatprep.subr.bf16.mxu0 0
        %2731 = vmatpush2.bf16.msra.mxu0 0
        %2732 = vmatprep.subr.bf16.mxu0 0
        %2733 = vmatpush2.bf16.msra.mxu0 0
        %2734 = vmatprep.subr.bf16.mxu0 0
        %2735 = vmatpush2.bf16.msra.mxu0 0
        %2736 = vmatprep.subr.bf16.mxu0 0
        %2737 = vmatpush2.bf16.msra.mxu0 0
        %2738 = vmatprep.subr.bf16.mxu0 0
        %2739 = vmatpush2.bf16.msra.mxu0 0
        %2740 = vmatprep.subr.bf16.mxu0 0
        %2741 = vmatpush2.bf16.msra.mxu0 0
        %2742 = vmatprep.mubr.bf16.mxu0 0
        %2743 = vmatmul.mubr.bf16.gmra.mxu0 %v1999
        %v2744 = vpop.f32.mrf.mxu0
        %v2745 = vadd.f32 %v865, %v2744
        %v2746 = vpop.f32.mrf.mxu0
        %v2747 = vadd.f32 %v865, %v2746
        %v2748 = vpop.f32.mrf.mxu0
        %v2749 = vadd.f32 %v870, %v2748
        %v2750 = vpop.f32.mrf.mxu0
        %v2751 = vadd.f32 %v870, %v2750
        %2752 = vdwg.mxu0
        %2753 = vmatprep.subr.bf16.mxu0 0
        %2754 = vmatpush1.bf16.msra.mxu0 0
        %2755 = vmatprep.subr.bf16.mxu0 0
        %2756 = vmatpush1.bf16.msra.mxu0 0
        %2757 = vmatprep.subr.bf16.mxu0 0
        %2758 = vmatpush1.bf16.msra.mxu0 0
        %2759 = vmatprep.subr.bf16.mxu0 0
        %2760 = vmatpush1.bf16.msra.mxu0 0
        %2761 = vmatprep.subr.bf16.mxu0 %v2084
        %2762 = vmatpush1.bf16.msra.mxu0 %v2081
        %2763 = vmatprep.subr.bf16.mxu0 %v1704
        %2764 = vmatpush1.bf16.msra.mxu0 %v1703
        %2765 = vmatprep.subr.bf16.mxu0 %v1640
        %2766 = vmatpush1.bf16.msra.mxu0 %v1639
        %2767 = vmatprep.subr.bf16.mxu0 %v1576
        %2768 = vmatpush1.bf16.msra.mxu0 %v1575
        %2769 = vmatprep.subr.bf16.mxu0 0
        %2770 = vmatpush2.bf16.msra.mxu0 0
        %2771 = vmatprep.subr.bf16.mxu0 0
        %2772 = vmatpush2.bf16.msra.mxu0 0
        %2773 = vmatprep.subr.bf16.mxu0 0
        %2774 = vmatpush2.bf16.msra.mxu0 0
        %2775 = vmatprep.subr.bf16.mxu0 0
        %2776 = vmatpush2.bf16.msra.mxu0 0
        %2777 = vmatprep.subr.bf16.mxu0 0
        %2778 = vmatpush2.bf16.msra.mxu0 0
        %2779 = vmatprep.subr.bf16.mxu0 0
        %2780 = vmatpush2.bf16.msra.mxu0 0
        %2781 = vmatprep.subr.bf16.mxu0 0
        %2782 = vmatpush2.bf16.msra.mxu0 0
        %2783 = vmatprep.subr.bf16.mxu0 0
        %2784 = vmatpush2.bf16.msra.mxu0 0
        %2785 = vmatprep.mubr.bf16.mxu0 0
        %2786 = vmatmul.mubr.bf16.gmra.mxu0 %v1999
        %v2787 = vpop.f32.mrf.mxu0
        %v2788 = vadd.f32 %v865, %v2787
        %v2789 = vpop.f32.mrf.mxu0
        %v2790 = vadd.f32 %v865, %v2789
        %v2791 = vpop.f32.mrf.mxu0
        %v2792 = vadd.f32 %v870, %v2791
        %v2793 = vpop.f32.mrf.mxu0
        %v2794 = vadd.f32 %v870, %v2793
        %2795 = vdwg.mxu0
        %2796 = vmatprep.subr.bf16.mxu0 0
        %2797 = vmatpush1.bf16.msra.mxu0 0
        %2798 = vmatprep.subr.bf16.mxu0 0
        %2799 = vmatpush1.bf16.msra.mxu0 0
        %2800 = vmatprep.subr.bf16.mxu0 0
        %2801 = vmatpush1.bf16.msra.mxu0 0
        %2802 = vmatprep.subr.bf16.mxu0 0
        %2803 = vmatpush1.bf16.msra.mxu0 0
        %2804 = vmatprep.subr.bf16.mxu0 %v2090
        %2805 = vmatpush1.bf16.msra.mxu0 %v2087
        %2806 = vmatprep.subr.bf16.mxu0 %v1706
        %2807 = vmatpush1.bf16.msra.mxu0 %v1705
        %2808 = vmatprep.subr.bf16.mxu0 %v1642
        %2809 = vmatpush1.bf16.msra.mxu0 %v1641
        %2810 = vmatprep.subr.bf16.mxu0 %v1578
        %2811 = vmatpush1.bf16.msra.mxu0 %v1577
        %2812 = vmatprep.subr.bf16.mxu0 0
        %2813 = vmatpush2.bf16.msra.mxu0 0
        %2814 = vmatprep.subr.bf16.mxu0 0
        %2815 = vmatpush2.bf16.msra.mxu0 0
        %2816 = vmatprep.subr.bf16.mxu0 0
        %2817 = vmatpush2.bf16.msra.mxu0 0
        %2818 = vmatprep.subr.bf16.mxu0 0
        %2819 = vmatpush2.bf16.msra.mxu0 0
        %2820 = vmatprep.subr.bf16.mxu0 0
        %2821 = vmatpush2.bf16.msra.mxu0 0
        %2822 = vmatprep.subr.bf16.mxu0 0
        %2823 = vmatpush2.bf16.msra.mxu0 0
        %2824 = vmatprep.subr.bf16.mxu0 0
        %2825 = vmatpush2.bf16.msra.mxu0 0
        %2826 = vmatprep.subr.bf16.mxu0 0
        %2827 = vmatpush2.bf16.msra.mxu0 0
        %2828 = vmatprep.mubr.bf16.mxu0 0
        %2829 = vmatmul.mubr.bf16.gmra.mxu0 %v1999
        %v2830 = vpop.f32.mrf.mxu0
        %v2831 = vadd.f32 %v865, %v2830
        %v2832 = vpop.f32.mrf.mxu0
        %v2833 = vadd.f32 %v865, %v2832
        %v2834 = vpop.f32.mrf.mxu0
        %v2835 = vadd.f32 %v870, %v2834
        %v2836 = vpop.f32.mrf.mxu0
        %v2837 = vadd.f32 %v870, %v2836
        %2838 = vdwg.mxu0
        %2839 = vmatprep.subr.bf16.mxu0 0
        %2840 = vmatpush1.bf16.msra.mxu0 0
        %2841 = vmatprep.subr.bf16.mxu0 0
        %2842 = vmatpush1.bf16.msra.mxu0 0
        %2843 = vmatprep.subr.bf16.mxu0 0
        %2844 = vmatpush1.bf16.msra.mxu0 0
        %2845 = vmatprep.subr.bf16.mxu0 0
        %2846 = vmatpush1.bf16.msra.mxu0 0
        %2847 = vmatprep.subr.bf16.mxu0 %v2096
        %2848 = vmatpush1.bf16.msra.mxu0 %v2093
        %2849 = vmatprep.subr.bf16.mxu0 %v1708
        %2850 = vmatpush1.bf16.msra.mxu0 %v1707
        %2851 = vmatprep.subr.bf16.mxu0 %v1644
        %2852 = vmatpush1.bf16.msra.mxu0 %v1643
        %2853 = vmatprep.subr.bf16.mxu0 %v1580
        %2854 = vmatpush1.bf16.msra.mxu0 %v1579
        %2855 = vmatprep.subr.bf16.mxu0 0
        %2856 = vmatpush2.bf16.msra.mxu0 0
        %2857 = vmatprep.subr.bf16.mxu0 0
        %2858 = vmatpush2.bf16.msra.mxu0 0
        %2859 = vmatprep.subr.bf16.mxu0 0
        %2860 = vmatpush2.bf16.msra.mxu0 0
        %2861 = vmatprep.subr.bf16.mxu0 0
        %2862 = vmatpush2.bf16.msra.mxu0 0
        %2863 = vmatprep.subr.bf16.mxu0 0
        %2864 = vmatpush2.bf16.msra.mxu0 0
        %2865 = vmatprep.subr.bf16.mxu0 0
        %2866 = vmatpush2.bf16.msra.mxu0 0
        %2867 = vmatprep.subr.bf16.mxu0 0
        %2868 = vmatpush2.bf16.msra.mxu0 0
        %2869 = vmatprep.subr.bf16.mxu0 0
        %2870 = vmatpush2.bf16.msra.mxu0 0
        %2871 = vmatprep.mubr.bf16.mxu0 0
        %2872 = vmatmul.mubr.bf16.gmra.mxu0 %v1999
        %v2873 = vpop.f32.mrf.mxu0
        %v2874 = vadd.f32 %v865, %v2873
        %v2875 = vpop.f32.mrf.mxu0
        %v2876 = vadd.f32 %v865, %v2875
        %v2877 = vpop.f32.mrf.mxu0
        %v2878 = vadd.f32 %v870, %v2877
        %v2879 = vpop.f32.mrf.mxu0
        %v2880 = vadd.f32 %v870, %v2879
        %2881 = vdwg.mxu0
        %2882 = vmatprep.subr.bf16.mxu0 0
        %2883 = vmatpush1.bf16.msra.mxu0 0
        %2884 = vmatprep.subr.bf16.mxu0 0
        %2885 = vmatpush1.bf16.msra.mxu0 0
        %2886 = vmatprep.subr.bf16.mxu0 0
        %2887 = vmatpush1.bf16.msra.mxu0 0
        %2888 = vmatprep.subr.bf16.mxu0 0
        %2889 = vmatpush1.bf16.msra.mxu0 0
        %2890 = vmatprep.subr.bf16.mxu0 %v2102
        %2891 = vmatpush1.bf16.msra.mxu0 %v2099
        %2892 = vmatprep.subr.bf16.mxu0 %v1710
        %2893 = vmatpush1.bf16.msra.mxu0 %v1709
        %2894 = vmatprep.subr.bf16.mxu0 %v1646
        %2895 = vmatpush1.bf16.msra.mxu0 %v1645
        %2896 = vmatprep.subr.bf16.mxu0 %v1582
        %2897 = vmatpush1.bf16.msra.mxu0 %v1581
        %2898 = vmatprep.subr.bf16.mxu0 0
        %2899 = vmatpush2.bf16.msra.mxu0 0
        %2900 = vmatprep.subr.bf16.mxu0 0
        %2901 = vmatpush2.bf16.msra.mxu0 0
        %2902 = vmatprep.subr.bf16.mxu0 0
        %2903 = vmatpush2.bf16.msra.mxu0 0
        %2904 = vmatprep.subr.bf16.mxu0 0
        %2905 = vmatpush2.bf16.msra.mxu0 0
        %2906 = vmatprep.subr.bf16.mxu0 0
        %2907 = vmatpush2.bf16.msra.mxu0 0
        %2908 = vmatprep.subr.bf16.mxu0 0
        %2909 = vmatpush2.bf16.msra.mxu0 0
        %2910 = vmatprep.subr.bf16.mxu0 0
        %2911 = vmatpush2.bf16.msra.mxu0 0
        %2912 = vmatprep.subr.bf16.mxu0 0
        %2913 = vmatpush2.bf16.msra.mxu0 0
        %2914 = vmatprep.mubr.bf16.mxu0 0
        %2915 = vmatmul.mubr.bf16.gmra.mxu0 %v1999
        %v2916 = vpop.f32.mrf.mxu0
        %v2917 = vadd.f32 %v865, %v2916
        %v2918 = vpop.f32.mrf.mxu0
        %v2919 = vadd.f32 %v865, %v2918
        %v2920 = vpop.f32.mrf.mxu0
        %v2921 = vadd.f32 %v870, %v2920
        %v2922 = vpop.f32.mrf.mxu0
        %v2923 = vadd.f32 %v870, %v2922
        %2924 = vdwg.mxu0
        %2925 = vmatprep.subr.bf16.mxu0 0
        %2926 = vmatpush1.bf16.msra.mxu0 0
        %2927 = vmatprep.subr.bf16.mxu0 0
        %2928 = vmatpush1.bf16.msra.mxu0 0
        %2929 = vmatprep.subr.bf16.mxu0 0
        %2930 = vmatpush1.bf16.msra.mxu0 0
        %2931 = vmatprep.subr.bf16.mxu0 0
        %2932 = vmatpush1.bf16.msra.mxu0 0
        %2933 = vmatprep.subr.bf16.mxu0 %v2108
        %2934 = vmatpush1.bf16.msra.mxu0 %v2105
        %2935 = vmatprep.subr.bf16.mxu0 %v1712
        %2936 = vmatpush1.bf16.msra.mxu0 %v1711
        %2937 = vmatprep.subr.bf16.mxu0 %v1648
        %2938 = vmatpush1.bf16.msra.mxu0 %v1647
        %2939 = vmatprep.subr.bf16.mxu0 %v1584
        %2940 = vmatpush1.bf16.msra.mxu0 %v1583
        %2941 = vmatprep.subr.bf16.mxu0 0
        %2942 = vmatpush2.bf16.msra.mxu0 0
        %2943 = vmatprep.subr.bf16.mxu0 0
        %2944 = vmatpush2.bf16.msra.mxu0 0
        %2945 = vmatprep.subr.bf16.mxu0 0
        %2946 = vmatpush2.bf16.msra.mxu0 0
        %2947 = vmatprep.subr.bf16.mxu0 0
        %2948 = vmatpush2.bf16.msra.mxu0 0
        %2949 = vmatprep.subr.bf16.mxu0 0
        %2950 = vmatpush2.bf16.msra.mxu0 0
        %2951 = vmatprep.subr.bf16.mxu0 0
        %2952 = vmatpush2.bf16.msra.mxu0 0
        %2953 = vmatprep.subr.bf16.mxu0 0
        %2954 = vmatpush2.bf16.msra.mxu0 0
        %2955 = vmatprep.subr.bf16.mxu0 0
        %2956 = vmatpush2.bf16.msra.mxu0 0
        %2957 = vmatprep.mubr.bf16.mxu0 0
        %2958 = vmatmul.mubr.bf16.gmra.mxu0 %v1999
        %v2959 = vpop.f32.mrf.mxu0
        %v2960 = vadd.f32 %v865, %v2959
        %v2961 = vpop.f32.mrf.mxu0
        %v2962 = vadd.f32 %v865, %v2961
        %v2963 = vpop.f32.mrf.mxu0
        %v2964 = vadd.f32 %v870, %v2963
        %v2965 = vpop.f32.mrf.mxu0
        %v2966 = vadd.f32 %v870, %v2965
        %2967 = vdwg.mxu0
        %2968 = vmatprep.subr.bf16.mxu0 0
        %2969 = vmatpush1.bf16.msra.mxu0 0
        %2970 = vmatprep.subr.bf16.mxu0 0
        %2971 = vmatpush1.bf16.msra.mxu0 0
        %2972 = vmatprep.subr.bf16.mxu0 0
        %2973 = vmatpush1.bf16.msra.mxu0 0
        %2974 = vmatprep.subr.bf16.mxu0 0
        %2975 = vmatpush1.bf16.msra.mxu0 0
        %2976 = vmatprep.subr.bf16.mxu0 %v2114
        %2977 = vmatpush1.bf16.msra.mxu0 %v2111
        %2978 = vmatprep.subr.bf16.mxu0 %v1714
        %2979 = vmatpush1.bf16.msra.mxu0 %v1713
        %2980 = vmatprep.subr.bf16.mxu0 %v1650
        %2981 = vmatpush1.bf16.msra.mxu0 %v1649
        %2982 = vmatprep.subr.bf16.mxu0 %v1586
        %2983 = vmatpush1.bf16.msra.mxu0 %v1585
        %2984 = vmatprep.subr.bf16.mxu0 0
        %2985 = vmatpush2.bf16.msra.mxu0 0
        %2986 = vmatprep.subr.bf16.mxu0 0
        %2987 = vmatpush2.bf16.msra.mxu0 0
        %2988 = vmatprep.subr.bf16.mxu0 0
        %2989 = vmatpush2.bf16.msra.mxu0 0
        %2990 = vmatprep.subr.bf16.mxu0 0
        %2991 = vmatpush2.bf16.msra.mxu0 0
        %2992 = vmatprep.subr.bf16.mxu0 0
        %2993 = vmatpush2.bf16.msra.mxu0 0
        %2994 = vmatprep.subr.bf16.mxu0 0
        %2995 = vmatpush2.bf16.msra.mxu0 0
        %2996 = vmatprep.subr.bf16.mxu0 0
        %2997 = vmatpush2.bf16.msra.mxu0 0
        %2998 = vmatprep.subr.bf16.mxu0 0
        %2999 = vmatpush2.bf16.msra.mxu0 0
        %3000 = vmatprep.mubr.bf16.mxu0 0
        %3001 = vmatmul.mubr.bf16.gmra.mxu0 %v1999
        %v3002 = vpop.f32.mrf.mxu0
        %v3003 = vadd.f32 %v865, %v3002
        %v3004 = vpop.f32.mrf.mxu0
        %v3005 = vadd.f32 %v865, %v3004
        %v3006 = vpop.f32.mrf.mxu0
        %v3007 = vadd.f32 %v870, %v3006
        %v3008 = vpop.f32.mrf.mxu0
        %v3009 = vadd.f32 %v870, %v3008
        %3010 = vdwg.mxu0
        %3011 = vmatprep.subr.bf16.mxu0 0
        %3012 = vmatpush1.bf16.msra.mxu0 0
        %3013 = vmatprep.subr.bf16.mxu0 0
        %3014 = vmatpush1.bf16.msra.mxu0 0
        %3015 = vmatprep.subr.bf16.mxu0 0
        %3016 = vmatpush1.bf16.msra.mxu0 0
        %3017 = vmatprep.subr.bf16.mxu0 0
        %3018 = vmatpush1.bf16.msra.mxu0 0
        %3019 = vmatprep.subr.bf16.mxu0 %v2120
        %3020 = vmatpush1.bf16.msra.mxu0 %v2117
        %3021 = vmatprep.subr.bf16.mxu0 %v1716
        %3022 = vmatpush1.bf16.msra.mxu0 %v1715
        %3023 = vmatprep.subr.bf16.mxu0 %v1652
        %3024 = vmatpush1.bf16.msra.mxu0 %v1651
        %3025 = vmatprep.subr.bf16.mxu0 %v1588
        %3026 = vmatpush1.bf16.msra.mxu0 %v1587
        %3027 = vmatprep.subr.bf16.mxu0 0
        %3028 = vmatpush2.bf16.msra.mxu0 0
        %3029 = vmatprep.subr.bf16.mxu0 0
        %3030 = vmatpush2.bf16.msra.mxu0 0
        %3031 = vmatprep.subr.bf16.mxu0 0
        %3032 = vmatpush2.bf16.msra.mxu0 0
        %3033 = vmatprep.subr.bf16.mxu0 0
        %3034 = vmatpush2.bf16.msra.mxu0 0
        %3035 = vmatprep.subr.bf16.mxu0 0
        %3036 = vmatpush2.bf16.msra.mxu0 0
        %3037 = vmatprep.subr.bf16.mxu0 0
        %3038 = vmatpush2.bf16.msra.mxu0 0
        %3039 = vmatprep.subr.bf16.mxu0 0
        %3040 = vmatpush2.bf16.msra.mxu0 0
        %3041 = vmatprep.subr.bf16.mxu0 0
        %3042 = vmatpush2.bf16.msra.mxu0 0
        %3043 = vmatprep.mubr.bf16.mxu0 0
        %3044 = vmatmul.mubr.bf16.gmra.mxu0 %v1999
        %v3045 = vpop.f32.mrf.mxu0
        %v3046 = vadd.f32 %v865, %v3045
        %v3047 = vpop.f32.mrf.mxu0
        %v3048 = vadd.f32 %v865, %v3047
        %v3049 = vpop.f32.mrf.mxu0
        %v3050 = vadd.f32 %v870, %v3049
        %v3051 = vpop.f32.mrf.mxu0
        %v3052 = vadd.f32 %v870, %v3051
        %3053 = vdwg.mxu0
        %3054 = vmatprep.subr.bf16.mxu0 0
        %3055 = vmatpush1.bf16.msra.mxu0 0
        %3056 = vmatprep.subr.bf16.mxu0 0
        %3057 = vmatpush1.bf16.msra.mxu0 0
        %3058 = vmatprep.subr.bf16.mxu0 0
        %3059 = vmatpush1.bf16.msra.mxu0 0
        %3060 = vmatprep.subr.bf16.mxu0 0
        %3061 = vmatpush1.bf16.msra.mxu0 0
        %3062 = vmatprep.subr.bf16.mxu0 %v2126
        %3063 = vmatpush1.bf16.msra.mxu0 %v2123
        %3064 = vmatprep.subr.bf16.mxu0 %v1718
        %3065 = vmatpush1.bf16.msra.mxu0 %v1717
        %3066 = vmatprep.subr.bf16.mxu0 %v1654
        %3067 = vmatpush1.bf16.msra.mxu0 %v1653
        %3068 = vmatprep.subr.bf16.mxu0 %v1590
        %3069 = vmatpush1.bf16.msra.mxu0 %v1589
        %3070 = vmatprep.subr.bf16.mxu0 0
        %3071 = vmatpush2.bf16.msra.mxu0 0
        %3072 = vmatprep.subr.bf16.mxu0 0
        %3073 = vmatpush2.bf16.msra.mxu0 0
        %3074 = vmatprep.subr.bf16.mxu0 0
        %3075 = vmatpush2.bf16.msra.mxu0 0
        %3076 = vmatprep.subr.bf16.mxu0 0
        %3077 = vmatpush2.bf16.msra.mxu0 0
        %3078 = vmatprep.subr.bf16.mxu0 0
        %3079 = vmatpush2.bf16.msra.mxu0 0
        %3080 = vmatprep.subr.bf16.mxu0 0
        %3081 = vmatpush2.bf16.msra.mxu0 0
        %3082 = vmatprep.subr.bf16.mxu0 0
        %3083 = vmatpush2.bf16.msra.mxu0 0
        %3084 = vmatprep.subr.bf16.mxu0 0
        %3085 = vmatpush2.bf16.msra.mxu0 0
        %3086 = vmatprep.mubr.bf16.mxu0 0
        %3087 = vmatmul.mubr.bf16.gmra.mxu0 %v1999
        %v3088 = vpop.f32.mrf.mxu0
        %v3089 = vadd.f32 %v865, %v3088
        %v3090 = vpop.f32.mrf.mxu0
        %v3091 = vadd.f32 %v865, %v3090
        %v3092 = vpop.f32.mrf.mxu0
        %v3093 = vadd.f32 %v870, %v3092
        %v3094 = vpop.f32.mrf.mxu0
        %v3095 = vadd.f32 %v870, %v3094
        %3096 = vdwg.mxu0
        %3097 = vmatprep.subr.bf16.mxu0 0
        %3098 = vmatpush1.bf16.msra.mxu0 0
        %3099 = vmatprep.subr.bf16.mxu0 0
        %3100 = vmatpush1.bf16.msra.mxu0 0
        %3101 = vmatprep.subr.bf16.mxu0 0
        %3102 = vmatpush1.bf16.msra.mxu0 0
        %3103 = vmatprep.subr.bf16.mxu0 0
        %3104 = vmatpush1.bf16.msra.mxu0 0
        %3105 = vmatprep.subr.bf16.mxu0 %v2132
        %3106 = vmatpush1.bf16.msra.mxu0 %v2129
        %3107 = vmatprep.subr.bf16.mxu0 %v1720
        %3108 = vmatpush1.bf16.msra.mxu0 %v1719
        %3109 = vmatprep.subr.bf16.mxu0 %v1656
        %3110 = vmatpush1.bf16.msra.mxu0 %v1655
        %3111 = vmatprep.subr.bf16.mxu0 %v1592
        %3112 = vmatpush1.bf16.msra.mxu0 %v1591
        %3113 = vmatprep.subr.bf16.mxu0 0
        %3114 = vmatpush2.bf16.msra.mxu0 0
        %3115 = vmatprep.subr.bf16.mxu0 0
        %3116 = vmatpush2.bf16.msra.mxu0 0
        %3117 = vmatprep.subr.bf16.mxu0 0
        %3118 = vmatpush2.bf16.msra.mxu0 0
        %3119 = vmatprep.subr.bf16.mxu0 0
        %3120 = vmatpush2.bf16.msra.mxu0 0
        %3121 = vmatprep.subr.bf16.mxu0 0
        %3122 = vmatpush2.bf16.msra.mxu0 0
        %3123 = vmatprep.subr.bf16.mxu0 0
        %3124 = vmatpush2.bf16.msra.mxu0 0
        %3125 = vmatprep.subr.bf16.mxu0 0
        %3126 = vmatpush2.bf16.msra.mxu0 0
        %3127 = vmatprep.subr.bf16.mxu0 0
        %3128 = vmatpush2.bf16.msra.mxu0 0
        %3129 = vmatprep.mubr.bf16.mxu0 0
        %3130 = vmatmul.mubr.bf16.gmra.mxu0 %v1999
        %v3131 = vpop.f32.mrf.mxu0
        %v3132 = vadd.f32 %v865, %v3131
        %v3133 = vpop.f32.mrf.mxu0
        %v3134 = vadd.f32 %v865, %v3133
        %v3135 = vpop.f32.mrf.mxu0
        %v3136 = vadd.f32 %v870, %v3135
        %v3137 = vpop.f32.mrf.mxu0
        %v3138 = vadd.f32 %v870, %v3137
        %3139 = vdwg.mxu0
        %3140 = vmatprep.subr.bf16.mxu0 0
        %3141 = vmatpush1.bf16.msra.mxu0 0
        %3142 = vmatprep.subr.bf16.mxu0 0
        %3143 = vmatpush1.bf16.msra.mxu0 0
        %3144 = vmatprep.subr.bf16.mxu0 0
        %3145 = vmatpush1.bf16.msra.mxu0 0
        %3146 = vmatprep.subr.bf16.mxu0 0
        %3147 = vmatpush1.bf16.msra.mxu0 0
        %3148 = vmatprep.subr.bf16.mxu0 %v2138
        %3149 = vmatpush1.bf16.msra.mxu0 %v2135
        %3150 = vmatprep.subr.bf16.mxu0 %v1722
        %3151 = vmatpush1.bf16.msra.mxu0 %v1721
        %3152 = vmatprep.subr.bf16.mxu0 %v1658
        %3153 = vmatpush1.bf16.msra.mxu0 %v1657
        %3154 = vmatprep.subr.bf16.mxu0 %v1594
        %3155 = vmatpush1.bf16.msra.mxu0 %v1593
        %3156 = vmatprep.subr.bf16.mxu0 0
        %3157 = vmatpush2.bf16.msra.mxu0 0
        %3158 = vmatprep.subr.bf16.mxu0 0
        %3159 = vmatpush2.bf16.msra.mxu0 0
        %3160 = vmatprep.subr.bf16.mxu0 0
        %3161 = vmatpush2.bf16.msra.mxu0 0
        %3162 = vmatprep.subr.bf16.mxu0 0
        %3163 = vmatpush2.bf16.msra.mxu0 0
        %3164 = vmatprep.subr.bf16.mxu0 0
        %3165 = vmatpush2.bf16.msra.mxu0 0
        %3166 = vmatprep.subr.bf16.mxu0 0
        %3167 = vmatpush2.bf16.msra.mxu0 0
        %3168 = vmatprep.subr.bf16.mxu0 0
        %3169 = vmatpush2.bf16.msra.mxu0 0
        %3170 = vmatprep.subr.bf16.mxu0 0
        %3171 = vmatpush2.bf16.msra.mxu0 0
        %3172 = vmatprep.mubr.bf16.mxu0 0
        %3173 = vmatmul.mubr.bf16.gmra.mxu0 %v1999
        %v3174 = vpop.f32.mrf.mxu0
        %v3175 = vadd.f32 %v865, %v3174
        %v3176 = vpop.f32.mrf.mxu0
        %v3177 = vadd.f32 %v865, %v3176
        %v3178 = vpop.f32.mrf.mxu0
        %v3179 = vadd.f32 %v870, %v3178
        %v3180 = vpop.f32.mrf.mxu0
        %v3181 = vadd.f32 %v870, %v3180
        %3182 = vdwg.mxu0
        %3183 = vmatprep.subr.bf16.mxu0 0
        %3184 = vmatpush1.bf16.msra.mxu0 0
        %3185 = vmatprep.subr.bf16.mxu0 0
        %3186 = vmatpush1.bf16.msra.mxu0 0
        %3187 = vmatprep.subr.bf16.mxu0 0
        %3188 = vmatpush1.bf16.msra.mxu0 0
        %3189 = vmatprep.subr.bf16.mxu0 0
        %3190 = vmatpush1.bf16.msra.mxu0 0
        %3191 = vmatprep.subr.bf16.mxu0 %v2144
        %3192 = vmatpush1.bf16.msra.mxu0 %v2141
        %3193 = vmatprep.subr.bf16.mxu0 %v1724
        %3194 = vmatpush1.bf16.msra.mxu0 %v1723
        %3195 = vmatprep.subr.bf16.mxu0 %v1660
        %3196 = vmatpush1.bf16.msra.mxu0 %v1659
        %3197 = vmatprep.subr.bf16.mxu0 %v1596
        %3198 = vmatpush1.bf16.msra.mxu0 %v1595
        %3199 = vmatprep.subr.bf16.mxu0 0
        %3200 = vmatpush2.bf16.msra.mxu0 0
        %3201 = vmatprep.subr.bf16.mxu0 0
        %3202 = vmatpush2.bf16.msra.mxu0 0
        %3203 = vmatprep.subr.bf16.mxu0 0
        %3204 = vmatpush2.bf16.msra.mxu0 0
        %3205 = vmatprep.subr.bf16.mxu0 0
        %3206 = vmatpush2.bf16.msra.mxu0 0
        %3207 = vmatprep.subr.bf16.mxu0 0
        %3208 = vmatpush2.bf16.msra.mxu0 0
        %3209 = vmatprep.subr.bf16.mxu0 0
        %3210 = vmatpush2.bf16.msra.mxu0 0
        %3211 = vmatprep.subr.bf16.mxu0 0
        %3212 = vmatpush2.bf16.msra.mxu0 0
        %3213 = vmatprep.subr.bf16.mxu0 0
        %3214 = vmatpush2.bf16.msra.mxu0 0
        %3215 = vmatprep.mubr.bf16.mxu0 0
        %3216 = vmatmul.mubr.bf16.gmra.mxu0 %v1999
        %v3217 = vpop.f32.mrf.mxu0
        %v3218 = vadd.f32 %v865, %v3217
        %v3219 = vpop.f32.mrf.mxu0
        %v3220 = vadd.f32 %v865, %v3219
        %v3221 = vpop.f32.mrf.mxu0
        %v3222 = vadd.f32 %v870, %v3221
        %v3223 = vpop.f32.mrf.mxu0
        %v3224 = vadd.f32 %v870, %v3223
        %3225 = vdwg.mxu0
        %3226 = vmatprep.subr.bf16.mxu0 0
        %3227 = vmatpush1.bf16.msra.mxu0 0
        %3228 = vmatprep.subr.bf16.mxu0 0
        %3229 = vmatpush1.bf16.msra.mxu0 0
        %3230 = vmatprep.subr.bf16.mxu0 0
        %3231 = vmatpush1.bf16.msra.mxu0 0
        %3232 = vmatprep.subr.bf16.mxu0 0
        %3233 = vmatpush1.bf16.msra.mxu0 0
        %3234 = vmatprep.subr.bf16.mxu0 %v2150
        %3235 = vmatpush1.bf16.msra.mxu0 %v2147
        %3236 = vmatprep.subr.bf16.mxu0 %v1726
        %3237 = vmatpush1.bf16.msra.mxu0 %v1725
        %3238 = vmatprep.subr.bf16.mxu0 %v1662
        %3239 = vmatpush1.bf16.msra.mxu0 %v1661
        %3240 = vmatprep.subr.bf16.mxu0 %v1598
        %3241 = vmatpush1.bf16.msra.mxu0 %v1597
        %3242 = vmatprep.subr.bf16.mxu0 0
        %3243 = vmatpush2.bf16.msra.mxu0 0
        %3244 = vmatprep.subr.bf16.mxu0 0
        %3245 = vmatpush2.bf16.msra.mxu0 0
        %3246 = vmatprep.subr.bf16.mxu0 0
        %3247 = vmatpush2.bf16.msra.mxu0 0
        %3248 = vmatprep.subr.bf16.mxu0 0
        %3249 = vmatpush2.bf16.msra.mxu0 0
        %3250 = vmatprep.subr.bf16.mxu0 0
        %3251 = vmatpush2.bf16.msra.mxu0 0
        %3252 = vmatprep.subr.bf16.mxu0 0
        %3253 = vmatpush2.bf16.msra.mxu0 0
        %3254 = vmatprep.subr.bf16.mxu0 0
        %3255 = vmatpush2.bf16.msra.mxu0 0
        %3256 = vmatprep.subr.bf16.mxu0 0
        %3257 = vmatpush2.bf16.msra.mxu0 0
        %3258 = vmatprep.mubr.bf16.mxu0 0
        %3259 = vmatmul.mubr.bf16.gmra.mxu0 %v1999
        %v3260 = vpop.f32.mrf.mxu0
        %v3261 = vadd.f32 %v865, %v3260
        %v3262 = vpop.f32.mrf.mxu0
        %v3263 = vadd.f32 %v865, %v3262
        %v3264 = vpop.f32.mrf.mxu0
        %v3265 = vadd.f32 %v870, %v3264
        %v3266 = vpop.f32.mrf.mxu0
        %v3267 = vadd.f32 %v870, %v3266
        %3268 = vdwg.mxu0
        %3269 = vmatprep.subr.bf16.mxu0 0
        %3270 = vmatpush1.bf16.msra.mxu0 0
        %3271 = vmatprep.subr.bf16.mxu0 0
        %3272 = vmatpush1.bf16.msra.mxu0 0
        %3273 = vmatprep.subr.bf16.mxu0 0
        %3274 = vmatpush1.bf16.msra.mxu0 0
        %3275 = vmatprep.subr.bf16.mxu0 0
        %3276 = vmatpush1.bf16.msra.mxu0 0
        %3277 = vmatprep.subr.bf16.mxu0 %v2156
        %3278 = vmatpush1.bf16.msra.mxu0 %v2153
        %3279 = vmatprep.subr.bf16.mxu0 %v1728
        %3280 = vmatpush1.bf16.msra.mxu0 %v1727
        %3281 = vmatprep.subr.bf16.mxu0 %v1664
        %3282 = vmatpush1.bf16.msra.mxu0 %v1663
        %3283 = vmatprep.subr.bf16.mxu0 %v1600
        %3284 = vmatpush1.bf16.msra.mxu0 %v1599
        %3285 = vmatprep.subr.bf16.mxu0 0
        %3286 = vmatpush2.bf16.msra.mxu0 0
        %3287 = vmatprep.subr.bf16.mxu0 0
        %3288 = vmatpush2.bf16.msra.mxu0 0
        %3289 = vmatprep.subr.bf16.mxu0 0
        %3290 = vmatpush2.bf16.msra.mxu0 0
        %3291 = vmatprep.subr.bf16.mxu0 0
        %3292 = vmatpush2.bf16.msra.mxu0 0
        %3293 = vmatprep.subr.bf16.mxu0 0
        %3294 = vmatpush2.bf16.msra.mxu0 0
        %3295 = vmatprep.subr.bf16.mxu0 0
        %3296 = vmatpush2.bf16.msra.mxu0 0
        %3297 = vmatprep.subr.bf16.mxu0 0
        %3298 = vmatpush2.bf16.msra.mxu0 0
        %3299 = vmatprep.subr.bf16.mxu0 0
        %3300 = vmatpush2.bf16.msra.mxu0 0
        %3301 = vmatprep.mubr.bf16.mxu0 0
        %3302 = vmatmul.mubr.bf16.gmra.mxu0 %v1999
        %v3303 = vpop.f32.mrf.mxu0
        %v3304 = vadd.f32 %v865, %v3303
        %v3305 = vpop.f32.mrf.mxu0
        %v3306 = vadd.f32 %v865, %v3305
        %v3307 = vpop.f32.mrf.mxu0
        %v3308 = vadd.f32 %v870, %v3307
        %v3309 = vpop.f32.mrf.mxu0
        %v3310 = vadd.f32 %v870, %v3309
        %3311 = vdwg.mxu0
        %3312 = vmatprep.subr.bf16.mxu0 0
        %3313 = vmatpush1.bf16.msra.mxu0 0
        %3314 = vmatprep.subr.bf16.mxu0 0
        %3315 = vmatpush1.bf16.msra.mxu0 0
        %3316 = vmatprep.subr.bf16.mxu0 0
        %3317 = vmatpush1.bf16.msra.mxu0 0
        %3318 = vmatprep.subr.bf16.mxu0 0
        %3319 = vmatpush1.bf16.msra.mxu0 0
        %3320 = vmatprep.subr.bf16.mxu0 %v2162
        %3321 = vmatpush1.bf16.msra.mxu0 %v2159
        %3322 = vmatprep.subr.bf16.mxu0 %v1730
        %3323 = vmatpush1.bf16.msra.mxu0 %v1729
        %3324 = vmatprep.subr.bf16.mxu0 %v1666
        %3325 = vmatpush1.bf16.msra.mxu0 %v1665
        %3326 = vmatprep.subr.bf16.mxu0 %v1602
        %3327 = vmatpush1.bf16.msra.mxu0 %v1601
        %3328 = vmatprep.subr.bf16.mxu0 0
        %3329 = vmatpush2.bf16.msra.mxu0 0
        %3330 = vmatprep.subr.bf16.mxu0 0
        %3331 = vmatpush2.bf16.msra.mxu0 0
        %3332 = vmatprep.subr.bf16.mxu0 0
        %3333 = vmatpush2.bf16.msra.mxu0 0
        %3334 = vmatprep.subr.bf16.mxu0 0
        %3335 = vmatpush2.bf16.msra.mxu0 0
        %3336 = vmatprep.subr.bf16.mxu0 0
        %3337 = vmatpush2.bf16.msra.mxu0 0
        %3338 = vmatprep.subr.bf16.mxu0 0
        %3339 = vmatpush2.bf16.msra.mxu0 0
        %3340 = vmatprep.subr.bf16.mxu0 0
        %3341 = vmatpush2.bf16.msra.mxu0 0
        %3342 = vmatprep.subr.bf16.mxu0 0
        %3343 = vmatpush2.bf16.msra.mxu0 0
        %3344 = vmatprep.mubr.bf16.mxu0 0
        %3345 = vmatmul.mubr.bf16.gmra.mxu0 %v1999
        %v3346 = vpop.f32.mrf.mxu0
        %v3347 = vadd.f32 %v865, %v3346
        %v3348 = vpop.f32.mrf.mxu0
        %v3349 = vadd.f32 %v865, %v3348
        %v3350 = vpop.f32.mrf.mxu0
        %v3351 = vadd.f32 %v870, %v3350
        %v3352 = vpop.f32.mrf.mxu0
        %v3353 = vadd.f32 %v870, %v3352
        %3354 = vdwg.mxu0
        %3355 = vmatprep.subr.bf16.mxu0 0
        %3356 = vmatpush1.bf16.msra.mxu0 0
        %3357 = vmatprep.subr.bf16.mxu0 0
        %3358 = vmatpush1.bf16.msra.mxu0 0
        %3359 = vmatprep.subr.bf16.mxu0 0
        %3360 = vmatpush1.bf16.msra.mxu0 0
        %3361 = vmatprep.subr.bf16.mxu0 0
        %3362 = vmatpush1.bf16.msra.mxu0 0
        %3363 = vmatprep.subr.bf16.mxu0 %v2168
        %3364 = vmatpush1.bf16.msra.mxu0 %v2165
        %3365 = vmatprep.subr.bf16.mxu0 %v1732
        %3366 = vmatpush1.bf16.msra.mxu0 %v1731
        %3367 = vmatprep.subr.bf16.mxu0 %v1668
        %3368 = vmatpush1.bf16.msra.mxu0 %v1667
        %3369 = vmatprep.subr.bf16.mxu0 %v1604
        %3370 = vmatpush1.bf16.msra.mxu0 %v1603
        %3371 = vmatprep.subr.bf16.mxu0 0
        %3372 = vmatpush2.bf16.msra.mxu0 0
        %3373 = vmatprep.subr.bf16.mxu0 0
        %3374 = vmatpush2.bf16.msra.mxu0 0
        %3375 = vmatprep.subr.bf16.mxu0 0
        %3376 = vmatpush2.bf16.msra.mxu0 0
        %3377 = vmatprep.subr.bf16.mxu0 0
        %3378 = vmatpush2.bf16.msra.mxu0 0
        %3379 = vmatprep.subr.bf16.mxu0 0
        %3380 = vmatpush2.bf16.msra.mxu0 0
        %3381 = vmatprep.subr.bf16.mxu0 0
        %3382 = vmatpush2.bf16.msra.mxu0 0
        %3383 = vmatprep.subr.bf16.mxu0 0
        %3384 = vmatpush2.bf16.msra.mxu0 0
        %3385 = vmatprep.subr.bf16.mxu0 0
        %3386 = vmatpush2.bf16.msra.mxu0 0
        %3387 = vmatprep.mubr.bf16.mxu0 0
        %3388 = vmatmul.mubr.bf16.gmra.mxu0 %v1999
        %v3389 = vpop.f32.mrf.mxu0
        %v3390 = vadd.f32 %v865, %v3389
        %v3391 = vpop.f32.mrf.mxu0
        %v3392 = vadd.f32 %v865, %v3391
        %v3393 = vpop.f32.mrf.mxu0
        %v3394 = vadd.f32 %v870, %v3393
        %v3395 = vpop.f32.mrf.mxu0
        %v3396 = vadd.f32 %v870, %v3395
        %3397 = vdwg.mxu0
        %3398 = vmatprep.subr.bf16.mxu0 0
        %3399 = vmatpush1.bf16.msra.mxu0 0
        %3400 = vmatprep.subr.bf16.mxu0 0
        %3401 = vmatpush1.bf16.msra.mxu0 0
        %3402 = vmatprep.subr.bf16.mxu0 0
        %3403 = vmatpush1.bf16.msra.mxu0 0
        %3404 = vmatprep.subr.bf16.mxu0 0
        %3405 = vmatpush1.bf16.msra.mxu0 0
        %3406 = vmatprep.subr.bf16.mxu0 %v2174
        %3407 = vmatpush1.bf16.msra.mxu0 %v2171
        %3408 = vmatprep.subr.bf16.mxu0 %v1734
        %3409 = vmatpush1.bf16.msra.mxu0 %v1733
        %3410 = vmatprep.subr.bf16.mxu0 %v1670
        %3411 = vmatpush1.bf16.msra.mxu0 %v1669
        %3412 = vmatprep.subr.bf16.mxu0 %v1606
        %3413 = vmatpush1.bf16.msra.mxu0 %v1605
        %3414 = vmatprep.subr.bf16.mxu0 0
        %3415 = vmatpush2.bf16.msra.mxu0 0
        %3416 = vmatprep.subr.bf16.mxu0 0
        %3417 = vmatpush2.bf16.msra.mxu0 0
        %3418 = vmatprep.subr.bf16.mxu0 0
        %3419 = vmatpush2.bf16.msra.mxu0 0
        %3420 = vmatprep.subr.bf16.mxu0 0
        %3421 = vmatpush2.bf16.msra.mxu0 0
        %3422 = vmatprep.subr.bf16.mxu0 0
        %3423 = vmatpush2.bf16.msra.mxu0 0
        %3424 = vmatprep.subr.bf16.mxu0 0
        %3425 = vmatpush2.bf16.msra.mxu0 0
        %3426 = vmatprep.subr.bf16.mxu0 0
        %3427 = vmatpush2.bf16.msra.mxu0 0
        %3428 = vmatprep.subr.bf16.mxu0 0
        %3429 = vmatpush2.bf16.msra.mxu0 0
        %3430 = vmatprep.mubr.bf16.mxu0 0
        %3431 = vmatmul.mubr.bf16.gmra.mxu0 %v1999
        %v3432 = vpop.f32.mrf.mxu0
        %v3433 = vadd.f32 %v865, %v3432
        %v3434 = vpop.f32.mrf.mxu0
        %v3435 = vadd.f32 %v865, %v3434
        %v3436 = vpop.f32.mrf.mxu0
        %v3437 = vadd.f32 %v870, %v3436
        %v3438 = vpop.f32.mrf.mxu0
        %v3439 = vadd.f32 %v870, %v3438
        %3440 = vdwg.mxu0
        %3441 = vmatprep.subr.bf16.mxu0 0
        %3442 = vmatpush1.bf16.msra.mxu0 0
        %3443 = vmatprep.subr.bf16.mxu0 0
        %3444 = vmatpush1.bf16.msra.mxu0 0
        %3445 = vmatprep.subr.bf16.mxu0 0
        %3446 = vmatpush1.bf16.msra.mxu0 0
        %3447 = vmatprep.subr.bf16.mxu0 0
        %3448 = vmatpush1.bf16.msra.mxu0 0
        %3449 = vmatprep.subr.bf16.mxu0 %v2180
        %3450 = vmatpush1.bf16.msra.mxu0 %v2177
        %3451 = vmatprep.subr.bf16.mxu0 %v1736
        %3452 = vmatpush1.bf16.msra.mxu0 %v1735
        %3453 = vmatprep.subr.bf16.mxu0 %v1672
        %3454 = vmatpush1.bf16.msra.mxu0 %v1671
        %3455 = vmatprep.subr.bf16.mxu0 %v1608
        %3456 = vmatpush1.bf16.msra.mxu0 %v1607
        %3457 = vmatprep.subr.bf16.mxu0 0
        %3458 = vmatpush2.bf16.msra.mxu0 0
        %3459 = vmatprep.subr.bf16.mxu0 0
        %3460 = vmatpush2.bf16.msra.mxu0 0
        %3461 = vmatprep.subr.bf16.mxu0 0
        %3462 = vmatpush2.bf16.msra.mxu0 0
        %3463 = vmatprep.subr.bf16.mxu0 0
        %3464 = vmatpush2.bf16.msra.mxu0 0
        %3465 = vmatprep.subr.bf16.mxu0 0
        %3466 = vmatpush2.bf16.msra.mxu0 0
        %3467 = vmatprep.subr.bf16.mxu0 0
        %3468 = vmatpush2.bf16.msra.mxu0 0
        %3469 = vmatprep.subr.bf16.mxu0 0
        %3470 = vmatpush2.bf16.msra.mxu0 0
        %3471 = vmatprep.subr.bf16.mxu0 0
        %3472 = vmatpush2.bf16.msra.mxu0 0
        %3473 = vmatprep.mubr.bf16.mxu0 0
        %3474 = vmatmul.mubr.bf16.gmra.mxu0 %v1999
        %v3475 = vpop.f32.mrf.mxu0
        %v3476 = vadd.f32 %v865, %v3475
        %v3477 = vpop.f32.mrf.mxu0
        %v3478 = vadd.f32 %v865, %v3477
        %v3479 = vpop.f32.mrf.mxu0
        %v3480 = vadd.f32 %v870, %v3479
        %v3481 = vpop.f32.mrf.mxu0
        %v3482 = vadd.f32 %v870, %v3481
        %3483 = vdwg.mxu0
        %3484 = vmatprep.subr.bf16.mxu0 0
        %3485 = vmatpush1.bf16.msra.mxu0 0
        %3486 = vmatprep.subr.bf16.mxu0 0
        %3487 = vmatpush1.bf16.msra.mxu0 0
        %3488 = vmatprep.subr.bf16.mxu0 0
        %3489 = vmatpush1.bf16.msra.mxu0 0
        %3490 = vmatprep.subr.bf16.mxu0 0
        %3491 = vmatpush1.bf16.msra.mxu0 0
        %3492 = vmatprep.subr.bf16.mxu0 %v2186
        %3493 = vmatpush1.bf16.msra.mxu0 %v2183
        %3494 = vmatprep.subr.bf16.mxu0 %v1738
        %3495 = vmatpush1.bf16.msra.mxu0 %v1737
        %3496 = vmatprep.subr.bf16.mxu0 %v1674
        %3497 = vmatpush1.bf16.msra.mxu0 %v1673
        %3498 = vmatprep.subr.bf16.mxu0 %v1610
        %3499 = vmatpush1.bf16.msra.mxu0 %v1609
        %3500 = vmatprep.subr.bf16.mxu0 0
        %3501 = vmatpush2.bf16.msra.mxu0 0
        %3502 = vmatprep.subr.bf16.mxu0 0
        %3503 = vmatpush2.bf16.msra.mxu0 0
        %3504 = vmatprep.subr.bf16.mxu0 0
        %3505 = vmatpush2.bf16.msra.mxu0 0
        %3506 = vmatprep.subr.bf16.mxu0 0
        %3507 = vmatpush2.bf16.msra.mxu0 0
        %3508 = vmatprep.subr.bf16.mxu0 0
        %3509 = vmatpush2.bf16.msra.mxu0 0
        %3510 = vmatprep.subr.bf16.mxu0 0
        %3511 = vmatpush2.bf16.msra.mxu0 0
        %3512 = vmatprep.subr.bf16.mxu0 0
        %3513 = vmatpush2.bf16.msra.mxu0 0
        %3514 = vmatprep.subr.bf16.mxu0 0
        %3515 = vmatpush2.bf16.msra.mxu0 0
        %3516 = vmatprep.mubr.bf16.mxu0 0
        %3517 = vmatmul.mubr.bf16.gmra.mxu0 %v1999
        %v3518 = vpop.f32.mrf.mxu0
        %v3519 = vadd.f32 %v865, %v3518
        %v3520 = vpop.f32.mrf.mxu0
        %v3521 = vadd.f32 %v865, %v3520
        %v3522 = vpop.f32.mrf.mxu0
        %v3523 = vadd.f32 %v870, %v3522
        %v3524 = vpop.f32.mrf.mxu0
        %v3525 = vadd.f32 %v870, %v3524
        %3526 = vdwg.mxu0
        %3527 = vmatprep.subr.bf16.mxu0 0
        %3528 = vmatpush1.bf16.msra.mxu0 0
        %3529 = vmatprep.subr.bf16.mxu0 0
        %3530 = vmatpush1.bf16.msra.mxu0 0
        %3531 = vmatprep.subr.bf16.mxu0 0
        %3532 = vmatpush1.bf16.msra.mxu0 0
        %3533 = vmatprep.subr.bf16.mxu0 0
        %3534 = vmatpush1.bf16.msra.mxu0 0
        %3535 = vmatprep.subr.bf16.mxu0 %v2192
        %3536 = vmatpush1.bf16.msra.mxu0 %v2189
        %3537 = vmatprep.subr.bf16.mxu0 %v1740
        %3538 = vmatpush1.bf16.msra.mxu0 %v1739
        %3539 = vmatprep.subr.bf16.mxu0 %v1676
        %3540 = vmatpush1.bf16.msra.mxu0 %v1675
        %3541 = vmatprep.subr.bf16.mxu0 %v1612
        %3542 = vmatpush1.bf16.msra.mxu0 %v1611
        %3543 = vmatprep.subr.bf16.mxu0 0
        %3544 = vmatpush2.bf16.msra.mxu0 0
        %3545 = vmatprep.subr.bf16.mxu0 0
        %3546 = vmatpush2.bf16.msra.mxu0 0
        %3547 = vmatprep.subr.bf16.mxu0 0
        %3548 = vmatpush2.bf16.msra.mxu0 0
        %3549 = vmatprep.subr.bf16.mxu0 0
        %3550 = vmatpush2.bf16.msra.mxu0 0
        %3551 = vmatprep.subr.bf16.mxu0 0
        %3552 = vmatpush2.bf16.msra.mxu0 0
        %3553 = vmatprep.subr.bf16.mxu0 0
        %3554 = vmatpush2.bf16.msra.mxu0 0
        %3555 = vmatprep.subr.bf16.mxu0 0
        %3556 = vmatpush2.bf16.msra.mxu0 0
        %3557 = vmatprep.subr.bf16.mxu0 0
        %3558 = vmatpush2.bf16.msra.mxu0 0
        %3559 = vmatprep.mubr.bf16.mxu0 0
        %3560 = vmatmul.mubr.bf16.gmra.mxu0 %v1999
        %v3561 = vpop.f32.mrf.mxu0
        %v3562 = vadd.f32 %v865, %v3561
        %v3563 = vpop.f32.mrf.mxu0
        %v3564 = vadd.f32 %v865, %v3563
        %v3565 = vpop.f32.mrf.mxu0
        %v3566 = vadd.f32 %v870, %v3565
        %v3567 = vpop.f32.mrf.mxu0
        %v3568 = vadd.f32 %v870, %v3567
        %3569 = vdwg.mxu0
        %3570 = vst [vmem:[%s630] sm:$0xff] %v2229
        %3571 = vst [vmem:[%s630 + $0x8] sm:$0xff] %v2231
        %3572 = vst [vmem:[%s630 + $0x10] sm:$0xff] %v2272
        %3573 = vst [vmem:[%s630 + $0x18] sm:$0xff] %v2274
        %3574 = vst [vmem:[%s630 + $0x20] sm:$0xff] %v2315
        %3575 = vst [vmem:[%s630 + $0x28] sm:$0xff] %v2317
        %3576 = vst [vmem:[%s630 + $0x30] sm:$0xff] %v2358
        %3577 = vst [vmem:[%s630 + $0x38] sm:$0xff] %v2360
        %3578 = vst [vmem:[%s630 + $0x40] sm:$0xff] %v2401
        %3579 = vst [vmem:[%s630 + $0x48] sm:$0xff] %v2403
        %3580 = vst [vmem:[%s630 + $0x50] sm:$0xff] %v2444
        %3581 = vst [vmem:[%s630 + $0x58] sm:$0xff] %v2446
        %3582 = vst [vmem:[%s630 + $0x60] sm:$0xff] %v2487
        %3583 = vst [vmem:[%s630 + $0x68] sm:$0xff] %v2489
        %3584 = vst [vmem:[%s630 + $0x70] sm:$0xff] %v2530
        %3585 = vst [vmem:[%s630 + $0x78] sm:$0xff] %v2532
        %3586 = vst [vmem:[%s630 + $0x80] sm:$0xff] %v2573
        %3587 = vst [vmem:[%s630 + $0x88] sm:$0xff] %v2575
        %3588 = vst [vmem:[%s630 + $0x90] sm:$0xff] %v2616
        %3589 = vst [vmem:[%s630 + $0x98] sm:$0xff] %v2618
        %3590 = vst [vmem:[%s630 + $0xa0] sm:$0xff] %v2659
        %3591 = vst [vmem:[%s630 + $0xa8] sm:$0xff] %v2661
        %3592 = vst [vmem:[%s630 + $0xb0] sm:$0xff] %v2702
        %3593 = vst [vmem:[%s630 + $0xb8] sm:$0xff] %v2704
        %3594 = vst [vmem:[%s630 + $0xc0] sm:$0xff] %v2745
        %3595 = vst [vmem:[%s630 + $0xc8] sm:$0xff] %v2747
        %3596 = vst [vmem:[%s630 + $0xd0] sm:$0xff] %v2788
        %3597 = vst [vmem:[%s630 + $0xd8] sm:$0xff] %v2790
        %3598 = vst [vmem:[%s630 + $0xe0] sm:$0xff] %v2831
        %3599 = vst [vmem:[%s630 + $0xe8] sm:$0xff] %v2833
        %3600 = vst [vmem:[%s630 + $0xf0] sm:$0xff] %v2874
        %3601 = vst [vmem:[%s630 + $0xf8] sm:$0xff] %v2876
        %3602 = vst [vmem:[%s630 + $0x100] sm:$0xff] %v2917
        %3603 = vst [vmem:[%s630 + $0x108] sm:$0xff] %v2919
        %3604 = vst [vmem:[%s630 + $0x110] sm:$0xff] %v2960
        %3605 = vst [vmem:[%s630 + $0x118] sm:$0xff] %v2962
        %3606 = vst [vmem:[%s630 + $0x120] sm:$0xff] %v3003
        %3607 = vst [vmem:[%s630 + $0x128] sm:$0xff] %v3005
        %3608 = vst [vmem:[%s630 + $0x130] sm:$0xff] %v3046
        %3609 = vst [vmem:[%s630 + $0x138] sm:$0xff] %v3048
        %3610 = vst [vmem:[%s630 + $0x140] sm:$0xff] %v3089
        %3611 = vst [vmem:[%s630 + $0x148] sm:$0xff] %v3091
        %3612 = vst [vmem:[%s630 + $0x150] sm:$0xff] %v3132
        %3613 = vst [vmem:[%s630 + $0x158] sm:$0xff] %v3134
        %3614 = vst [vmem:[%s630 + $0x160] sm:$0xff] %v3175
        %3615 = vst [vmem:[%s630 + $0x168] sm:$0xff] %v3177
        %3616 = vst [vmem:[%s630 + $0x170] sm:$0xff] %v3218
        %3617 = vst [vmem:[%s630 + $0x178] sm:$0xff] %v3220
        %3618 = vst [vmem:[%s630 + $0x180] sm:$0xff] %v3261
        %3619 = vst [vmem:[%s630 + $0x188] sm:$0xff] %v3263
        %3620 = vst [vmem:[%s630 + $0x190] sm:$0xff] %v3304
        %3621 = vst [vmem:[%s630 + $0x198] sm:$0xff] %v3306
        %3622 = vst [vmem:[%s630 + $0x1a0] sm:$0xff] %v3347
        %3623 = vst [vmem:[%s630 + $0x1a8] sm:$0xff] %v3349
        %3624 = vst [vmem:[%s630 + $0x1b0] sm:$0xff] %v3390
        %3625 = vst [vmem:[%s630 + $0x1b8] sm:$0xff] %v3392
        %3626 = vst [vmem:[%s630 + $0x1c0] sm:$0xff] %v3433
        %3627 = vst [vmem:[%s630 + $0x1c8] sm:$0xff] %v3435
        %3628 = vst [vmem:[%s630 + $0x1d0] sm:$0xff] %v3476
        %3629 = vst [vmem:[%s630 + $0x1d8] sm:$0xff] %v3478
        %3630 = vst [vmem:[%s630 + $0x1e0] sm:$0xff] %v3519
        %3631 = vst [vmem:[%s630 + $0x1e8] sm:$0xff] %v3521
        %3632 = vst [vmem:[%s630 + $0x1f0] sm:$0xff] %v3562
        %3633 = vst [vmem:[%s630 + $0x1f8] sm:$0xff] %v3564
        %3634 = vst [vmem:[%s630 + $0x200] sm:$0xff] %v2233
        %3635 = vst [vmem:[%s630 + $0x208] sm:$0xff] %v2235
        %3636 = vst [vmem:[%s630 + $0x210] sm:$0xff] %v2276
        %3637 = vst [vmem:[%s630 + $0x218] sm:$0xff] %v2278
        %3638 = vst [vmem:[%s630 + $0x220] sm:$0xff] %v2319
        %3639 = vst [vmem:[%s630 + $0x228] sm:$0xff] %v2321
        %3640 = vst [vmem:[%s630 + $0x230] sm:$0xff] %v2362
        %3641 = vst [vmem:[%s630 + $0x238] sm:$0xff] %v2364
        %3642 = vst [vmem:[%s630 + $0x240] sm:$0xff] %v2405
        %3643 = vst [vmem:[%s630 + $0x248] sm:$0xff] %v2407
        %3644 = vst [vmem:[%s630 + $0x250] sm:$0xff] %v2448
        %3645 = vst [vmem:[%s630 + $0x258] sm:$0xff] %v2450
        %3646 = vst [vmem:[%s630 + $0x260] sm:$0xff] %v2491
        %3647 = vst [vmem:[%s630 + $0x268] sm:$0xff] %v2493
        %3648 = vst [vmem:[%s630 + $0x270] sm:$0xff] %v2534
        %3649 = vst [vmem:[%s630 + $0x278] sm:$0xff] %v2536
        %3650 = vst [vmem:[%s630 + $0x280] sm:$0xff] %v2577
        %3651 = vst [vmem:[%s630 + $0x288] sm:$0xff] %v2579
        %3652 = vst [vmem:[%s630 + $0x290] sm:$0xff] %v2620
        %3653 = vst [vmem:[%s630 + $0x298] sm:$0xff] %v2622
        %3654 = vst [vmem:[%s630 + $0x2a0] sm:$0xff] %v2663
        %3655 = vst [vmem:[%s630 + $0x2a8] sm:$0xff] %v2665
        %3656 = vst [vmem:[%s630 + $0x2b0] sm:$0xff] %v2706
        %3657 = vst [vmem:[%s630 + $0x2b8] sm:$0xff] %v2708
        %3658 = vst [vmem:[%s630 + $0x2c0] sm:$0xff] %v2749
        %3659 = vst [vmem:[%s630 + $0x2c8] sm:$0xff] %v2751
        %3660 = vst [vmem:[%s630 + $0x2d0] sm:$0xff] %v2792
        %3661 = vst [vmem:[%s630 + $0x2d8] sm:$0xff] %v2794
        %3662 = vst [vmem:[%s630 + $0x2e0] sm:$0xff] %v2835
        %3663 = vst [vmem:[%s630 + $0x2e8] sm:$0xff] %v2837
        %3664 = vst [vmem:[%s630 + $0x2f0] sm:$0xff] %v2878
        %3665 = vst [vmem:[%s630 + $0x2f8] sm:$0xff] %v2880
        %3666 = vst [vmem:[%s630 + $0x300] sm:$0xff] %v2921
        %3667 = vst [vmem:[%s630 + $0x308] sm:$0xff] %v2923
        %3668 = vst [vmem:[%s630 + $0x310] sm:$0xff] %v2964
        %3669 = vst [vmem:[%s630 + $0x318] sm:$0xff] %v2966
        %3670 = vst [vmem:[%s630 + $0x320] sm:$0xff] %v3007
        %3671 = vst [vmem:[%s630 + $0x328] sm:$0xff] %v3009
        %3672 = vst [vmem:[%s630 + $0x330] sm:$0xff] %v3050
        %3673 = vst [vmem:[%s630 + $0x338] sm:$0xff] %v3052
        %3674 = vst [vmem:[%s630 + $0x340] sm:$0xff] %v3093
        %3675 = vst [vmem:[%s630 + $0x348] sm:$0xff] %v3095
        %3676 = vst [vmem:[%s630 + $0x350] sm:$0xff] %v3136
        %3677 = vst [vmem:[%s630 + $0x358] sm:$0xff] %v3138
        %3678 = vst [vmem:[%s630 + $0x360] sm:$0xff] %v3179
        %3679 = vst [vmem:[%s630 + $0x368] sm:$0xff] %v3181
        %3680 = vst [vmem:[%s630 + $0x370] sm:$0xff] %v3222
        %3681 = vst [vmem:[%s630 + $0x378] sm:$0xff] %v3224
        %3682 = vst [vmem:[%s630 + $0x380] sm:$0xff] %v3265
        %3683 = vst [vmem:[%s630 + $0x388] sm:$0xff] %v3267
        %3684 = vst [vmem:[%s630 + $0x390] sm:$0xff] %v3308
        %3685 = vst [vmem:[%s630 + $0x398] sm:$0xff] %v3310
        %3686 = vst [vmem:[%s630 + $0x3a0] sm:$0xff] %v3351
        %3687 = vst [vmem:[%s630 + $0x3a8] sm:$0xff] %v3353
        %3688 = vst [vmem:[%s630 + $0x3b0] sm:$0xff] %v3394
        %3689 = vst [vmem:[%s630 + $0x3b8] sm:$0xff] %v3396
        %3690 = vst [vmem:[%s630 + $0x3c0] sm:$0xff] %v3437
        %3691 = vst [vmem:[%s630 + $0x3c8] sm:$0xff] %v3439
        %3692 = vst [vmem:[%s630 + $0x3d0] sm:$0xff] %v3480
        %3693 = vst [vmem:[%s630 + $0x3d8] sm:$0xff] %v3482
        %3694 = vst [vmem:[%s630 + $0x3e0] sm:$0xff] %v3523
        %3695 = vst [vmem:[%s630 + $0x3e8] sm:$0xff] %v3525
        %3696 = vst [vmem:[%s630 + $0x3f0] sm:$0xff] %v3566
        %3697 = vst [vmem:[%s630 + $0x3f8] sm:$0xff] %v3568
        %s3698 = sand.u32 %s90, 1
        %s3699 = sand.u32 %s90, 1
        %s3700 = smul.addr %s3699, 1024
        %s3701 = scalar_lea.vmem [#allocation3], %s3700
        // Predicated region
        $region56: #{_conv3d_single.1} parent=50 // pred_check
          %p3702 = pneg %p100
        $region57: #{_conv3d_single.1} parent=50 // pred_check_branch
          %3704 = sbr.rel (%p3702) target = $region59
        $region58: #{_conv3d_single.1} parent=50 // pred_region
          %s3705 = smul.u32 64, %s14
          %s3706 = smul.addr %s3705, 8
          %s3707 = scalar_lea.vmem %s3, %s3706
          // Predicated region
          $region60: #{_conv3d_single.1} parent=58 // pred_check
            _
          $region61: #{_conv3d_single.1} parent=58 // pred_check_branch
            %3709 = sbr.rel (0) target = $region63
          $region62: #{_conv3d_single.1} parent=58 // pred_region
            // Predicated region
            $region64: #{_conv3d_single.1} parent=62 // pred_check
              _
            $region65: #{_conv3d_single.1} parent=62 // pred_check_branch
              %3711 = sbr.rel (0) target = $region67
            $region66: #{_conv3d_single.1} parent=62 // pred_region
              loop: start=0, step=1, limit=1
              $region68: #{_conv3d_single.1} parent=66 // loop_pre_header
                _
              $region69: #{_conv3d_single.1} parent=66 // loop_header
                %s3713 = sphi 0, %s3717
                %p3714 = scmp.ge.s32.totalorder %s3713, 1
                %s3718 = sphi %s3701, %s3701
                %s3719 = sphi %s3707, %s3707
              $region70: #{_conv3d_single.1} parent=66 // loop_header_branch
                %3716 = sbr.rel (%p3714) target = $region74
              $region71: #{_conv3d_single.1} parent=66 // loop_body
                %v3720 = vld [vmem:[%s3718] sm:$0xff]
                %3721 = vst [vmem:[%s3719] sm:$0xff] %v3720
                %v3722 = vld [vmem:[%s3718 + $0x8] sm:$0xff]
                %3723 = vst [vmem:[%s3719 + $0x8] sm:$0xff] %v3722
                %v3724 = vld [vmem:[%s3718 + $0x10] sm:$0xff]
                %3725 = vst [vmem:[%s3719 + $0x10] sm:$0xff] %v3724
                %v3726 = vld [vmem:[%s3718 + $0x18] sm:$0xff]
                %3727 = vst [vmem:[%s3719 + $0x18] sm:$0xff] %v3726
                %v3728 = vld [vmem:[%s3718 + $0x20] sm:$0xff]
                %3729 = vst [vmem:[%s3719 + $0x20] sm:$0xff] %v3728
                %v3730 = vld [vmem:[%s3718 + $0x28] sm:$0xff]
                %3731 = vst [vmem:[%s3719 + $0x28] sm:$0xff] %v3730
                %v3732 = vld [vmem:[%s3718 + $0x30] sm:$0xff]
                %3733 = vst [vmem:[%s3719 + $0x30] sm:$0xff] %v3732
                %v3734 = vld [vmem:[%s3718 + $0x38] sm:$0xff]
                %3735 = vst [vmem:[%s3719 + $0x38] sm:$0xff] %v3734
                %v3736 = vld [vmem:[%s3718 + $0x40] sm:$0xff]
                %3737 = vst [vmem:[%s3719 + $0x40] sm:$0xff] %v3736
                %v3738 = vld [vmem:[%s3718 + $0x48] sm:$0xff]
                %3739 = vst [vmem:[%s3719 + $0x48] sm:$0xff] %v3738
                %v3740 = vld [vmem:[%s3718 + $0x50] sm:$0xff]
                %3741 = vst [vmem:[%s3719 + $0x50] sm:$0xff] %v3740
                %v3742 = vld [vmem:[%s3718 + $0x58] sm:$0xff]
                %3743 = vst [vmem:[%s3719 + $0x58] sm:$0xff] %v3742
                %v3744 = vld [vmem:[%s3718 + $0x60] sm:$0xff]
                %3745 = vst [vmem:[%s3719 + $0x60] sm:$0xff] %v3744
                %v3746 = vld [vmem:[%s3718 + $0x68] sm:$0xff]
                %3747 = vst [vmem:[%s3719 + $0x68] sm:$0xff] %v3746
                %v3748 = vld [vmem:[%s3718 + $0x70] sm:$0xff]
                %3749 = vst [vmem:[%s3719 + $0x70] sm:$0xff] %v3748
                %v3750 = vld [vmem:[%s3718 + $0x78] sm:$0xff]
                %3751 = vst [vmem:[%s3719 + $0x78] sm:$0xff] %v3750
                %v3752 = vld [vmem:[%s3718 + $0x80] sm:$0xff]
                %3753 = vst [vmem:[%s3719 + $0x80] sm:$0xff] %v3752
                %v3754 = vld [vmem:[%s3718 + $0x88] sm:$0xff]
                %3755 = vst [vmem:[%s3719 + $0x88] sm:$0xff] %v3754
                %v3756 = vld [vmem:[%s3718 + $0x90] sm:$0xff]
                %3757 = vst [vmem:[%s3719 + $0x90] sm:$0xff] %v3756
                %v3758 = vld [vmem:[%s3718 + $0x98] sm:$0xff]
                %3759 = vst [vmem:[%s3719 + $0x98] sm:$0xff] %v3758
                %v3760 = vld [vmem:[%s3718 + $0xa0] sm:$0xff]
                %3761 = vst [vmem:[%s3719 + $0xa0] sm:$0xff] %v3760
                %v3762 = vld [vmem:[%s3718 + $0xa8] sm:$0xff]
                %3763 = vst [vmem:[%s3719 + $0xa8] sm:$0xff] %v3762
                %v3764 = vld [vmem:[%s3718 + $0xb0] sm:$0xff]
                %3765 = vst [vmem:[%s3719 + $0xb0] sm:$0xff] %v3764
                %v3766 = vld [vmem:[%s3718 + $0xb8] sm:$0xff]
                %3767 = vst [vmem:[%s3719 + $0xb8] sm:$0xff] %v3766
                %v3768 = vld [vmem:[%s3718 + $0xc0] sm:$0xff]
                %3769 = vst [vmem:[%s3719 + $0xc0] sm:$0xff] %v3768
                %v3770 = vld [vmem:[%s3718 + $0xc8] sm:$0xff]
                %3771 = vst [vmem:[%s3719 + $0xc8] sm:$0xff] %v3770
                %v3772 = vld [vmem:[%s3718 + $0xd0] sm:$0xff]
                %3773 = vst [vmem:[%s3719 + $0xd0] sm:$0xff] %v3772
                %v3774 = vld [vmem:[%s3718 + $0xd8] sm:$0xff]
                %3775 = vst [vmem:[%s3719 + $0xd8] sm:$0xff] %v3774
                %v3776 = vld [vmem:[%s3718 + $0xe0] sm:$0xff]
                %3777 = vst [vmem:[%s3719 + $0xe0] sm:$0xff] %v3776
                %v3778 = vld [vmem:[%s3718 + $0xe8] sm:$0xff]
                %3779 = vst [vmem:[%s3719 + $0xe8] sm:$0xff] %v3778
                %v3780 = vld [vmem:[%s3718 + $0xf0] sm:$0xff]
                %3781 = vst [vmem:[%s3719 + $0xf0] sm:$0xff] %v3780
                %v3782 = vld [vmem:[%s3718 + $0xf8] sm:$0xff]
                %3783 = vst [vmem:[%s3719 + $0xf8] sm:$0xff] %v3782
                %v3784 = vld [vmem:[%s3718 + $0x100] sm:$0xff]
                %3785 = vst [vmem:[%s3719 + $0x100] sm:$0xff] %v3784
                %v3786 = vld [vmem:[%s3718 + $0x108] sm:$0xff]
                %3787 = vst [vmem:[%s3719 + $0x108] sm:$0xff] %v3786
                %v3788 = vld [vmem:[%s3718 + $0x110] sm:$0xff]
                %3789 = vst [vmem:[%s3719 + $0x110] sm:$0xff] %v3788
                %v3790 = vld [vmem:[%s3718 + $0x118] sm:$0xff]
                %3791 = vst [vmem:[%s3719 + $0x118] sm:$0xff] %v3790
                %v3792 = vld [vmem:[%s3718 + $0x120] sm:$0xff]
                %3793 = vst [vmem:[%s3719 + $0x120] sm:$0xff] %v3792
                %v3794 = vld [vmem:[%s3718 + $0x128] sm:$0xff]
                %3795 = vst [vmem:[%s3719 + $0x128] sm:$0xff] %v3794
                %v3796 = vld [vmem:[%s3718 + $0x130] sm:$0xff]
                %3797 = vst [vmem:[%s3719 + $0x130] sm:$0xff] %v3796
                %v3798 = vld [vmem:[%s3718 + $0x138] sm:$0xff]
                %3799 = vst [vmem:[%s3719 + $0x138] sm:$0xff] %v3798
                %v3800 = vld [vmem:[%s3718 + $0x140] sm:$0xff]
                %3801 = vst [vmem:[%s3719 + $0x140] sm:$0xff] %v3800
                %v3802 = vld [vmem:[%s3718 + $0x148] sm:$0xff]
                %3803 = vst [vmem:[%s3719 + $0x148] sm:$0xff] %v3802
                %v3804 = vld [vmem:[%s3718 + $0x150] sm:$0xff]
                %3805 = vst [vmem:[%s3719 + $0x150] sm:$0xff] %v3804
                %v3806 = vld [vmem:[%s3718 + $0x158] sm:$0xff]
                %3807 = vst [vmem:[%s3719 + $0x158] sm:$0xff] %v3806
                %v3808 = vld [vmem:[%s3718 + $0x160] sm:$0xff]
                %3809 = vst [vmem:[%s3719 + $0x160] sm:$0xff] %v3808
                %v3810 = vld [vmem:[%s3718 + $0x168] sm:$0xff]
                %3811 = vst [vmem:[%s3719 + $0x168] sm:$0xff] %v3810
                %v3812 = vld [vmem:[%s3718 + $0x170] sm:$0xff]
                %3813 = vst [vmem:[%s3719 + $0x170] sm:$0xff] %v3812
                %v3814 = vld [vmem:[%s3718 + $0x178] sm:$0xff]
                %3815 = vst [vmem:[%s3719 + $0x178] sm:$0xff] %v3814
                %v3816 = vld [vmem:[%s3718 + $0x180] sm:$0xff]
                %3817 = vst [vmem:[%s3719 + $0x180] sm:$0xff] %v3816
                %v3818 = vld [vmem:[%s3718 + $0x188] sm:$0xff]
                %3819 = vst [vmem:[%s3719 + $0x188] sm:$0xff] %v3818
                %v3820 = vld [vmem:[%s3718 + $0x190] sm:$0xff]
                %3821 = vst [vmem:[%s3719 + $0x190] sm:$0xff] %v3820
                %v3822 = vld [vmem:[%s3718 + $0x198] sm:$0xff]
                %3823 = vst [vmem:[%s3719 + $0x198] sm:$0xff] %v3822
                %v3824 = vld [vmem:[%s3718 + $0x1a0] sm:$0xff]
                %3825 = vst [vmem:[%s3719 + $0x1a0] sm:$0xff] %v3824
                %v3826 = vld [vmem:[%s3718 + $0x1a8] sm:$0xff]
                %3827 = vst [vmem:[%s3719 + $0x1a8] sm:$0xff] %v3826
                %v3828 = vld [vmem:[%s3718 + $0x1b0] sm:$0xff]
                %3829 = vst [vmem:[%s3719 + $0x1b0] sm:$0xff] %v3828
                %v3830 = vld [vmem:[%s3718 + $0x1b8] sm:$0xff]
                %3831 = vst [vmem:[%s3719 + $0x1b8] sm:$0xff] %v3830
                %v3832 = vld [vmem:[%s3718 + $0x1c0] sm:$0xff]
                %3833 = vst [vmem:[%s3719 + $0x1c0] sm:$0xff] %v3832
                %v3834 = vld [vmem:[%s3718 + $0x1c8] sm:$0xff]
                %3835 = vst [vmem:[%s3719 + $0x1c8] sm:$0xff] %v3834
                %v3836 = vld [vmem:[%s3718 + $0x1d0] sm:$0xff]
                %3837 = vst [vmem:[%s3719 + $0x1d0] sm:$0xff] %v3836
                %v3838 = vld [vmem:[%s3718 + $0x1d8] sm:$0xff]
                %3839 = vst [vmem:[%s3719 + $0x1d8] sm:$0xff] %v3838
                %v3840 = vld [vmem:[%s3718 + $0x1e0] sm:$0xff]
                %3841 = vst [vmem:[%s3719 + $0x1e0] sm:$0xff] %v3840
                %v3842 = vld [vmem:[%s3718 + $0x1e8] sm:$0xff]
                %3843 = vst [vmem:[%s3719 + $0x1e8] sm:$0xff] %v3842
                %v3844 = vld [vmem:[%s3718 + $0x1f0] sm:$0xff]
                %3845 = vst [vmem:[%s3719 + $0x1f0] sm:$0xff] %v3844
                %v3846 = vld [vmem:[%s3718 + $0x1f8] sm:$0xff]
                %3847 = vst [vmem:[%s3719 + $0x1f8] sm:$0xff] %v3846
                %v3848 = vld [vmem:[%s3718 + $0x200] sm:$0xff]
                %3849 = vst [vmem:[%s3719 + $0x4000] sm:$0xff] %v3848
                %v3850 = vld [vmem:[%s3718 + $0x208] sm:$0xff]
                %3851 = vst [vmem:[%s3719 + $0x4008] sm:$0xff] %v3850
                %v3852 = vld [vmem:[%s3718 + $0x210] sm:$0xff]
                %3853 = vst [vmem:[%s3719 + $0x4010] sm:$0xff] %v3852
                %v3854 = vld [vmem:[%s3718 + $0x218] sm:$0xff]
                %3855 = vst [vmem:[%s3719 + $0x4018] sm:$0xff] %v3854
                %v3856 = vld [vmem:[%s3718 + $0x220] sm:$0xff]
                %3857 = vst [vmem:[%s3719 + $0x4020] sm:$0xff] %v3856
                %v3858 = vld [vmem:[%s3718 + $0x228] sm:$0xff]
                %3859 = vst [vmem:[%s3719 + $0x4028] sm:$0xff] %v3858
                %v3860 = vld [vmem:[%s3718 + $0x230] sm:$0xff]
                %3861 = vst [vmem:[%s3719 + $0x4030] sm:$0xff] %v3860
                %v3862 = vld [vmem:[%s3718 + $0x238] sm:$0xff]
                %3863 = vst [vmem:[%s3719 + $0x4038] sm:$0xff] %v3862
                %v3864 = vld [vmem:[%s3718 + $0x240] sm:$0xff]
                %3865 = vst [vmem:[%s3719 + $0x4040] sm:$0xff] %v3864
                %v3866 = vld [vmem:[%s3718 + $0x248] sm:$0xff]
                %3867 = vst [vmem:[%s3719 + $0x4048] sm:$0xff] %v3866
                %v3868 = vld [vmem:[%s3718 + $0x250] sm:$0xff]
                %3869 = vst [vmem:[%s3719 + $0x4050] sm:$0xff] %v3868
                %v3870 = vld [vmem:[%s3718 + $0x258] sm:$0xff]
                %3871 = vst [vmem:[%s3719 + $0x4058] sm:$0xff] %v3870
                %v3872 = vld [vmem:[%s3718 + $0x260] sm:$0xff]
                %3873 = vst [vmem:[%s3719 + $0x4060] sm:$0xff] %v3872
                %v3874 = vld [vmem:[%s3718 + $0x268] sm:$0xff]
                %3875 = vst [vmem:[%s3719 + $0x4068] sm:$0xff] %v3874
                %v3876 = vld [vmem:[%s3718 + $0x270] sm:$0xff]
                %3877 = vst [vmem:[%s3719 + $0x4070] sm:$0xff] %v3876
                %v3878 = vld [vmem:[%s3718 + $0x278] sm:$0xff]
                %3879 = vst [vmem:[%s3719 + $0x4078] sm:$0xff] %v3878
                %v3880 = vld [vmem:[%s3718 + $0x280] sm:$0xff]
                %3881 = vst [vmem:[%s3719 + $0x4080] sm:$0xff] %v3880
                %v3882 = vld [vmem:[%s3718 + $0x288] sm:$0xff]
                %3883 = vst [vmem:[%s3719 + $0x4088] sm:$0xff] %v3882
                %v3884 = vld [vmem:[%s3718 + $0x290] sm:$0xff]
                %3885 = vst [vmem:[%s3719 + $0x4090] sm:$0xff] %v3884
                %v3886 = vld [vmem:[%s3718 + $0x298] sm:$0xff]
                %3887 = vst [vmem:[%s3719 + $0x4098] sm:$0xff] %v3886
                %v3888 = vld [vmem:[%s3718 + $0x2a0] sm:$0xff]
                %3889 = vst [vmem:[%s3719 + $0x40a0] sm:$0xff] %v3888
                %v3890 = vld [vmem:[%s3718 + $0x2a8] sm:$0xff]
                %3891 = vst [vmem:[%s3719 + $0x40a8] sm:$0xff] %v3890
                %v3892 = vld [vmem:[%s3718 + $0x2b0] sm:$0xff]
                %3893 = vst [vmem:[%s3719 + $0x40b0] sm:$0xff] %v3892
                %v3894 = vld [vmem:[%s3718 + $0x2b8] sm:$0xff]
                %3895 = vst [vmem:[%s3719 + $0x40b8] sm:$0xff] %v3894
                %v3896 = vld [vmem:[%s3718 + $0x2c0] sm:$0xff]
                %3897 = vst [vmem:[%s3719 + $0x40c0] sm:$0xff] %v3896
                %v3898 = vld [vmem:[%s3718 + $0x2c8] sm:$0xff]
                %3899 = vst [vmem:[%s3719 + $0x40c8] sm:$0xff] %v3898
                %v3900 = vld [vmem:[%s3718 + $0x2d0] sm:$0xff]
                %3901 = vst [vmem:[%s3719 + $0x40d0] sm:$0xff] %v3900
                %v3902 = vld [vmem:[%s3718 + $0x2d8] sm:$0xff]
                %3903 = vst [vmem:[%s3719 + $0x40d8] sm:$0xff] %v3902
                %v3904 = vld [vmem:[%s3718 + $0x2e0] sm:$0xff]
                %3905 = vst [vmem:[%s3719 + $0x40e0] sm:$0xff] %v3904
                %v3906 = vld [vmem:[%s3718 + $0x2e8] sm:$0xff]
                %3907 = vst [vmem:[%s3719 + $0x40e8] sm:$0xff] %v3906
                %v3908 = vld [vmem:[%s3718 + $0x2f0] sm:$0xff]
                %3909 = vst [vmem:[%s3719 + $0x40f0] sm:$0xff] %v3908
                %v3910 = vld [vmem:[%s3718 + $0x2f8] sm:$0xff]
                %3911 = vst [vmem:[%s3719 + $0x40f8] sm:$0xff] %v3910
                %v3912 = vld [vmem:[%s3718 + $0x300] sm:$0xff]
                %3913 = vst [vmem:[%s3719 + $0x4100] sm:$0xff] %v3912
                %v3914 = vld [vmem:[%s3718 + $0x308] sm:$0xff]
                %3915 = vst [vmem:[%s3719 + $0x4108] sm:$0xff] %v3914
                %v3916 = vld [vmem:[%s3718 + $0x310] sm:$0xff]
                %3917 = vst [vmem:[%s3719 + $0x4110] sm:$0xff] %v3916
                %v3918 = vld [vmem:[%s3718 + $0x318] sm:$0xff]
                %3919 = vst [vmem:[%s3719 + $0x4118] sm:$0xff] %v3918
                %v3920 = vld [vmem:[%s3718 + $0x320] sm:$0xff]
                %3921 = vst [vmem:[%s3719 + $0x4120] sm:$0xff] %v3920
                %v3922 = vld [vmem:[%s3718 + $0x328] sm:$0xff]
                %3923 = vst [vmem:[%s3719 + $0x4128] sm:$0xff] %v3922
                %v3924 = vld [vmem:[%s3718 + $0x330] sm:$0xff]
                %3925 = vst [vmem:[%s3719 + $0x4130] sm:$0xff] %v3924
                %v3926 = vld [vmem:[%s3718 + $0x338] sm:$0xff]
                %3927 = vst [vmem:[%s3719 + $0x4138] sm:$0xff] %v3926
                %v3928 = vld [vmem:[%s3718 + $0x340] sm:$0xff]
                %3929 = vst [vmem:[%s3719 + $0x4140] sm:$0xff] %v3928
                %v3930 = vld [vmem:[%s3718 + $0x348] sm:$0xff]
                %3931 = vst [vmem:[%s3719 + $0x4148] sm:$0xff] %v3930
                %v3932 = vld [vmem:[%s3718 + $0x350] sm:$0xff]
                %3933 = vst [vmem:[%s3719 + $0x4150] sm:$0xff] %v3932
                %v3934 = vld [vmem:[%s3718 + $0x358] sm:$0xff]
                %3935 = vst [vmem:[%s3719 + $0x4158] sm:$0xff] %v3934
                %v3936 = vld [vmem:[%s3718 + $0x360] sm:$0xff]
                %3937 = vst [vmem:[%s3719 + $0x4160] sm:$0xff] %v3936
                %v3938 = vld [vmem:[%s3718 + $0x368] sm:$0xff]
                %3939 = vst [vmem:[%s3719 + $0x4168] sm:$0xff] %v3938
                %v3940 = vld [vmem:[%s3718 + $0x370] sm:$0xff]
                %3941 = vst [vmem:[%s3719 + $0x4170] sm:$0xff] %v3940
                %v3942 = vld [vmem:[%s3718 + $0x378] sm:$0xff]
                %3943 = vst [vmem:[%s3719 + $0x4178] sm:$0xff] %v3942
                %v3944 = vld [vmem:[%s3718 + $0x380] sm:$0xff]
                %3945 = vst [vmem:[%s3719 + $0x4180] sm:$0xff] %v3944
                %v3946 = vld [vmem:[%s3718 + $0x388] sm:$0xff]
                %3947 = vst [vmem:[%s3719 + $0x4188] sm:$0xff] %v3946
                %v3948 = vld [vmem:[%s3718 + $0x390] sm:$0xff]
                %3949 = vst [vmem:[%s3719 + $0x4190] sm:$0xff] %v3948
                %v3950 = vld [vmem:[%s3718 + $0x398] sm:$0xff]
                %3951 = vst [vmem:[%s3719 + $0x4198] sm:$0xff] %v3950
                %v3952 = vld [vmem:[%s3718 + $0x3a0] sm:$0xff]
                %3953 = vst [vmem:[%s3719 + $0x41a0] sm:$0xff] %v3952
                %v3954 = vld [vmem:[%s3718 + $0x3a8] sm:$0xff]
                %3955 = vst [vmem:[%s3719 + $0x41a8] sm:$0xff] %v3954
                %v3956 = vld [vmem:[%s3718 + $0x3b0] sm:$0xff]
                %3957 = vst [vmem:[%s3719 + $0x41b0] sm:$0xff] %v3956
                %v3958 = vld [vmem:[%s3718 + $0x3b8] sm:$0xff]
                %3959 = vst [vmem:[%s3719 + $0x41b8] sm:$0xff] %v3958
                %v3960 = vld [vmem:[%s3718 + $0x3c0] sm:$0xff]
                %3961 = vst [vmem:[%s3719 + $0x41c0] sm:$0xff] %v3960
                %v3962 = vld [vmem:[%s3718 + $0x3c8] sm:$0xff]
                %3963 = vst [vmem:[%s3719 + $0x41c8] sm:$0xff] %v3962
                %v3964 = vld [vmem:[%s3718 + $0x3d0] sm:$0xff]
                %3965 = vst [vmem:[%s3719 + $0x41d0] sm:$0xff] %v3964
                %v3966 = vld [vmem:[%s3718 + $0x3d8] sm:$0xff]
                %3967 = vst [vmem:[%s3719 + $0x41d8] sm:$0xff] %v3966
                %v3968 = vld [vmem:[%s3718 + $0x3e0] sm:$0xff]
                %3969 = vst [vmem:[%s3719 + $0x41e0] sm:$0xff] %v3968
                %v3970 = vld [vmem:[%s3718 + $0x3e8] sm:$0xff]
                %3971 = vst [vmem:[%s3719 + $0x41e8] sm:$0xff] %v3970
                %v3972 = vld [vmem:[%s3718 + $0x3f0] sm:$0xff]
                %3973 = vst [vmem:[%s3719 + $0x41f0] sm:$0xff] %v3972
                %v3974 = vld [vmem:[%s3718 + $0x3f8] sm:$0xff]
                %3975 = vst [vmem:[%s3719 + $0x41f8] sm:$0xff] %v3974
              $region72: #{_conv3d_single.1} parent=66 // loop_footer
                %s3717 = sadd.s32 1, %s3713
              $region73: #{_conv3d_single.1} parent=66 // loop_footer_branch
                %3712 = sbr.rel target = $region69
              $region74: #{_conv3d_single.1} parent=66 // loop_exit
                _
            $region67: #{_conv3d_single.1} parent=62 // pred_fallthru
              _
            // Predicated region
            $region75: #{_conv3d_single.1} parent=62 // pred_check
              _
            $region76: #{_conv3d_single.1} parent=62 // pred_check_branch
              %3977 = sbr.rel target = $region78
            $region77: #{_conv3d_single.1} parent=62 // pred_region
              _
            $region78: #{_conv3d_single.1} parent=62 // pred_fallthru
              _
          $region63: #{_conv3d_single.1} parent=58 // pred_fallthru
            _
          %3978 = vnop
        $region59: #{_conv3d_single.1} parent=50 // pred_fallthru
          _
      $region51: #{_conv3d_single.1} parent=5 // pred_fallthru
        _
      %p3979 = scmp.le.s32.totalorder 2, %s9
      // Predicated region
      $region79: #{_conv3d_single.1} parent=5 // pred_check
        %p3980 = pneg %p3979
      $region80: #{_conv3d_single.1} parent=5 // pred_check_branch
        %3982 = sbr.rel (%p3980) target = $region82
      $region81: #{_conv3d_single.1} parent=5 // pred_region
        %s3983 = ssub.s32 %s9, 2
        // Predicated region
        $region83: #{_conv3d_single.1} parent=81 // pred_check
          %p3984 = pneg %p106
        $region84: #{_conv3d_single.1} parent=81 // pred_check_branch
          %3986 = sbr.rel (%p3984) target = $region86
        $region85: #{_conv3d_single.1} parent=81 // pred_region
          %s3987 = sand.u32 %s91, 1
          %s3988 = sand.u32 %s91, 1
          %s3989 = smul.addr %s3988, 1024
          %s3990 = scalar_lea.vmem [#allocation3], %s3989
        $region86: #{_conv3d_single.1} parent=81 // pred_fallthru
          _
      $region82: #{_conv3d_single.1} parent=5 // pred_fallthru
        _
    $region6: #{_conv3d_single.1} parent=1 // loop_footer
      %s13 = sadd.s32 1, %s9
    $region7: #{_conv3d_single.1} parent=1 // loop_footer_branch
      %8 = sbr.rel target = $region3
    $region8: #{_conv3d_single.1} parent=1 // loop_exit
      _

</llo_original>
